<compile_context>
chip_gen: v6e
topology: v6e:2x2x1
jax: 0.10.0
libtpu: 0.0.40
codegen_flags: <defaults>
</compile_context>

<pallas_src>
import math

import jax
import jax.numpy as jnp
from jax.experimental import pallas as pl
from jax.experimental.pallas import tpu as pltpu

# ---- hyperparameters (small synthetic config consistent with the module) ----
VOCAB_SIZE = 50
VOCAB_PAD = 128          # lane-dense padded vocab for embedding / output logits
D_MODEL = 32
N_HEAD = 4
NUM_LAYERS = 2
DIM_FF = 64              # PyTorch default dim_feedforward is 2048; kept small.
LN_EPS = 1e-5            # nn.LayerNorm default eps
HEAD_DIM = D_MODEL // N_HEAD


# ------------------------------ fused kernel ----------------------------------
def fused_transformer_kernel(ids_ref, emb_ref,
                             wqkv_ref, bqkv_ref, wo_ref, bo_ref,
                             g1_ref, be1_ref, w1_ref, bf1_ref,
                             w2_ref, bf2_ref, g2_ref, be2_ref,
                             wout_ref, bout_ref,
                             logits_ref, hid_ref):
    f32, bf16 = jnp.float32, jnp.bfloat16
    num_layers = wqkv_ref.shape[0]
    ids = ids_ref[0]                       # (B, 1) int32 for this s-block
    b = ids.shape[0]

    # embedding lookup as one-hot @ table (lane-dense, MXU-friendly at V=128)
    # TODO(synk): for large vocab, switch to scalar-prefetched ids + pl.Element
    # row-gather BlockSpec instead of the one-hot matmul.
    vocab_iota = jax.lax.broadcasted_iota(jnp.int32, (b, VOCAB_PAD), 1)
    onehot = (vocab_iota == ids).astype(bf16)                      # (B, 128)
    x = jnp.dot(onehot, emb_ref[...], preferred_element_type=f32)  # (B, D) f32

    scale = f32(1.0 / math.sqrt(HEAD_DIM))

    def layernorm(v, g, beta):
        mu = jnp.mean(v, axis=-1, keepdims=True)
        var = jnp.mean((v - mu) ** 2, axis=-1, keepdims=True)
        return (v - mu) * jax.lax.rsqrt(var + LN_EPS) * g + beta

    # TODO(synk): at D=512 the all-layers-resident bf16 weights overflow v7x's
    # 64 MiB VMEM -- stream layer l+1 weights with a manual double-buffered DMA
    # (or fp8 weights on v7x) and set vmem_limit_bytes explicitly.
    for l in range(num_layers):            # static unroll, weights VMEM-resident
        xb = x.astype(bf16)
        # fused QKV: one (B, D) @ (D, 3D) matmul, bf16 in / f32 accumulate
        qkv = jnp.dot(xb, wqkv_ref[l], preferred_element_type=f32) + bqkv_ref[l]
        q = qkv[:, 0 * D_MODEL:1 * D_MODEL] * scale    # scale folded into q once
        k = qkv[:, 1 * D_MODEL:2 * D_MODEL]
        v = qkv[:, 2 * D_MODEL:3 * D_MODEL]

        # block-diagonal attention: this s-block's B rows attend only each other,
        # so scores are B x B per head -- no (B*S)^2 matrix and no mask at all.
        # TODO(synk): at realistic HEAD_DIM, replace the per-head lane slices by
        # a batched (h, b, d) einsum layout to better fill the MXU.
        wo_l = wo_ref[l]                               # (D, D) bf16
        attn = jnp.zeros((b, D_MODEL), f32)
        for h in range(N_HEAD):                        # static unroll (N_HEAD=4)
            lo = h * HEAD_DIM
            qh = q[:, lo:lo + HEAD_DIM].astype(bf16)
            kh = k[:, lo:lo + HEAD_DIM].astype(bf16)
            vh = v[:, lo:lo + HEAD_DIM].astype(bf16)
            s_h = jnp.einsum('bd,cd->bc', qh, kh,
                             preferred_element_type=f32)           # (B, B)
            s_h = s_h - jnp.max(s_h, axis=-1, keepdims=True)
            p_h = jnp.exp(s_h)
            p_h = p_h / jnp.sum(p_h, axis=-1, keepdims=True)        # exact divide
            ctx_h = jnp.dot(p_h.astype(bf16), vh,
                            preferred_element_type=f32)             # (B, hd)
            # fold the out-projection per head: ctx @ Wo == sum_h ctx_h @ Wo_h
            attn = attn + jnp.dot(ctx_h.astype(bf16),
                                  wo_l[lo:lo + HEAD_DIM, :],
                                  preferred_element_type=f32)
        attn = attn + bo_ref[l]

        # residual + LN1 + FFN(relu) + residual + LN2  (post-norm, f32 math)
        y = layernorm(x + attn, g1_ref[l], be1_ref[l])
        h1 = jnp.maximum(
            jnp.dot(y.astype(bf16), w1_ref[l], preferred_element_type=f32)
            + bf1_ref[l], 0.0)
        h2 = (jnp.dot(h1.astype(bf16), w2_ref[l], preferred_element_type=f32)
              + bf2_ref[l])
        x = layernorm(y + h2, g2_ref[l], be2_ref[l])

    hid_ref[0] = x                                                  # (B, D)
    # output projection into the lane-dense padded vocab (128 wide)
    logits_ref[0] = (jnp.dot(x.astype(bf16), wout_ref[...],
                             preferred_element_type=f32) + bout_ref[...])


# -------------------------------- wrapper --------------------------------------
def transformer_forward(params, token_ids, attention_masks):
    # attention_masks accepted but unused -- same as the PyTorch forward().
    del attention_masks
    emb_pad, stacked, wout_pad, bout_pad = params
    B, S = token_ids.shape

    # s-major layout: rows that attend each other (same s) are contiguous.
    ids_sb = jnp.transpose(token_ids.astype(jnp.int32), (1, 0)).reshape(S, B, 1)

    def resident(arr):       # weights: same block every step -> DMA'd only once
        return pl.BlockSpec(arr.shape, lambda s, n=arr.ndim: (0,) * n)

    in_specs = ([pl.BlockSpec((1, B, 1), lambda s: (s, 0, 0)), resident(emb_pad)]
                + [resident(w) for w in stacked]
                + [resident(wout_pad), resident(bout_pad)])
    out_specs = (pl.BlockSpec((1, B, VOCAB_PAD), lambda s: (s, 0, 0)),
                 pl.BlockSpec((1, B, D_MODEL), lambda s: (s, 0, 0)))
    out_shape = (jax.ShapeDtypeStruct((S, B, VOCAB_PAD), jnp.float32),
                 jax.ShapeDtypeStruct((S, B, D_MODEL), jnp.float32))

    logits_sb, hid_sb = pl.pallas_call(
        fused_transformer_kernel,
        grid=(S,),
        in_specs=in_specs,
        out_specs=out_specs,
        out_shape=out_shape,
        compiler_params=pltpu.CompilerParams(
            dimension_semantics=("parallel",)),  # shard s-blocks across TCs (v7x)
    )(ids_sb, emb_pad, *stacked, wout_pad, bout_pad)

    logits = jnp.transpose(logits_sb[:, :, :VOCAB_SIZE], (1, 0, 2))  # (B, S, V)
    x_first = hid_sb[0]                                              # == x[:, 0, :]
    return logits, x_first


# --------------------------- pure-JAX reference --------------------------------
def reference_forward(params, token_ids):
    emb_pad, stacked, wout_pad, bout_pad = params
    f32 = jnp.float32
    (wqkv, bqkv, wo, bo, g1, be1, w1, bf1, w2, bf2, g2, be2) = [
        a.astype(f32) for a in stacked]
    emb = emb_pad.astype(f32)
    B, S = token_ids.shape
    x = jnp.take(emb, token_ids, axis=0)                            # (B, S, D)

    def ln(v, g, b):
        mu = jnp.mean(v, axis=-1, keepdims=True)
        var = jnp.mean((v - mu) ** 2, axis=-1, keepdims=True)
        return (v - mu) * jax.lax.rsqrt(var + LN_EPS) * g + b

    for l in range(NUM_LAYERS):
        qkv = x @ wqkv[l] + bqkv[l]
        q, k, v = jnp.split(qkv, 3, axis=-1)
        qh = q.reshape(B, S, N_HEAD, HEAD_DIM)
        kh = k.reshape(B, S, N_HEAD, HEAD_DIM)
        vh = v.reshape(B, S, N_HEAD, HEAD_DIM)
        # attention over the B axis (batch_first=False semantics)
        scores = jnp.einsum('bshd,cshd->shbc', qh, kh) / math.sqrt(HEAD_DIM)
        p = jax.nn.softmax(scores, axis=-1)
        ctx = jnp.einsum('shbc,cshd->bshd', p, vh).reshape(B, S, D_MODEL)
        attn = ctx @ wo[l] + bo[l]
        y = ln(x + attn, g1[l], be1[l])
        h1 = jnp.maximum(y @ w1[l] + bf1[l], 0.0)
        x = ln(y + h1 @ w2[l] + bf2[l], g2[l], be2[l])

    wout = wout_pad.astype(f32)[:, :VOCAB_SIZE]
    bout = bout_pad.astype(f32)[:, :VOCAB_SIZE]
    logits = x @ wout + bout
    return logits, x[:, 0, :]


# --------------------------- parameter construction ----------------------------
def _key_iter(key):
    i = 0
    while True:
        yield jax.random.fold_in(key, i)
        i += 1


def init_params(key):
    keys = _key_iter(key)

    def dense(shape, scale, dtype=jnp.bfloat16):
        return (scale * jax.random.normal(next(keys), shape)).astype(dtype)

    emb = dense((VOCAB_SIZE, D_MODEL), 0.5)
    emb_pad = jnp.zeros((VOCAB_PAD, D_MODEL), jnp.bfloat16).at[:VOCAB_SIZE].set(emb)

    cols = [[] for _ in range(12)]
    for _ in range(NUM_LAYERS):
        cols[0].append(dense((D_MODEL, 3 * D_MODEL), 0.1))                # wqkv
        cols[1].append(dense((1, 3 * D_MODEL), 0.02, jnp.float32))        # bqkv
        cols[2].append(dense((D_MODEL, D_MODEL), 0.1))                    # wo
        cols[3].append(dense((1, D_MODEL), 0.02, jnp.float32))            # bo
        cols[4].append(jnp.ones((1, D_MODEL), jnp.float32))               # ln1 g
        cols[5].append(jnp.zeros((1, D_MODEL), jnp.float32))              # ln1 b
        cols[6].append(dense((D_MODEL, DIM_FF), 0.1))                     # w1
        cols[7].append(dense((1, DIM_FF), 0.02, jnp.float32))             # b1
        cols[8].append(dense((DIM_FF, D_MODEL), 0.1))                     # w2
        cols[9].append(dense((1, D_MODEL), 0.02, jnp.float32))            # b2
        cols[10].append(jnp.ones((1, D_MODEL), jnp.float32))              # ln2 g
        cols[11].append(jnp.zeros((1, D_MODEL), jnp.float32))             # ln2 b
    stacked = tuple(jnp.stack(c, axis=0) for c in cols)                   # (L, ...)

    wout = dense((D_MODEL, VOCAB_SIZE), 0.1)
    bout = dense((1, VOCAB_SIZE), 0.02, jnp.float32)
    wout_pad = (jnp.zeros((D_MODEL, VOCAB_PAD), jnp.bfloat16)
                .at[:, :VOCAB_SIZE].set(wout))
    bout_pad = (jnp.zeros((1, VOCAB_PAD), jnp.float32)
                .at[:, :VOCAB_SIZE].set(bout))
    return emb_pad, stacked, wout_pad, bout_pad


if __name__ == "__main__":
    key = jax.random.PRNGKey(0)
    pkey, ikey = jax.random.split(key)
    params = init_params(pkey)

    B, S = 2, 8
    token_ids = jax.random.randint(ikey, (B, S), 0, VOCAB_SIZE, dtype=jnp.int32)
    attention_masks = jnp.ones((B, S), jnp.float32)   # unused (as in PyTorch)

    logits, cls = jax.jit(transformer_forward)(params, token_ids, attention_masks)
    jax.block_until_ready((logits, cls))

    assert logits.shape == (B, S, VOCAB_SIZE), logits.shape
    assert cls.shape == (B, D_MODEL), cls.shape
    assert bool(jnp.all(jnp.isfinite(logits))) and bool(jnp.all(jnp.isfinite(cls)))

    # pure-JAX f32 reference on the same (bf16-stored) weights; tolerance covers
    # bf16 matmul-operand rounding inside the kernel.
    ref_logits, ref_cls = jax.jit(reference_forward)(params, token_ids)
    err_l = float(jnp.max(jnp.abs(logits - ref_logits)))
    err_c = float(jnp.max(jnp.abs(cls - ref_cls)))
    assert err_l < 5e-2 and err_c < 5e-2, (err_l, err_c)

    print("KERNEL_OK")
</pallas_src>

<mosaic_0001>
module attributes {stable_mosaic.version = 11 : i64} {
  func.func @fused_transformer_kernel(%arg0: i32, %arg1: memref<1x2x1xi32, #tpu.memory_space<vmem>>, %arg2: memref<128x32xbf16, #tpu.memory_space<vmem>>, %arg3: memref<2x32x96xbf16, #tpu.memory_space<vmem>>, %arg4: memref<2x1x96xf32, #tpu.memory_space<vmem>>, %arg5: memref<2x32x32xbf16, #tpu.memory_space<vmem>>, %arg6: memref<2x1x32xf32, #tpu.memory_space<vmem>>, %arg7: memref<2x1x32xf32, #tpu.memory_space<vmem>>, %arg8: memref<2x1x32xf32, #tpu.memory_space<vmem>>, %arg9: memref<2x32x64xbf16, #tpu.memory_space<vmem>>, %arg10: memref<2x1x64xf32, #tpu.memory_space<vmem>>, %arg11: memref<2x64x32xbf16, #tpu.memory_space<vmem>>, %arg12: memref<2x1x32xf32, #tpu.memory_space<vmem>>, %arg13: memref<2x1x32xf32, #tpu.memory_space<vmem>>, %arg14: memref<2x1x32xf32, #tpu.memory_space<vmem>>, %arg15: memref<32x128xbf16, #tpu.memory_space<vmem>>, %arg16: memref<1x128xf32, #tpu.memory_space<vmem>>, %arg17: memref<1x2x128xf32, #tpu.memory_space<vmem>>, %arg18: memref<1x2x32xf32, #tpu.memory_space<vmem>>) attributes {dimension_semantics = [#tpu.dimension_semantics<parallel>], iteration_bounds = array<i64: 8>, scalar_prefetch = 0 : i64, scratch_operands = 0 : i64, tpu.core_type = #tpu.core_type<tc>, window_params = [{transform_indices = @transform_0, window_bounds = array<i64: 1, 2, 1>}, {pipeline_mode = #tpu.pipeline_mode<synchronous>, transform_indices = @transform_1, window_bounds = array<i64: 128, 32>}, {pipeline_mode = #tpu.pipeline_mode<synchronous>, transform_indices = @transform_2, window_bounds = array<i64: 2, 32, 96>}, {pipeline_mode = #tpu.pipeline_mode<synchronous>, transform_indices = @transform_3, window_bounds = array<i64: 2, 1, 96>}, {pipeline_mode = #tpu.pipeline_mode<synchronous>, transform_indices = @transform_4, window_bounds = array<i64: 2, 32, 32>}, {pipeline_mode = #tpu.pipeline_mode<synchronous>, transform_indices = @transform_5, window_bounds = array<i64: 2, 1, 32>}, {pipeline_mode = #tpu.pipeline_mode<synchronous>, transform_indices = @transform_6, window_bounds = array<i64: 2, 1, 32>}, {pipeline_mode = #tpu.pipeline_mode<synchronous>, transform_indices = @transform_7, window_bounds = array<i64: 2, 1, 32>}, {pipeline_mode = #tpu.pipeline_mode<synchronous>, transform_indices = @transform_8, window_bounds = array<i64: 2, 32, 64>}, {pipeline_mode = #tpu.pipeline_mode<synchronous>, transform_indices = @transform_9, window_bounds = array<i64: 2, 1, 64>}, {pipeline_mode = #tpu.pipeline_mode<synchronous>, transform_indices = @transform_10, window_bounds = array<i64: 2, 64, 32>}, {pipeline_mode = #tpu.pipeline_mode<synchronous>, transform_indices = @transform_11, window_bounds = array<i64: 2, 1, 32>}, {pipeline_mode = #tpu.pipeline_mode<synchronous>, transform_indices = @transform_12, window_bounds = array<i64: 2, 1, 32>}, {pipeline_mode = #tpu.pipeline_mode<synchronous>, transform_indices = @transform_13, window_bounds = array<i64: 2, 1, 32>}, {pipeline_mode = #tpu.pipeline_mode<synchronous>, transform_indices = @transform_14, window_bounds = array<i64: 32, 128>}, {pipeline_mode = #tpu.pipeline_mode<synchronous>, transform_indices = @transform_15, window_bounds = array<i64: 1, 128>}, {transform_indices = @transform_16, window_bounds = array<i64: 1, 2, 128>}, {transform_indices = @transform_17, window_bounds = array<i64: 1, 2, 32>}]} {
    %c0 = arith.constant 0 : index
    %c0_0 = arith.constant 0 : index
    %c0_1 = arith.constant 0 : index
    %0 = vector.load %arg1[%c0, %c0_0, %c0_1] : memref<1x2x1xi32, #tpu.memory_space<vmem>>, vector<1x2x1xi32>
    %1 = vector.shape_cast %0 : vector<1x2x1xi32> to vector<2x1xi32>
    %2 = tpu.iota {dimensions = array<i32: 1>} : vector<2x128xi32>
    %3 = vector.broadcast %1 : vector<2x1xi32> to vector<2x128xi32>
    %4 = arith.cmpi eq, %2, %3 : vector<2x128xi32>
    %5 = arith.extui %4 : vector<2x128xi1> to vector<2x128xi32>
    %6 = arith.sitofp %5 : vector<2x128xi32> to vector<2x128xf32>
    %7 = arith.truncf %6 : vector<2x128xf32> to vector<2x128xbf16>
    %c0_2 = arith.constant 0 : index
    %c0_3 = arith.constant 0 : index
    %8 = vector.load %arg2[%c0_2, %c0_3] : memref<128x32xbf16, #tpu.memory_space<vmem>>, vector<128x32xbf16>
    %cst = arith.constant dense<0.000000e+00> : vector<2x32xf32>
    %9 = tpu.matmul %7, %8, %cst {dimension_numbers = #tpu.dot_dimension_numbers<[1], [0], [0], [1], [0, 0, 1, 1], [], []>} : vector<2x128xbf16>, vector<128x32xbf16>, vector<2x32xf32> -> vector<2x32xf32>
    %10 = arith.truncf %9 : vector<2x32xf32> to vector<2x32xbf16>
    %c0_4 = arith.constant 0 : index
    %c0_5 = arith.constant 0 : index
    %c0_6 = arith.constant 0 : index
    %11 = vector.load %arg3[%c0_4, %c0_5, %c0_6] : memref<2x32x96xbf16, #tpu.memory_space<vmem>>, vector<1x32x96xbf16>
    %12 = vector.shape_cast %11 : vector<1x32x96xbf16> to vector<32x96xbf16>
    %cst_7 = arith.constant dense<0.000000e+00> : vector<2x96xf32>
    %13 = tpu.matmul %10, %12, %cst_7 {dimension_numbers = #tpu.dot_dimension_numbers<[1], [0], [0], [1], [0, 0, 1, 1], [], []>} : vector<2x32xbf16>, vector<32x96xbf16>, vector<2x96xf32> -> vector<2x96xf32>
    %c0_8 = arith.constant 0 : index
    %c0_9 = arith.constant 0 : index
    %c0_10 = arith.constant 0 : index
    %14 = vector.load %arg4[%c0_8, %c0_9, %c0_10] : memref<2x1x96xf32, #tpu.memory_space<vmem>>, vector<1x1x96xf32>
    %15 = vector.shape_cast %14 : vector<1x1x96xf32> to vector<1x96xf32>
    %16 = vector.broadcast %15 : vector<1x96xf32> to vector<2x96xf32>
    %17 = arith.addf %13, %16 : vector<2x96xf32>
    %18 = vector.extract_strided_slice %17 {offsets = [0, 0], sizes = [2, 32], strides = [1, 1]} : vector<2x96xf32> to vector<2x32xf32>
    %cst_11 = arith.constant 0.353553385 : f32
    %19 = vector.broadcast %cst_11 : f32 to vector<2x32xf32>
    %20 = arith.mulf %18, %19 : vector<2x32xf32>
    %21 = vector.extract_strided_slice %17 {offsets = [0, 32], sizes = [2, 32], strides = [1, 1]} : vector<2x96xf32> to vector<2x32xf32>
    %22 = vector.extract_strided_slice %17 {offsets = [0, 64], sizes = [2, 32], strides = [1, 1]} : vector<2x96xf32> to vector<2x32xf32>
    %c0_12 = arith.constant 0 : index
    %c0_13 = arith.constant 0 : index
    %c0_14 = arith.constant 0 : index
    %23 = vector.load %arg5[%c0_12, %c0_13, %c0_14] : memref<2x32x32xbf16, #tpu.memory_space<vmem>>, vector<1x32x32xbf16>
    %24 = vector.shape_cast %23 : vector<1x32x32xbf16> to vector<32x32xbf16>
    %cst_15 = arith.constant 0.000000e+00 : f32
    %25 = vector.broadcast %cst_15 : f32 to vector<2x32xf32>
    %26 = vector.extract_strided_slice %20 {offsets = [0, 0], sizes = [2, 8], strides = [1, 1]} : vector<2x32xf32> to vector<2x8xf32>
    %27 = arith.truncf %26 : vector<2x8xf32> to vector<2x8xbf16>
    %28 = vector.extract_strided_slice %21 {offsets = [0, 0], sizes = [2, 8], strides = [1, 1]} : vector<2x32xf32> to vector<2x8xf32>
    %29 = arith.truncf %28 : vector<2x8xf32> to vector<2x8xbf16>
    %30 = vector.extract_strided_slice %22 {offsets = [0, 0], sizes = [2, 8], strides = [1, 1]} : vector<2x32xf32> to vector<2x8xf32>
    %31 = arith.truncf %30 : vector<2x8xf32> to vector<2x8xbf16>
    "tpu.trace_start"() <{level = 10 : i32, message = "bd,cd->bc"}> : () -> ()
    %cst_16 = arith.constant dense<0.000000e+00> : vector<2x2xf32>
    %32 = tpu.matmul %27, %29, %cst_16 {dimension_numbers = #tpu.dot_dimension_numbers<[1], [1], [0], [0], [0, 0, 1, 0], [], []>} : vector<2x8xbf16>, vector<2x8xbf16>, vector<2x2xf32> -> vector<2x2xf32>
    "tpu.trace_stop"() : () -> ()
    %cst_17 = arith.constant dense<0xFF800000> : vector<2xf32>
    %33 = vector.multi_reduction <maximumf>, %32, %cst_17 [1] : vector<2x2xf32> to vector<2xf32>
    %34 = vector.shape_cast %33 : vector<2xf32> to vector<2x1xf32>
    %35 = vector.broadcast %34 : vector<2x1xf32> to vector<2x2xf32>
    %36 = arith.subf %32, %35 : vector<2x2xf32>
    %37 = math.exp %36 : vector<2x2xf32>
    %cst_18 = arith.constant dense<0.000000e+00> : vector<2xf32>
    %38 = vector.multi_reduction <add>, %37, %cst_18 [1] : vector<2x2xf32> to vector<2xf32>
    %39 = vector.shape_cast %38 : vector<2xf32> to vector<2x1xf32>
    %40 = vector.broadcast %39 : vector<2x1xf32> to vector<2x2xf32>
    %41 = arith.divf %37, %40 : vector<2x2xf32>
    %42 = arith.truncf %41 : vector<2x2xf32> to vector<2x2xbf16>
    %cst_19 = arith.constant dense<0.000000e+00> : vector<2x8xf32>
    %43 = tpu.matmul %42, %31, %cst_19 {dimension_numbers = #tpu.dot_dimension_numbers<[1], [0], [0], [1], [0, 0, 1, 1], [], []>} : vector<2x2xbf16>, vector<2x8xbf16>, vector<2x8xf32> -> vector<2x8xf32>
    %44 = arith.truncf %43 : vector<2x8xf32> to vector<2x8xbf16>
    %45 = vector.extract_strided_slice %24 {offsets = [0, 0], sizes = [8, 32], strides = [1, 1]} : vector<32x32xbf16> to vector<8x32xbf16>
    %cst_20 = arith.constant dense<0.000000e+00> : vector<2x32xf32>
    %46 = tpu.matmul %44, %45, %cst_20 {dimension_numbers = #tpu.dot_dimension_numbers<[1], [0], [0], [1], [0, 0, 1, 1], [], []>} : vector<2x8xbf16>, vector<8x32xbf16>, vector<2x32xf32> -> vector<2x32xf32>
    %47 = arith.addf %25, %46 : vector<2x32xf32>
    %48 = vector.extract_strided_slice %20 {offsets = [0, 8], sizes = [2, 8], strides = [1, 1]} : vector<2x32xf32> to vector<2x8xf32>
    %49 = arith.truncf %48 : vector<2x8xf32> to vector<2x8xbf16>
    %50 = vector.extract_strided_slice %21 {offsets = [0, 8], sizes = [2, 8], strides = [1, 1]} : vector<2x32xf32> to vector<2x8xf32>
    %51 = arith.truncf %50 : vector<2x8xf32> to vector<2x8xbf16>
    %52 = vector.extract_strided_slice %22 {offsets = [0, 8], sizes = [2, 8], strides = [1, 1]} : vector<2x32xf32> to vector<2x8xf32>
    %53 = arith.truncf %52 : vector<2x8xf32> to vector<2x8xbf16>
    "tpu.trace_start"() <{level = 10 : i32, message = "bd,cd->bc"}> : () -> ()
    %cst_21 = arith.constant dense<0.000000e+00> : vector<2x2xf32>
    %54 = tpu.matmul %49, %51, %cst_21 {dimension_numbers = #tpu.dot_dimension_numbers<[1], [1], [0], [0], [0, 0, 1, 0], [], []>} : vector<2x8xbf16>, vector<2x8xbf16>, vector<2x2xf32> -> vector<2x2xf32>
    "tpu.trace_stop"() : () -> ()
    %cst_22 = arith.constant dense<0xFF800000> : vector<2xf32>
    %55 = vector.multi_reduction <maximumf>, %54, %cst_22 [1] : vector<2x2xf32> to vector<2xf32>
    %56 = vector.shape_cast %55 : vector<2xf32> to vector<2x1xf32>
    %57 = vector.broadcast %56 : vector<2x1xf32> to vector<2x2xf32>
    %58 = arith.subf %54, %57 : vector<2x2xf32>
    %59 = math.exp %58 : vector<2x2xf32>
    %cst_23 = arith.constant dense<0.000000e+00> : vector<2xf32>
    %60 = vector.multi_reduction <add>, %59, %cst_23 [1] : vector<2x2xf32> to vector<2xf32>
    %61 = vector.shape_cast %60 : vector<2xf32> to vector<2x1xf32>
    %62 = vector.broadcast %61 : vector<2x1xf32> to vector<2x2xf32>
    %63 = arith.divf %59, %62 : vector<2x2xf32>
    %64 = arith.truncf %63 : vector<2x2xf32> to vector<2x2xbf16>
    %cst_24 = arith.constant dense<0.000000e+00> : vector<2x8xf32>
    %65 = tpu.matmul %64, %53, %cst_24 {dimension_numbers = #tpu.dot_dimension_numbers<[1], [0], [0], [1], [0, 0, 1, 1], [], []>} : vector<2x2xbf16>, vector<2x8xbf16>, vector<2x8xf32> -> vector<2x8xf32>
    %66 = arith.truncf %65 : vector<2x8xf32> to vector<2x8xbf16>
    %67 = vector.extract_strided_slice %24 {offsets = [8, 0], sizes = [8, 32], strides = [1, 1]} : vector<32x32xbf16> to vector<8x32xbf16>
    %cst_25 = arith.constant dense<0.000000e+00> : vector<2x32xf32>
    %68 = tpu.matmul %66, %67, %cst_25 {dimension_numbers = #tpu.dot_dimension_numbers<[1], [0], [0], [1], [0, 0, 1, 1], [], []>} : vector<2x8xbf16>, vector<8x32xbf16>, vector<2x32xf32> -> vector<2x32xf32>
    %69 = arith.addf %47, %68 : vector<2x32xf32>
    %70 = vector.extract_strided_slice %20 {offsets = [0, 16], sizes = [2, 8], strides = [1, 1]} : vector<2x32xf32> to vector<2x8xf32>
    %71 = arith.truncf %70 : vector<2x8xf32> to vector<2x8xbf16>
    %72 = vector.extract_strided_slice %21 {offsets = [0, 16], sizes = [2, 8], strides = [1, 1]} : vector<2x32xf32> to vector<2x8xf32>
    %73 = arith.truncf %72 : vector<2x8xf32> to vector<2x8xbf16>
    %74 = vector.extract_strided_slice %22 {offsets = [0, 16], sizes = [2, 8], strides = [1, 1]} : vector<2x32xf32> to vector<2x8xf32>
    %75 = arith.truncf %74 : vector<2x8xf32> to vector<2x8xbf16>
    "tpu.trace_start"() <{level = 10 : i32, message = "bd,cd->bc"}> : () -> ()
    %cst_26 = arith.constant dense<0.000000e+00> : vector<2x2xf32>
    %76 = tpu.matmul %71, %73, %cst_26 {dimension_numbers = #tpu.dot_dimension_numbers<[1], [1], [0], [0], [0, 0, 1, 0], [], []>} : vector<2x8xbf16>, vector<2x8xbf16>, vector<2x2xf32> -> vector<2x2xf32>
    "tpu.trace_stop"() : () -> ()
    %cst_27 = arith.constant dense<0xFF800000> : vector<2xf32>
    %77 = vector.multi_reduction <maximumf>, %76, %cst_27 [1] : vector<2x2xf32> to vector<2xf32>
    %78 = vector.shape_cast %77 : vector<2xf32> to vector<2x1xf32>
    %79 = vector.broadcast %78 : vector<2x1xf32> to vector<2x2xf32>
    %80 = arith.subf %76, %79 : vector<2x2xf32>
    %81 = math.exp %80 : vector<2x2xf32>
    %cst_28 = arith.constant dense<0.000000e+00> : vector<2xf32>
    %82 = vector.multi_reduction <add>, %81, %cst_28 [1] : vector<2x2xf32> to vector<2xf32>
    %83 = vector.shape_cast %82 : vector<2xf32> to vector<2x1xf32>
    %84 = vector.broadcast %83 : vector<2x1xf32> to vector<2x2xf32>
    %85 = arith.divf %81, %84 : vector<2x2xf32>
    %86 = arith.truncf %85 : vector<2x2xf32> to vector<2x2xbf16>
    %cst_29 = arith.constant dense<0.000000e+00> : vector<2x8xf32>
    %87 = tpu.matmul %86, %75, %cst_29 {dimension_numbers = #tpu.dot_dimension_numbers<[1], [0], [0], [1], [0, 0, 1, 1], [], []>} : vector<2x2xbf16>, vector<2x8xbf16>, vector<2x8xf32> -> vector<2x8xf32>
    %88 = arith.truncf %87 : vector<2x8xf32> to vector<2x8xbf16>
    %89 = vector.extract_strided_slice %24 {offsets = [16, 0], sizes = [8, 32], strides = [1, 1]} : vector<32x32xbf16> to vector<8x32xbf16>
    %cst_30 = arith.constant dense<0.000000e+00> : vector<2x32xf32>
    %90 = tpu.matmul %88, %89, %cst_30 {dimension_numbers = #tpu.dot_dimension_numbers<[1], [0], [0], [1], [0, 0, 1, 1], [], []>} : vector<2x8xbf16>, vector<8x32xbf16>, vector<2x32xf32> -> vector<2x32xf32>
    %91 = arith.addf %69, %90 : vector<2x32xf32>
    %92 = vector.extract_strided_slice %20 {offsets = [0, 24], sizes = [2, 8], strides = [1, 1]} : vector<2x32xf32> to vector<2x8xf32>
    %93 = arith.truncf %92 : vector<2x8xf32> to vector<2x8xbf16>
    %94 = vector.extract_strided_slice %21 {offsets = [0, 24], sizes = [2, 8], strides = [1, 1]} : vector<2x32xf32> to vector<2x8xf32>
    %95 = arith.truncf %94 : vector<2x8xf32> to vector<2x8xbf16>
    %96 = vector.extract_strided_slice %22 {offsets = [0, 24], sizes = [2, 8], strides = [1, 1]} : vector<2x32xf32> to vector<2x8xf32>
    %97 = arith.truncf %96 : vector<2x8xf32> to vector<2x8xbf16>
    "tpu.trace_start"() <{level = 10 : i32, message = "bd,cd->bc"}> : () -> ()
    %cst_31 = arith.constant dense<0.000000e+00> : vector<2x2xf32>
    %98 = tpu.matmul %93, %95, %cst_31 {dimension_numbers = #tpu.dot_dimension_numbers<[1], [1], [0], [0], [0, 0, 1, 0], [], []>} : vector<2x8xbf16>, vector<2x8xbf16>, vector<2x2xf32> -> vector<2x2xf32>
    "tpu.trace_stop"() : () -> ()
    %cst_32 = arith.constant dense<0xFF800000> : vector<2xf32>
    %99 = vector.multi_reduction <maximumf>, %98, %cst_32 [1] : vector<2x2xf32> to vector<2xf32>
    %100 = vector.shape_cast %99 : vector<2xf32> to vector<2x1xf32>
    %101 = vector.broadcast %100 : vector<2x1xf32> to vector<2x2xf32>
    %102 = arith.subf %98, %101 : vector<2x2xf32>
    %103 = math.exp %102 : vector<2x2xf32>
    %cst_33 = arith.constant dense<0.000000e+00> : vector<2xf32>
    %104 = vector.multi_reduction <add>, %103, %cst_33 [1] : vector<2x2xf32> to vector<2xf32>
    %105 = vector.shape_cast %104 : vector<2xf32> to vector<2x1xf32>
    %106 = vector.broadcast %105 : vector<2x1xf32> to vector<2x2xf32>
    %107 = arith.divf %103, %106 : vector<2x2xf32>
    %108 = arith.truncf %107 : vector<2x2xf32> to vector<2x2xbf16>
    %cst_34 = arith.constant dense<0.000000e+00> : vector<2x8xf32>
    %109 = tpu.matmul %108, %97, %cst_34 {dimension_numbers = #tpu.dot_dimension_numbers<[1], [0], [0], [1], [0, 0, 1, 1], [], []>} : vector<2x2xbf16>, vector<2x8xbf16>, vector<2x8xf32> -> vector<2x8xf32>
    %110 = arith.truncf %109 : vector<2x8xf32> to vector<2x8xbf16>
    %111 = vector.extract_strided_slice %24 {offsets = [24, 0], sizes = [8, 32], strides = [1, 1]} : vector<32x32xbf16> to vector<8x32xbf16>
    %cst_35 = arith.constant dense<0.000000e+00> : vector<2x32xf32>
    %112 = tpu.matmul %110, %111, %cst_35 {dimension_numbers = #tpu.dot_dimension_numbers<[1], [0], [0], [1], [0, 0, 1, 1], [], []>} : vector<2x8xbf16>, vector<8x32xbf16>, vector<2x32xf32> -> vector<2x32xf32>
    %113 = arith.addf %91, %112 : vector<2x32xf32>
    %c0_36 = arith.constant 0 : index
    %c0_37 = arith.constant 0 : index
    %c0_38 = arith.constant 0 : index
    %114 = vector.load %arg6[%c0_36, %c0_37, %c0_38] : memref<2x1x32xf32, #tpu.memory_space<vmem>>, vector<1x1x32xf32>
    %115 = vector.shape_cast %114 : vector<1x1x32xf32> to vector<1x32xf32>
    %116 = vector.broadcast %115 : vector<1x32xf32> to vector<2x32xf32>
    %117 = arith.addf %113, %116 : vector<2x32xf32>
    %118 = arith.addf %9, %117 : vector<2x32xf32>
    %c0_39 = arith.constant 0 : index
    %c0_40 = arith.constant 0 : index
    %c0_41 = arith.constant 0 : index
    %119 = vector.load %arg7[%c0_39, %c0_40, %c0_41] : memref<2x1x32xf32, #tpu.memory_space<vmem>>, vector<1x1x32xf32>
    %120 = vector.shape_cast %119 : vector<1x1x32xf32> to vector<1x32xf32>
    %c0_42 = arith.constant 0 : index
    %c0_43 = arith.constant 0 : index
    %c0_44 = arith.constant 0 : index
    %121 = vector.load %arg8[%c0_42, %c0_43, %c0_44] : memref<2x1x32xf32, #tpu.memory_space<vmem>>, vector<1x1x32xf32>
    %122 = vector.shape_cast %121 : vector<1x1x32xf32> to vector<1x32xf32>
    %cst_45 = arith.constant dense<0.000000e+00> : vector<2xf32>
    %123 = vector.multi_reduction <add>, %118, %cst_45 [1] : vector<2x32xf32> to vector<2xf32>
    %124 = vector.shape_cast %123 : vector<2xf32> to vector<2x1xf32>
    %cst_46 = arith.constant 3.200000e+01 : f32
    %125 = vector.broadcast %cst_46 : f32 to vector<2x1xf32>
    %126 = arith.divf %124, %125 : vector<2x1xf32>
    %127 = vector.broadcast %126 : vector<2x1xf32> to vector<2x32xf32>
    %128 = arith.subf %118, %127 : vector<2x32xf32>
    %129 = arith.mulf %128, %128 : vector<2x32xf32>
    %cst_47 = arith.constant dense<0.000000e+00> : vector<2xf32>
    %130 = vector.multi_reduction <add>, %129, %cst_47 [1] : vector<2x32xf32> to vector<2xf32>
    %131 = vector.shape_cast %130 : vector<2xf32> to vector<2x1xf32>
    %cst_48 = arith.constant 3.200000e+01 : f32
    %132 = vector.broadcast %cst_48 : f32 to vector<2x1xf32>
    %133 = arith.divf %131, %132 : vector<2x1xf32>
    %134 = vector.broadcast %126 : vector<2x1xf32> to vector<2x32xf32>
    %135 = arith.subf %118, %134 : vector<2x32xf32>
    %cst_49 = arith.constant 9.99999974E-6 : f32
    %136 = vector.broadcast %cst_49 : f32 to vector<2x1xf32>
    %137 = arith.addf %133, %136 : vector<2x1xf32>
    %138 = math.rsqrt %137 : vector<2x1xf32>
    %139 = vector.broadcast %138 : vector<2x1xf32> to vector<2x32xf32>
    %140 = arith.mulf %135, %139 : vector<2x32xf32>
    %141 = vector.broadcast %120 : vector<1x32xf32> to vector<2x32xf32>
    %142 = arith.mulf %140, %141 : vector<2x32xf32>
    %143 = vector.broadcast %122 : vector<1x32xf32> to vector<2x32xf32>
    %144 = arith.addf %142, %143 : vector<2x32xf32>
    %145 = arith.truncf %144 : vector<2x32xf32> to vector<2x32xbf16>
    %c0_50 = arith.constant 0 : index
    %c0_51 = arith.constant 0 : index
    %c0_52 = arith.constant 0 : index
    %146 = vector.load %arg9[%c0_50, %c0_51, %c0_52] : memref<2x32x64xbf16, #tpu.memory_space<vmem>>, vector<1x32x64xbf16>
    %147 = vector.shape_cast %146 : vector<1x32x64xbf16> to vector<32x64xbf16>
    %cst_53 = arith.constant dense<0.000000e+00> : vector<2x64xf32>
    %148 = tpu.matmul %145, %147, %cst_53 {dimension_numbers = #tpu.dot_dimension_numbers<[1], [0], [0], [1], [0, 0, 1, 1], [], []>} : vector<2x32xbf16>, vector<32x64xbf16>, vector<2x64xf32> -> vector<2x64xf32>
    %c0_54 = arith.constant 0 : index
    %c0_55 = arith.constant 0 : index
    %c0_56 = arith.constant 0 : index
    %149 = vector.load %arg10[%c0_54, %c0_55, %c0_56] : memref<2x1x64xf32, #tpu.memory_space<vmem>>, vector<1x1x64xf32>
    %150 = vector.shape_cast %149 : vector<1x1x64xf32> to vector<1x64xf32>
    %151 = vector.broadcast %150 : vector<1x64xf32> to vector<2x64xf32>
    %152 = arith.addf %148, %151 : vector<2x64xf32>
    %cst_57 = arith.constant 0.000000e+00 : f32
    %153 = vector.broadcast %cst_57 : f32 to vector<2x64xf32>
    %154 = arith.maximumf %152, %153 : vector<2x64xf32>
    %155 = arith.truncf %154 : vector<2x64xf32> to vector<2x64xbf16>
    %c0_58 = arith.constant 0 : index
    %c0_59 = arith.constant 0 : index
    %c0_60 = arith.constant 0 : index
    %156 = vector.load %arg11[%c0_58, %c0_59, %c0_60] : memref<2x64x32xbf16, #tpu.memory_space<vmem>>, vector<1x64x32xbf16>
    %157 = vector.shape_cast %156 : vector<1x64x32xbf16> to vector<64x32xbf16>
    %cst_61 = arith.constant dense<0.000000e+00> : vector<2x32xf32>
    %158 = tpu.matmul %155, %157, %cst_61 {dimension_numbers = #tpu.dot_dimension_numbers<[1], [0], [0], [1], [0, 0, 1, 1], [], []>} : vector<2x64xbf16>, vector<64x32xbf16>, vector<2x32xf32> -> vector<2x32xf32>
    %c0_62 = arith.constant 0 : index
    %c0_63 = arith.constant 0 : index
    %c0_64 = arith.constant 0 : index
    %159 = vector.load %arg12[%c0_62, %c0_63, %c0_64] : memref<2x1x32xf32, #tpu.memory_space<vmem>>, vector<1x1x32xf32>
    %160 = vector.shape_cast %159 : vector<1x1x32xf32> to vector<1x32xf32>
    %161 = vector.broadcast %160 : vector<1x32xf32> to vector<2x32xf32>
    %162 = arith.addf %158, %161 : vector<2x32xf32>
    %163 = arith.addf %144, %162 : vector<2x32xf32>
    %c0_65 = arith.constant 0 : index
    %c0_66 = arith.constant 0 : index
    %c0_67 = arith.constant 0 : index
    %164 = vector.load %arg13[%c0_65, %c0_66, %c0_67] : memref<2x1x32xf32, #tpu.memory_space<vmem>>, vector<1x1x32xf32>
    %165 = vector.shape_cast %164 : vector<1x1x32xf32> to vector<1x32xf32>
    %c0_68 = arith.constant 0 : index
    %c0_69 = arith.constant 0 : index
    %c0_70 = arith.constant 0 : index
    %166 = vector.load %arg14[%c0_68, %c0_69, %c0_70] : memref<2x1x32xf32, #tpu.memory_space<vmem>>, vector<1x1x32xf32>
    %167 = vector.shape_cast %166 : vector<1x1x32xf32> to vector<1x32xf32>
    %cst_71 = arith.constant dense<0.000000e+00> : vector<2xf32>
    %168 = vector.multi_reduction <add>, %163, %cst_71 [1] : vector<2x32xf32> to vector<2xf32>
    %169 = vector.shape_cast %168 : vector<2xf32> to vector<2x1xf32>
    %cst_72 = arith.constant 3.200000e+01 : f32
    %170 = vector.broadcast %cst_72 : f32 to vector<2x1xf32>
    %171 = arith.divf %169, %170 : vector<2x1xf32>
    %172 = vector.broadcast %171 : vector<2x1xf32> to vector<2x32xf32>
    %173 = arith.subf %163, %172 : vector<2x32xf32>
    %174 = arith.mulf %173, %173 : vector<2x32xf32>
    %cst_73 = arith.constant dense<0.000000e+00> : vector<2xf32>
    %175 = vector.multi_reduction <add>, %174, %cst_73 [1] : vector<2x32xf32> to vector<2xf32>
    %176 = vector.shape_cast %175 : vector<2xf32> to vector<2x1xf32>
    %cst_74 = arith.constant 3.200000e+01 : f32
    %177 = vector.broadcast %cst_74 : f32 to vector<2x1xf32>
    %178 = arith.divf %176, %177 : vector<2x1xf32>
    %179 = vector.broadcast %171 : vector<2x1xf32> to vector<2x32xf32>
    %180 = arith.subf %163, %179 : vector<2x32xf32>
    %cst_75 = arith.constant 9.99999974E-6 : f32
    %181 = vector.broadcast %cst_75 : f32 to vector<2x1xf32>
    %182 = arith.addf %178, %181 : vector<2x1xf32>
    %183 = math.rsqrt %182 : vector<2x1xf32>
    %184 = vector.broadcast %183 : vector<2x1xf32> to vector<2x32xf32>
    %185 = arith.mulf %180, %184 : vector<2x32xf32>
    %186 = vector.broadcast %165 : vector<1x32xf32> to vector<2x32xf32>
    %187 = arith.mulf %185, %186 : vector<2x32xf32>
    %188 = vector.broadcast %167 : vector<1x32xf32> to vector<2x32xf32>
    %189 = arith.addf %187, %188 : vector<2x32xf32>
    %190 = arith.truncf %189 : vector<2x32xf32> to vector<2x32xbf16>
    %c1 = arith.constant 1 : index
    %c0_76 = arith.constant 0 : index
    %c0_77 = arith.constant 0 : index
    %191 = vector.load %arg3[%c1, %c0_76, %c0_77] : memref<2x32x96xbf16, #tpu.memory_space<vmem>>, vector<1x32x96xbf16>
    %192 = vector.shape_cast %191 : vector<1x32x96xbf16> to vector<32x96xbf16>
    %cst_78 = arith.constant dense<0.000000e+00> : vector<2x96xf32>
    %193 = tpu.matmul %190, %192, %cst_78 {dimension_numbers = #tpu.dot_dimension_numbers<[1], [0], [0], [1], [0, 0, 1, 1], [], []>} : vector<2x32xbf16>, vector<32x96xbf16>, vector<2x96xf32> -> vector<2x96xf32>
    %c1_79 = arith.constant 1 : index
    %c0_80 = arith.constant 0 : index
    %c0_81 = arith.constant 0 : index
    %194 = vector.load %arg4[%c1_79, %c0_80, %c0_81] : memref<2x1x96xf32, #tpu.memory_space<vmem>>, vector<1x1x96xf32>
    %195 = vector.shape_cast %194 : vector<1x1x96xf32> to vector<1x96xf32>
    %196 = vector.broadcast %195 : vector<1x96xf32> to vector<2x96xf32>
    %197 = arith.addf %193, %196 : vector<2x96xf32>
    %198 = vector.extract_strided_slice %197 {offsets = [0, 0], sizes = [2, 32], strides = [1, 1]} : vector<2x96xf32> to vector<2x32xf32>
    %cst_82 = arith.constant 0.353553385 : f32
    %199 = vector.broadcast %cst_82 : f32 to vector<2x32xf32>
    %200 = arith.mulf %198, %199 : vector<2x32xf32>
    %201 = vector.extract_strided_slice %197 {offsets = [0, 32], sizes = [2, 32], strides = [1, 1]} : vector<2x96xf32> to vector<2x32xf32>
    %202 = vector.extract_strided_slice %197 {offsets = [0, 64], sizes = [2, 32], strides = [1, 1]} : vector<2x96xf32> to vector<2x32xf32>
    %c1_83 = arith.constant 1 : index
    %c0_84 = arith.constant 0 : index
    %c0_85 = arith.constant 0 : index
    %203 = vector.load %arg5[%c1_83, %c0_84, %c0_85] : memref<2x32x32xbf16, #tpu.memory_space<vmem>>, vector<1x32x32xbf16>
    %204 = vector.shape_cast %203 : vector<1x32x32xbf16> to vector<32x32xbf16>
    %cst_86 = arith.constant 0.000000e+00 : f32
    %205 = vector.broadcast %cst_86 : f32 to vector<2x32xf32>
    %206 = vector.extract_strided_slice %200 {offsets = [0, 0], sizes = [2, 8], strides = [1, 1]} : vector<2x32xf32> to vector<2x8xf32>
    %207 = arith.truncf %206 : vector<2x8xf32> to vector<2x8xbf16>
    %208 = vector.extract_strided_slice %201 {offsets = [0, 0], sizes = [2, 8], strides = [1, 1]} : vector<2x32xf32> to vector<2x8xf32>
    %209 = arith.truncf %208 : vector<2x8xf32> to vector<2x8xbf16>
    %210 = vector.extract_strided_slice %202 {offsets = [0, 0], sizes = [2, 8], strides = [1, 1]} : vector<2x32xf32> to vector<2x8xf32>
    %211 = arith.truncf %210 : vector<2x8xf32> to vector<2x8xbf16>
    "tpu.trace_start"() <{level = 10 : i32, message = "bd,cd->bc"}> : () -> ()
    %cst_87 = arith.constant dense<0.000000e+00> : vector<2x2xf32>
    %212 = tpu.matmul %207, %209, %cst_87 {dimension_numbers = #tpu.dot_dimension_numbers<[1], [1], [0], [0], [0, 0, 1, 0], [], []>} : vector<2x8xbf16>, vector<2x8xbf16>, vector<2x2xf32> -> vector<2x2xf32>
    "tpu.trace_stop"() : () -> ()
    %cst_88 = arith.constant dense<0xFF800000> : vector<2xf32>
    %213 = vector.multi_reduction <maximumf>, %212, %cst_88 [1] : vector<2x2xf32> to vector<2xf32>
    %214 = vector.shape_cast %213 : vector<2xf32> to vector<2x1xf32>
    %215 = vector.broadcast %214 : vector<2x1xf32> to vector<2x2xf32>
    %216 = arith.subf %212, %215 : vector<2x2xf32>
    %217 = math.exp %216 : vector<2x2xf32>
    %cst_89 = arith.constant dense<0.000000e+00> : vector<2xf32>
    %218 = vector.multi_reduction <add>, %217, %cst_89 [1] : vector<2x2xf32> to vector<2xf32>
    %219 = vector.shape_cast %218 : vector<2xf32> to vector<2x1xf32>
    %220 = vector.broadcast %219 : vector<2x1xf32> to vector<2x2xf32>
    %221 = arith.divf %217, %220 : vector<2x2xf32>
    %222 = arith.truncf %221 : vector<2x2xf32> to vector<2x2xbf16>
    %cst_90 = arith.constant dense<0.000000e+00> : vector<2x8xf32>
    %223 = tpu.matmul %222, %211, %cst_90 {dimension_numbers = #tpu.dot_dimension_numbers<[1], [0], [0], [1], [0, 0, 1, 1], [], []>} : vector<2x2xbf16>, vector<2x8xbf16>, vector<2x8xf32> -> vector<2x8xf32>
    %224 = arith.truncf %223 : vector<2x8xf32> to vector<2x8xbf16>
    %225 = vector.extract_strided_slice %204 {offsets = [0, 0], sizes = [8, 32], strides = [1, 1]} : vector<32x32xbf16> to vector<8x32xbf16>
    %cst_91 = arith.constant dense<0.000000e+00> : vector<2x32xf32>
    %226 = tpu.matmul %224, %225, %cst_91 {dimension_numbers = #tpu.dot_dimension_numbers<[1], [0], [0], [1], [0, 0, 1, 1], [], []>} : vector<2x8xbf16>, vector<8x32xbf16>, vector<2x32xf32> -> vector<2x32xf32>
    %227 = arith.addf %205, %226 : vector<2x32xf32>
    %228 = vector.extract_strided_slice %200 {offsets = [0, 8], sizes = [2, 8], strides = [1, 1]} : vector<2x32xf32> to vector<2x8xf32>
    %229 = arith.truncf %228 : vector<2x8xf32> to vector<2x8xbf16>
    %230 = vector.extract_strided_slice %201 {offsets = [0, 8], sizes = [2, 8], strides = [1, 1]} : vector<2x32xf32> to vector<2x8xf32>
    %231 = arith.truncf %230 : vector<2x8xf32> to vector<2x8xbf16>
    %232 = vector.extract_strided_slice %202 {offsets = [0, 8], sizes = [2, 8], strides = [1, 1]} : vector<2x32xf32> to vector<2x8xf32>
    %233 = arith.truncf %232 : vector<2x8xf32> to vector<2x8xbf16>
    "tpu.trace_start"() <{level = 10 : i32, message = "bd,cd->bc"}> : () -> ()
    %cst_92 = arith.constant dense<0.000000e+00> : vector<2x2xf32>
    %234 = tpu.matmul %229, %231, %cst_92 {dimension_numbers = #tpu.dot_dimension_numbers<[1], [1], [0], [0], [0, 0, 1, 0], [], []>} : vector<2x8xbf16>, vector<2x8xbf16>, vector<2x2xf32> -> vector<2x2xf32>
    "tpu.trace_stop"() : () -> ()
    %cst_93 = arith.constant dense<0xFF800000> : vector<2xf32>
    %235 = vector.multi_reduction <maximumf>, %234, %cst_93 [1] : vector<2x2xf32> to vector<2xf32>
    %236 = vector.shape_cast %235 : vector<2xf32> to vector<2x1xf32>
    %237 = vector.broadcast %236 : vector<2x1xf32> to vector<2x2xf32>
    %238 = arith.subf %234, %237 : vector<2x2xf32>
    %239 = math.exp %238 : vector<2x2xf32>
    %cst_94 = arith.constant dense<0.000000e+00> : vector<2xf32>
    %240 = vector.multi_reduction <add>, %239, %cst_94 [1] : vector<2x2xf32> to vector<2xf32>
    %241 = vector.shape_cast %240 : vector<2xf32> to vector<2x1xf32>
    %242 = vector.broadcast %241 : vector<2x1xf32> to vector<2x2xf32>
    %243 = arith.divf %239, %242 : vector<2x2xf32>
    %244 = arith.truncf %243 : vector<2x2xf32> to vector<2x2xbf16>
    %cst_95 = arith.constant dense<0.000000e+00> : vector<2x8xf32>
    %245 = tpu.matmul %244, %233, %cst_95 {dimension_numbers = #tpu.dot_dimension_numbers<[1], [0], [0], [1], [0, 0, 1, 1], [], []>} : vector<2x2xbf16>, vector<2x8xbf16>, vector<2x8xf32> -> vector<2x8xf32>
    %246 = arith.truncf %245 : vector<2x8xf32> to vector<2x8xbf16>
    %247 = vector.extract_strided_slice %204 {offsets = [8, 0], sizes = [8, 32], strides = [1, 1]} : vector<32x32xbf16> to vector<8x32xbf16>
    %cst_96 = arith.constant dense<0.000000e+00> : vector<2x32xf32>
    %248 = tpu.matmul %246, %247, %cst_96 {dimension_numbers = #tpu.dot_dimension_numbers<[1], [0], [0], [1], [0, 0, 1, 1], [], []>} : vector<2x8xbf16>, vector<8x32xbf16>, vector<2x32xf32> -> vector<2x32xf32>
    %249 = arith.addf %227, %248 : vector<2x32xf32>
    %250 = vector.extract_strided_slice %200 {offsets = [0, 16], sizes = [2, 8], strides = [1, 1]} : vector<2x32xf32> to vector<2x8xf32>
    %251 = arith.truncf %250 : vector<2x8xf32> to vector<2x8xbf16>
    %252 = vector.extract_strided_slice %201 {offsets = [0, 16], sizes = [2, 8], strides = [1, 1]} : vector<2x32xf32> to vector<2x8xf32>
    %253 = arith.truncf %252 : vector<2x8xf32> to vector<2x8xbf16>
    %254 = vector.extract_strided_slice %202 {offsets = [0, 16], sizes = [2, 8], strides = [1, 1]} : vector<2x32xf32> to vector<2x8xf32>
    %255 = arith.truncf %254 : vector<2x8xf32> to vector<2x8xbf16>
    "tpu.trace_start"() <{level = 10 : i32, message = "bd,cd->bc"}> : () -> ()
    %cst_97 = arith.constant dense<0.000000e+00> : vector<2x2xf32>
    %256 = tpu.matmul %251, %253, %cst_97 {dimension_numbers = #tpu.dot_dimension_numbers<[1], [1], [0], [0], [0, 0, 1, 0], [], []>} : vector<2x8xbf16>, vector<2x8xbf16>, vector<2x2xf32> -> vector<2x2xf32>
    "tpu.trace_stop"() : () -> ()
    %cst_98 = arith.constant dense<0xFF800000> : vector<2xf32>
    %257 = vector.multi_reduction <maximumf>, %256, %cst_98 [1] : vector<2x2xf32> to vector<2xf32>
    %258 = vector.shape_cast %257 : vector<2xf32> to vector<2x1xf32>
    %259 = vector.broadcast %258 : vector<2x1xf32> to vector<2x2xf32>
    %260 = arith.subf %256, %259 : vector<2x2xf32>
    %261 = math.exp %260 : vector<2x2xf32>
    %cst_99 = arith.constant dense<0.000000e+00> : vector<2xf32>
    %262 = vector.multi_reduction <add>, %261, %cst_99 [1] : vector<2x2xf32> to vector<2xf32>
    %263 = vector.shape_cast %262 : vector<2xf32> to vector<2x1xf32>
    %264 = vector.broadcast %263 : vector<2x1xf32> to vector<2x2xf32>
    %265 = arith.divf %261, %264 : vector<2x2xf32>
    %266 = arith.truncf %265 : vector<2x2xf32> to vector<2x2xbf16>
    %cst_100 = arith.constant dense<0.000000e+00> : vector<2x8xf32>
    %267 = tpu.matmul %266, %255, %cst_100 {dimension_numbers = #tpu.dot_dimension_numbers<[1], [0], [0], [1], [0, 0, 1, 1], [], []>} : vector<2x2xbf16>, vector<2x8xbf16>, vector<2x8xf32> -> vector<2x8xf32>
    %268 = arith.truncf %267 : vector<2x8xf32> to vector<2x8xbf16>
    %269 = vector.extract_strided_slice %204 {offsets = [16, 0], sizes = [8, 32], strides = [1, 1]} : vector<32x32xbf16> to vector<8x32xbf16>
    %cst_101 = arith.constant dense<0.000000e+00> : vector<2x32xf32>
    %270 = tpu.matmul %268, %269, %cst_101 {dimension_numbers = #tpu.dot_dimension_numbers<[1], [0], [0], [1], [0, 0, 1, 1], [], []>} : vector<2x8xbf16>, vector<8x32xbf16>, vector<2x32xf32> -> vector<2x32xf32>
    %271 = arith.addf %249, %270 : vector<2x32xf32>
    %272 = vector.extract_strided_slice %200 {offsets = [0, 24], sizes = [2, 8], strides = [1, 1]} : vector<2x32xf32> to vector<2x8xf32>
    %273 = arith.truncf %272 : vector<2x8xf32> to vector<2x8xbf16>
    %274 = vector.extract_strided_slice %201 {offsets = [0, 24], sizes = [2, 8], strides = [1, 1]} : vector<2x32xf32> to vector<2x8xf32>
    %275 = arith.truncf %274 : vector<2x8xf32> to vector<2x8xbf16>
    %276 = vector.extract_strided_slice %202 {offsets = [0, 24], sizes = [2, 8], strides = [1, 1]} : vector<2x32xf32> to vector<2x8xf32>
    %277 = arith.truncf %276 : vector<2x8xf32> to vector<2x8xbf16>
    "tpu.trace_start"() <{level = 10 : i32, message = "bd,cd->bc"}> : () -> ()
    %cst_102 = arith.constant dense<0.000000e+00> : vector<2x2xf32>
    %278 = tpu.matmul %273, %275, %cst_102 {dimension_numbers = #tpu.dot_dimension_numbers<[1], [1], [0], [0], [0, 0, 1, 0], [], []>} : vector<2x8xbf16>, vector<2x8xbf16>, vector<2x2xf32> -> vector<2x2xf32>
    "tpu.trace_stop"() : () -> ()
    %cst_103 = arith.constant dense<0xFF800000> : vector<2xf32>
    %279 = vector.multi_reduction <maximumf>, %278, %cst_103 [1] : vector<2x2xf32> to vector<2xf32>
    %280 = vector.shape_cast %279 : vector<2xf32> to vector<2x1xf32>
    %281 = vector.broadcast %280 : vector<2x1xf32> to vector<2x2xf32>
    %282 = arith.subf %278, %281 : vector<2x2xf32>
    %283 = math.exp %282 : vector<2x2xf32>
    %cst_104 = arith.constant dense<0.000000e+00> : vector<2xf32>
    %284 = vector.multi_reduction <add>, %283, %cst_104 [1] : vector<2x2xf32> to vector<2xf32>
    %285 = vector.shape_cast %284 : vector<2xf32> to vector<2x1xf32>
    %286 = vector.broadcast %285 : vector<2x1xf32> to vector<2x2xf32>
    %287 = arith.divf %283, %286 : vector<2x2xf32>
    %288 = arith.truncf %287 : vector<2x2xf32> to vector<2x2xbf16>
    %cst_105 = arith.constant dense<0.000000e+00> : vector<2x8xf32>
    %289 = tpu.matmul %288, %277, %cst_105 {dimension_numbers = #tpu.dot_dimension_numbers<[1], [0], [0], [1], [0, 0, 1, 1], [], []>} : vector<2x2xbf16>, vector<2x8xbf16>, vector<2x8xf32> -> vector<2x8xf32>
    %290 = arith.truncf %289 : vector<2x8xf32> to vector<2x8xbf16>
    %291 = vector.extract_strided_slice %204 {offsets = [24, 0], sizes = [8, 32], strides = [1, 1]} : vector<32x32xbf16> to vector<8x32xbf16>
    %cst_106 = arith.constant dense<0.000000e+00> : vector<2x32xf32>
    %292 = tpu.matmul %290, %291, %cst_106 {dimension_numbers = #tpu.dot_dimension_numbers<[1], [0], [0], [1], [0, 0, 1, 1], [], []>} : vector<2x8xbf16>, vector<8x32xbf16>, vector<2x32xf32> -> vector<2x32xf32>
    %293 = arith.addf %271, %292 : vector<2x32xf32>
    %c1_107 = arith.constant 1 : index
    %c0_108 = arith.constant 0 : index
    %c0_109 = arith.constant 0 : index
    %294 = vector.load %arg6[%c1_107, %c0_108, %c0_109] : memref<2x1x32xf32, #tpu.memory_space<vmem>>, vector<1x1x32xf32>
    %295 = vector.shape_cast %294 : vector<1x1x32xf32> to vector<1x32xf32>
    %296 = vector.broadcast %295 : vector<1x32xf32> to vector<2x32xf32>
    %297 = arith.addf %293, %296 : vector<2x32xf32>
    %298 = arith.addf %189, %297 : vector<2x32xf32>
    %c1_110 = arith.constant 1 : index
    %c0_111 = arith.constant 0 : index
    %c0_112 = arith.constant 0 : index
    %299 = vector.load %arg7[%c1_110, %c0_111, %c0_112] : memref<2x1x32xf32, #tpu.memory_space<vmem>>, vector<1x1x32xf32>
    %300 = vector.shape_cast %299 : vector<1x1x32xf32> to vector<1x32xf32>
    %c1_113 = arith.constant 1 : index
    %c0_114 = arith.constant 0 : index
    %c0_115 = arith.constant 0 : index
    %301 = vector.load %arg8[%c1_113, %c0_114, %c0_115] : memref<2x1x32xf32, #tpu.memory_space<vmem>>, vector<1x1x32xf32>
    %302 = vector.shape_cast %301 : vector<1x1x32xf32> to vector<1x32xf32>
    %cst_116 = arith.constant dense<0.000000e+00> : vector<2xf32>
    %303 = vector.multi_reduction <add>, %298, %cst_116 [1] : vector<2x32xf32> to vector<2xf32>
    %304 = vector.shape_cast %303 : vector<2xf32> to vector<2x1xf32>
    %cst_117 = arith.constant 3.200000e+01 : f32
    %305 = vector.broadcast %cst_117 : f32 to vector<2x1xf32>
    %306 = arith.divf %304, %305 : vector<2x1xf32>
    %307 = vector.broadcast %306 : vector<2x1xf32> to vector<2x32xf32>
    %308 = arith.subf %298, %307 : vector<2x32xf32>
    %309 = arith.mulf %308, %308 : vector<2x32xf32>
    %cst_118 = arith.constant dense<0.000000e+00> : vector<2xf32>
    %310 = vector.multi_reduction <add>, %309, %cst_118 [1] : vector<2x32xf32> to vector<2xf32>
    %311 = vector.shape_cast %310 : vector<2xf32> to vector<2x1xf32>
    %cst_119 = arith.constant 3.200000e+01 : f32
    %312 = vector.broadcast %cst_119 : f32 to vector<2x1xf32>
    %313 = arith.divf %311, %312 : vector<2x1xf32>
    %314 = vector.broadcast %306 : vector<2x1xf32> to vector<2x32xf32>
    %315 = arith.subf %298, %314 : vector<2x32xf32>
    %cst_120 = arith.constant 9.99999974E-6 : f32
    %316 = vector.broadcast %cst_120 : f32 to vector<2x1xf32>
    %317 = arith.addf %313, %316 : vector<2x1xf32>
    %318 = math.rsqrt %317 : vector<2x1xf32>
    %319 = vector.broadcast %318 : vector<2x1xf32> to vector<2x32xf32>
    %320 = arith.mulf %315, %319 : vector<2x32xf32>
    %321 = vector.broadcast %300 : vector<1x32xf32> to vector<2x32xf32>
    %322 = arith.mulf %320, %321 : vector<2x32xf32>
    %323 = vector.broadcast %302 : vector<1x32xf32> to vector<2x32xf32>
    %324 = arith.addf %322, %323 : vector<2x32xf32>
    %325 = arith.truncf %324 : vector<2x32xf32> to vector<2x32xbf16>
    %c1_121 = arith.constant 1 : index
    %c0_122 = arith.constant 0 : index
    %c0_123 = arith.constant 0 : index
    %326 = vector.load %arg9[%c1_121, %c0_122, %c0_123] : memref<2x32x64xbf16, #tpu.memory_space<vmem>>, vector<1x32x64xbf16>
    %327 = vector.shape_cast %326 : vector<1x32x64xbf16> to vector<32x64xbf16>
    %cst_124 = arith.constant dense<0.000000e+00> : vector<2x64xf32>
    %328 = tpu.matmul %325, %327, %cst_124 {dimension_numbers = #tpu.dot_dimension_numbers<[1], [0], [0], [1], [0, 0, 1, 1], [], []>} : vector<2x32xbf16>, vector<32x64xbf16>, vector<2x64xf32> -> vector<2x64xf32>
    %c1_125 = arith.constant 1 : index
    %c0_126 = arith.constant 0 : index
    %c0_127 = arith.constant 0 : index
    %329 = vector.load %arg10[%c1_125, %c0_126, %c0_127] : memref<2x1x64xf32, #tpu.memory_space<vmem>>, vector<1x1x64xf32>
    %330 = vector.shape_cast %329 : vector<1x1x64xf32> to vector<1x64xf32>
    %331 = vector.broadcast %330 : vector<1x64xf32> to vector<2x64xf32>
    %332 = arith.addf %328, %331 : vector<2x64xf32>
    %cst_128 = arith.constant 0.000000e+00 : f32
    %333 = vector.broadcast %cst_128 : f32 to vector<2x64xf32>
    %334 = arith.maximumf %332, %333 : vector<2x64xf32>
    %335 = arith.truncf %334 : vector<2x64xf32> to vector<2x64xbf16>
    %c1_129 = arith.constant 1 : index
    %c0_130 = arith.constant 0 : index
    %c0_131 = arith.constant 0 : index
    %336 = vector.load %arg11[%c1_129, %c0_130, %c0_131] : memref<2x64x32xbf16, #tpu.memory_space<vmem>>, vector<1x64x32xbf16>
    %337 = vector.shape_cast %336 : vector<1x64x32xbf16> to vector<64x32xbf16>
    %cst_132 = arith.constant dense<0.000000e+00> : vector<2x32xf32>
    %338 = tpu.matmul %335, %337, %cst_132 {dimension_numbers = #tpu.dot_dimension_numbers<[1], [0], [0], [1], [0, 0, 1, 1], [], []>} : vector<2x64xbf16>, vector<64x32xbf16>, vector<2x32xf32> -> vector<2x32xf32>
    %c1_133 = arith.constant 1 : index
    %c0_134 = arith.constant 0 : index
    %c0_135 = arith.constant 0 : index
    %339 = vector.load %arg12[%c1_133, %c0_134, %c0_135] : memref<2x1x32xf32, #tpu.memory_space<vmem>>, vector<1x1x32xf32>
    %340 = vector.shape_cast %339 : vector<1x1x32xf32> to vector<1x32xf32>
    %341 = vector.broadcast %340 : vector<1x32xf32> to vector<2x32xf32>
    %342 = arith.addf %338, %341 : vector<2x32xf32>
    %343 = arith.addf %324, %342 : vector<2x32xf32>
    %c1_136 = arith.constant 1 : index
    %c0_137 = arith.constant 0 : index
    %c0_138 = arith.constant 0 : index
    %344 = vector.load %arg13[%c1_136, %c0_137, %c0_138] : memref<2x1x32xf32, #tpu.memory_space<vmem>>, vector<1x1x32xf32>
    %345 = vector.shape_cast %344 : vector<1x1x32xf32> to vector<1x32xf32>
    %c1_139 = arith.constant 1 : index
    %c0_140 = arith.constant 0 : index
    %c0_141 = arith.constant 0 : index
    %346 = vector.load %arg14[%c1_139, %c0_140, %c0_141] : memref<2x1x32xf32, #tpu.memory_space<vmem>>, vector<1x1x32xf32>
    %347 = vector.shape_cast %346 : vector<1x1x32xf32> to vector<1x32xf32>
    %cst_142 = arith.constant dense<0.000000e+00> : vector<2xf32>
    %348 = vector.multi_reduction <add>, %343, %cst_142 [1] : vector<2x32xf32> to vector<2xf32>
    %349 = vector.shape_cast %348 : vector<2xf32> to vector<2x1xf32>
    %cst_143 = arith.constant 3.200000e+01 : f32
    %350 = vector.broadcast %cst_143 : f32 to vector<2x1xf32>
    %351 = arith.divf %349, %350 : vector<2x1xf32>
    %352 = vector.broadcast %351 : vector<2x1xf32> to vector<2x32xf32>
    %353 = arith.subf %343, %352 : vector<2x32xf32>
    %354 = arith.mulf %353, %353 : vector<2x32xf32>
    %cst_144 = arith.constant dense<0.000000e+00> : vector<2xf32>
    %355 = vector.multi_reduction <add>, %354, %cst_144 [1] : vector<2x32xf32> to vector<2xf32>
    %356 = vector.shape_cast %355 : vector<2xf32> to vector<2x1xf32>
    %cst_145 = arith.constant 3.200000e+01 : f32
    %357 = vector.broadcast %cst_145 : f32 to vector<2x1xf32>
    %358 = arith.divf %356, %357 : vector<2x1xf32>
    %359 = vector.broadcast %351 : vector<2x1xf32> to vector<2x32xf32>
    %360 = arith.subf %343, %359 : vector<2x32xf32>
    %cst_146 = arith.constant 9.99999974E-6 : f32
    %361 = vector.broadcast %cst_146 : f32 to vector<2x1xf32>
    %362 = arith.addf %358, %361 : vector<2x1xf32>
    %363 = math.rsqrt %362 : vector<2x1xf32>
    %364 = vector.broadcast %363 : vector<2x1xf32> to vector<2x32xf32>
    %365 = arith.mulf %360, %364 : vector<2x32xf32>
    %366 = vector.broadcast %345 : vector<1x32xf32> to vector<2x32xf32>
    %367 = arith.mulf %365, %366 : vector<2x32xf32>
    %368 = vector.broadcast %347 : vector<1x32xf32> to vector<2x32xf32>
    %369 = arith.addf %367, %368 : vector<2x32xf32>
    %c0_147 = arith.constant 0 : index
    %c0_148 = arith.constant 0 : index
    %c0_149 = arith.constant 0 : index
    %370 = vector.load %arg18[%c0_147, %c0_148, %c0_149] : memref<1x2x32xf32, #tpu.memory_space<vmem>>, vector<1x2x32xf32>
    %371 = vector.shape_cast %370 : vector<1x2x32xf32> to vector<2x32xf32>
    %372 = vector.shape_cast %369 : vector<2x32xf32> to vector<1x2x32xf32>
    tpu.vector_store %arg18[%c0_147, %c0_148, %c0_149], %372 {strides = array<i32>} : memref<1x2x32xf32, #tpu.memory_space<vmem>>, vector<1x2x32xf32>,
    %373 = arith.truncf %369 : vector<2x32xf32> to vector<2x32xbf16>
    %c0_150 = arith.constant 0 : index
    %c0_151 = arith.constant 0 : index
    %374 = vector.load %arg15[%c0_150, %c0_151] : memref<32x128xbf16, #tpu.memory_space<vmem>>, vector<32x128xbf16>
    %cst_152 = arith.constant dense<0.000000e+00> : vector<2x128xf32>
    %375 = tpu.matmul %373, %374, %cst_152 {dimension_numbers = #tpu.dot_dimension_numbers<[1], [0], [0], [1], [0, 0, 1, 1], [], []>} : vector<2x32xbf16>, vector<32x128xbf16>, vector<2x128xf32> -> vector<2x128xf32>
    %c0_153 = arith.constant 0 : index
    %c0_154 = arith.constant 0 : index
    %376 = vector.load %arg16[%c0_153, %c0_154] : memref<1x128xf32, #tpu.memory_space<vmem>>, vector<1x128xf32>
    %377 = vector.broadcast %376 : vector<1x128xf32> to vector<2x128xf32>
    %378 = arith.addf %375, %377 : vector<2x128xf32>
    %c0_155 = arith.constant 0 : index
    %c0_156 = arith.constant 0 : index
    %c0_157 = arith.constant 0 : index
    %379 = vector.load %arg17[%c0_155, %c0_156, %c0_157] : memref<1x2x128xf32, #tpu.memory_space<vmem>>, vector<1x2x128xf32>
    %380 = vector.shape_cast %379 : vector<1x2x128xf32> to vector<2x128xf32>
    %381 = vector.shape_cast %378 : vector<2x128xf32> to vector<1x2x128xf32>
    tpu.vector_store %arg17[%c0_155, %c0_156, %c0_157], %381 {strides = array<i32>} : memref<1x2x128xf32, #tpu.memory_space<vmem>>, vector<1x2x128xf32>,
    return
  }
  func.func @transform_0(%arg0: i32) -> (i32, i32, i32) {
    %c0_i32 = arith.constant 0 : i32
    %c0_i32_0 = arith.constant 0 : i32
    %c0_i32_1 = arith.constant 0 : i32
    return %arg0, %c0_i32, %c0_i32_0 : i32, i32, i32
  }
  func.func @transform_1(%arg0: i32) -> (i32, i32) {
    %c0_i32 = arith.constant 0 : i32
    %c0_i32_0 = arith.constant 0 : i32
    %c0_i32_1 = arith.constant 0 : i32
    return %c0_i32, %c0_i32_0 : i32, i32
  }
  func.func @transform_2(%arg0: i32) -> (i32, i32, i32) {
    %c0_i32 = arith.constant 0 : i32
    %c0_i32_0 = arith.constant 0 : i32
    %c0_i32_1 = arith.constant 0 : i32
    %c0_i32_2 = arith.constant 0 : i32
    return %c0_i32, %c0_i32_0, %c0_i32_1 : i32, i32, i32
  }
  func.func @transform_3(%arg0: i32) -> (i32, i32, i32) {
    %c0_i32 = arith.constant 0 : i32
    %c0_i32_0 = arith.constant 0 : i32
    %c0_i32_1 = arith.constant 0 : i32
    %c0_i32_2 = arith.constant 0 : i32
    return %c0_i32, %c0_i32_0, %c0_i32_1 : i32, i32, i32
  }
  func.func @transform_4(%arg0: i32) -> (i32, i32, i32) {
    %c0_i32 = arith.constant 0 : i32
    %c0_i32_0 = arith.constant 0 : i32
    %c0_i32_1 = arith.constant 0 : i32
    %c0_i32_2 = arith.constant 0 : i32
    return %c0_i32, %c0_i32_0, %c0_i32_1 : i32, i32, i32
  }
  func.func @transform_5(%arg0: i32) -> (i32, i32, i32) {
    %c0_i32 = arith.constant 0 : i32
    %c0_i32_0 = arith.constant 0 : i32
    %c0_i32_1 = arith.constant 0 : i32
    %c0_i32_2 = arith.constant 0 : i32
    return %c0_i32, %c0_i32_0, %c0_i32_1 : i32, i32, i32
  }
  func.func @transform_6(%arg0: i32) -> (i32, i32, i32) {
    %c0_i32 = arith.constant 0 : i32
    %c0_i32_0 = arith.constant 0 : i32
    %c0_i32_1 = arith.constant 0 : i32
    %c0_i32_2 = arith.constant 0 : i32
    return %c0_i32, %c0_i32_0, %c0_i32_1 : i32, i32, i32
  }
  func.func @transform_7(%arg0: i32) -> (i32, i32, i32) {
    %c0_i32 = arith.constant 0 : i32
    %c0_i32_0 = arith.constant 0 : i32
    %c0_i32_1 = arith.constant 0 : i32
    %c0_i32_2 = arith.constant 0 : i32
    return %c0_i32, %c0_i32_0, %c0_i32_1 : i32, i32, i32
  }
  func.func @transform_8(%arg0: i32) -> (i32, i32, i32) {
    %c0_i32 = arith.constant 0 : i32
    %c0_i32_0 = arith.constant 0 : i32
    %c0_i32_1 = arith.constant 0 : i32
    %c0_i32_2 = arith.constant 0 : i32
    return %c0_i32, %c0_i32_0, %c0_i32_1 : i32, i32, i32
  }
  func.func @transform_9(%arg0: i32) -> (i32, i32, i32) {
    %c0_i32 = arith.constant 0 : i32
    %c0_i32_0 = arith.constant 0 : i32
    %c0_i32_1 = arith.constant 0 : i32
    %c0_i32_2 = arith.constant 0 : i32
    return %c0_i32, %c0_i32_0, %c0_i32_1 : i32, i32, i32
  }
  func.func @transform_10(%arg0: i32) -> (i32, i32, i32) {
    %c0_i32 = arith.constant 0 : i32
    %c0_i32_0 = arith.constant 0 : i32
    %c0_i32_1 = arith.constant 0 : i32
    %c0_i32_2 = arith.constant 0 : i32
    return %c0_i32, %c0_i32_0, %c0_i32_1 : i32, i32, i32
  }
  func.func @transform_11(%arg0: i32) -> (i32, i32, i32) {
    %c0_i32 = arith.constant 0 : i32
    %c0_i32_0 = arith.constant 0 : i32
    %c0_i32_1 = arith.constant 0 : i32
    %c0_i32_2 = arith.constant 0 : i32
    return %c0_i32, %c0_i32_0, %c0_i32_1 : i32, i32, i32
  }
  func.func @transform_12(%arg0: i32) -> (i32, i32, i32) {
    %c0_i32 = arith.constant 0 : i32
    %c0_i32_0 = arith.constant 0 : i32
    %c0_i32_1 = arith.constant 0 : i32
    %c0_i32_2 = arith.constant 0 : i32
    return %c0_i32, %c0_i32_0, %c0_i32_1 : i32, i32, i32
  }
  func.func @transform_13(%arg0: i32) -> (i32, i32, i32) {
    %c0_i32 = arith.constant 0 : i32
    %c0_i32_0 = arith.constant 0 : i32
    %c0_i32_1 = arith.constant 0 : i32
    %c0_i32_2 = arith.constant 0 : i32
    return %c0_i32, %c0_i32_0, %c0_i32_1 : i32, i32, i32
  }
  func.func @transform_14(%arg0: i32) -> (i32, i32) {
    %c0_i32 = arith.constant 0 : i32
    %c0_i32_0 = arith.constant 0 : i32
    %c0_i32_1 = arith.constant 0 : i32
    return %c0_i32, %c0_i32_0 : i32, i32
  }
  func.func @transform_15(%arg0: i32) -> (i32, i32) {
    %c0_i32 = arith.constant 0 : i32
    %c0_i32_0 = arith.constant 0 : i32
    %c0_i32_1 = arith.constant 0 : i32
    return %c0_i32, %c0_i32_0 : i32, i32
  }
  func.func @transform_16(%arg0: i32) -> (i32, i32, i32) {
    %c0_i32 = arith.constant 0 : i32
    %c0_i32_0 = arith.constant 0 : i32
    %c0_i32_1 = arith.constant 0 : i32
    return %arg0, %c0_i32, %c0_i32_0 : i32, i32, i32
  }
  func.func @transform_17(%arg0: i32) -> (i32, i32, i32) {
    %c0_i32 = arith.constant 0 : i32
    %c0_i32_0 = arith.constant 0 : i32
    %c0_i32_1 = arith.constant 0 : i32
    return %arg0, %c0_i32, %c0_i32_0 : i32, i32, i32
  }
}

</mosaic_0001>

<llo_original>
// kernel: transformer_forward.1
$region0: #{transformer_forward.1}
  #allocation0 [shape = 'u32[]', space=smem, size = 0x4, offset = 0x4, fixed_abs, tag = 'smem constant byte address 0x4 - core index']
  #allocation1 [shape = 'u32[144,128]{1,0:T(1,128)}', space=vmem, size = 0x12000, scoped, tag = 'internal scratch']
  %s0 = inlined_call_operand.vmem [shape: s32[8,2,1], index: 0, kind: input, shape index: {}]
  %s1 = inlined_call_operand.vmem [shape: bf16[128,32], index: 1, kind: input, shape index: {}]
  %s2 = inlined_call_operand.vmem [shape: bf16[2,32,96], index: 2, kind: input, shape index: {}]
  %s3 = inlined_call_operand.vmem [shape: f32[2,1,96], index: 3, kind: input, shape index: {}]
  %s4 = inlined_call_operand.vmem [shape: bf16[2,32,32], index: 4, kind: input, shape index: {}]
  %s5 = inlined_call_operand.vmem [shape: f32[2,1,32], index: 5, kind: input, shape index: {}]
  %s6 = inlined_call_operand.vmem [shape: f32[2,1,32], index: 6, kind: input, shape index: {}]
  %s7 = inlined_call_operand.vmem [shape: f32[2,1,32], index: 7, kind: input, shape index: {}]
  %s8 = inlined_call_operand.vmem [shape: bf16[2,32,64], index: 8, kind: input, shape index: {}]
  %s9 = inlined_call_operand.vmem [shape: f32[2,1,64], index: 9, kind: input, shape index: {}]
  %s10 = inlined_call_operand.vmem [shape: bf16[2,64,32], index: 10, kind: input, shape index: {}]
  %s11 = inlined_call_operand.vmem [shape: f32[2,1,32], index: 11, kind: input, shape index: {}]
  %s12 = inlined_call_operand.vmem [shape: f32[2,1,32], index: 12, kind: input, shape index: {}]
  %s13 = inlined_call_operand.vmem [shape: f32[2,1,32], index: 13, kind: input, shape index: {}]
  %s14 = inlined_call_operand.vmem [shape: bf16[32,128], index: 14, kind: input, shape index: {}]
  %s15 = inlined_call_operand.vmem [shape: f32[1,128], index: 15, kind: input, shape index: {}]
  %s16 = inlined_call_operand.vmem [shape: f32[8,2,128], index: 16, kind: output, shape index: {0}]
  %s17 = inlined_call_operand.vmem [shape: f32[8,2,32], index: 17, kind: output, shape index: {1}]
  %18 = xla_tuple %s16, %s17
  %s19 = sld [smem:[#allocation0]]
  $region105: #{transformer_forward.1} parent=0
    _
  %s21 = ssub.s32 1, %s19
  %s22 = scalar_select 0, %s21, %s19
  loop: start=0, step=1, limit=10
  $region2: #{transformer_forward.1} parent=0 // loop_pre_header
    _
  $region3: #{transformer_forward.1} parent=0 // loop_header
    %s24 = sphi 0, %s28
    %p25 = scmp.ge.s32.totalorder %s24, 10
    %s34 = sphi 0, %s36
    %s37 = sphi 0, %s34
    %s38 = sphi 0, %s37
    %s54 = sphi 0, %s38
    %s58 = sphi 0, %s58
    %s60 = sphi 0, %s58
    %s61 = sphi 0, %s60
    %s75 = sphi 0, %s61
    %s79 = sphi 0, %s79
    %s81 = sphi 0, %s79
    %s82 = sphi 0, %s81
    %s96 = sphi 0, %s82
    %s100 = sphi 0, %s100
    %s102 = sphi 0, %s100
    %s103 = sphi 0, %s102
    %s117 = sphi 0, %s103
    %s121 = sphi 0, %s121
    %s123 = sphi 0, %s121
    %s124 = sphi 0, %s123
    %s138 = sphi 0, %s124
    %s142 = sphi 0, %s142
    %s144 = sphi 0, %s142
    %s145 = sphi 0, %s144
    %s159 = sphi 0, %s145
    %s163 = sphi 0, %s163
    %s165 = sphi 0, %s163
    %s166 = sphi 0, %s165
    %s180 = sphi 0, %s166
    %s184 = sphi 0, %s184
    %s186 = sphi 0, %s184
    %s187 = sphi 0, %s186
    %s201 = sphi 0, %s187
    %s205 = sphi 0, %s205
    %s207 = sphi 0, %s205
    %s208 = sphi 0, %s207
    %s222 = sphi 0, %s208
    %s226 = sphi 0, %s226
    %s228 = sphi 0, %s226
    %s229 = sphi 0, %s228
    %s243 = sphi 0, %s229
    %s247 = sphi 0, %s247
    %s249 = sphi 0, %s247
    %s250 = sphi 0, %s249
    %s264 = sphi 0, %s250
    %s268 = sphi 0, %s268
    %s270 = sphi 0, %s268
    %s271 = sphi 0, %s270
    %s285 = sphi 0, %s271
    %s289 = sphi 0, %s289
    %s291 = sphi 0, %s289
    %s292 = sphi 0, %s291
    %s306 = sphi 0, %s292
    %s310 = sphi 0, %s310
    %s312 = sphi 0, %s310
    %s313 = sphi 0, %s312
    %s327 = sphi 0, %s313
    %s331 = sphi 0, %s331
    %s333 = sphi 0, %s331
    %s334 = sphi 0, %s333
    %s348 = sphi 0, %s334
    %s352 = sphi 0, %s352
    %s354 = sphi 0, %s352
    %s355 = sphi 0, %s354
    %s369 = sphi 0, %s355
    %s375 = sphi 0, %s377
    %s378 = sphi 0, %s375
    %s379 = sphi 0, %s378
    %s395 = sphi 0, %s379
    %s401 = sphi 0, %s403
    %s404 = sphi 0, %s401
    %s405 = sphi 0, %s404
    %s421 = sphi 0, %s405
  $region4: #{transformer_forward.1} parent=0 // loop_header_branch
    %27 = sbr.rel (%p25) target = $region8
  $region5: #{transformer_forward.1} parent=0 // loop_body
    %s29 = ssub.s32 %s24, 1
    %s30 = ssub.s32 %s24, 2
    %s31 = sadd.s32 %s24, 1
    %s32 = ssub.s32 %s24, %s31
    %p33 = scmp.eq.s32.totalorder %s32, 0
    %s35 = sadd.s32 %s34, 1
    %s36 = scalar_select %p33, %s34, %s35
    %p39 = pneg %p33
    %p40 = scmp.eq.s32.totalorder %s24, 7
    %p41 = por %p39, %p40
    %p42 = scmp.ne.s32.totalorder %s34, %s37
    %p43 = scmp.eq.s32.totalorder %s24, 0
    %p44 = por %p42, %p43
    %p45 = scmp.ne.s32.totalorder %s34, %s37
    %p46 = scmp.eq.s32.totalorder %s29, 7
    %p47 = por %p45, %p46
    %p48 = scmp.ne.s32.totalorder %s37, %s38
    %p49 = scmp.eq.s32.totalorder %s29, 0
    %p50 = por %p48, %p49
    %p51 = scmp.ne.s32.totalorder %s37, %s38
    %p52 = scmp.eq.s32.totalorder %s30, 7
    %p53 = por %p51, %p52
    %p55 = scmp.ne.s32.totalorder %s38, %s54
    %p56 = scmp.eq.s32.totalorder %s30, 0
    %p57 = por %p55, %p56
    %s59 = sadd.s32 %s58, 1
    %p62 = scmp.eq.s32.totalorder %s24, 7
    %p63 = scmp.ne.s32.totalorder %s58, %s60
    %p64 = scmp.eq.s32.totalorder %s24, 0
    %p65 = por %p63, %p64
    %p66 = scmp.ne.s32.totalorder %s58, %s60
    %p67 = scmp.eq.s32.totalorder %s29, 7
    %p68 = por %p66, %p67
    %p69 = scmp.ne.s32.totalorder %s60, %s61
    %p70 = scmp.eq.s32.totalorder %s29, 0
    %p71 = por %p69, %p70
    %p72 = scmp.ne.s32.totalorder %s60, %s61
    %p73 = scmp.eq.s32.totalorder %s30, 7
    %p74 = por %p72, %p73
    %p76 = scmp.ne.s32.totalorder %s61, %s75
    %p77 = scmp.eq.s32.totalorder %s30, 0
    %p78 = por %p76, %p77
    %s80 = sadd.s32 %s79, 1
    %p83 = scmp.eq.s32.totalorder %s24, 7
    %p84 = scmp.ne.s32.totalorder %s79, %s81
    %p85 = scmp.eq.s32.totalorder %s24, 0
    %p86 = por %p84, %p85
    %p87 = scmp.ne.s32.totalorder %s79, %s81
    %p88 = scmp.eq.s32.totalorder %s29, 7
    %p89 = por %p87, %p88
    %p90 = scmp.ne.s32.totalorder %s81, %s82
    %p91 = scmp.eq.s32.totalorder %s29, 0
    %p92 = por %p90, %p91
    %p93 = scmp.ne.s32.totalorder %s81, %s82
    %p94 = scmp.eq.s32.totalorder %s30, 7
    %p95 = por %p93, %p94
    %p97 = scmp.ne.s32.totalorder %s82, %s96
    %p98 = scmp.eq.s32.totalorder %s30, 0
    %p99 = por %p97, %p98
    %s101 = sadd.s32 %s100, 1
    %p104 = scmp.eq.s32.totalorder %s24, 7
    %p105 = scmp.ne.s32.totalorder %s100, %s102
    %p106 = scmp.eq.s32.totalorder %s24, 0
    %p107 = por %p105, %p106
    %p108 = scmp.ne.s32.totalorder %s100, %s102
    %p109 = scmp.eq.s32.totalorder %s29, 7
    %p110 = por %p108, %p109
    %p111 = scmp.ne.s32.totalorder %s102, %s103
    %p112 = scmp.eq.s32.totalorder %s29, 0
    %p113 = por %p111, %p112
    %p114 = scmp.ne.s32.totalorder %s102, %s103
    %p115 = scmp.eq.s32.totalorder %s30, 7
    %p116 = por %p114, %p115
    %p118 = scmp.ne.s32.totalorder %s103, %s117
    %p119 = scmp.eq.s32.totalorder %s30, 0
    %p120 = por %p118, %p119
    %s122 = sadd.s32 %s121, 1
    %p125 = scmp.eq.s32.totalorder %s24, 7
    %p126 = scmp.ne.s32.totalorder %s121, %s123
    %p127 = scmp.eq.s32.totalorder %s24, 0
    %p128 = por %p126, %p127
    %p129 = scmp.ne.s32.totalorder %s121, %s123
    %p130 = scmp.eq.s32.totalorder %s29, 7
    %p131 = por %p129, %p130
    %p132 = scmp.ne.s32.totalorder %s123, %s124
    %p133 = scmp.eq.s32.totalorder %s29, 0
    %p134 = por %p132, %p133
    %p135 = scmp.ne.s32.totalorder %s123, %s124
    %p136 = scmp.eq.s32.totalorder %s30, 7
    %p137 = por %p135, %p136
    %p139 = scmp.ne.s32.totalorder %s124, %s138
    %p140 = scmp.eq.s32.totalorder %s30, 0
    %p141 = por %p139, %p140
    %s143 = sadd.s32 %s142, 1
    %p146 = scmp.eq.s32.totalorder %s24, 7
    %p147 = scmp.ne.s32.totalorder %s142, %s144
    %p148 = scmp.eq.s32.totalorder %s24, 0
    %p149 = por %p147, %p148
    %p150 = scmp.ne.s32.totalorder %s142, %s144
    %p151 = scmp.eq.s32.totalorder %s29, 7
    %p152 = por %p150, %p151
    %p153 = scmp.ne.s32.totalorder %s144, %s145
    %p154 = scmp.eq.s32.totalorder %s29, 0
    %p155 = por %p153, %p154
    %p156 = scmp.ne.s32.totalorder %s144, %s145
    %p157 = scmp.eq.s32.totalorder %s30, 7
    %p158 = por %p156, %p157
    %p160 = scmp.ne.s32.totalorder %s145, %s159
    %p161 = scmp.eq.s32.totalorder %s30, 0
    %p162 = por %p160, %p161
    %s164 = sadd.s32 %s163, 1
    %p167 = scmp.eq.s32.totalorder %s24, 7
    %p168 = scmp.ne.s32.totalorder %s163, %s165
    %p169 = scmp.eq.s32.totalorder %s24, 0
    %p170 = por %p168, %p169
    %p171 = scmp.ne.s32.totalorder %s163, %s165
    %p172 = scmp.eq.s32.totalorder %s29, 7
    %p173 = por %p171, %p172
    %p174 = scmp.ne.s32.totalorder %s165, %s166
    %p175 = scmp.eq.s32.totalorder %s29, 0
    %p176 = por %p174, %p175
    %p177 = scmp.ne.s32.totalorder %s165, %s166
    %p178 = scmp.eq.s32.totalorder %s30, 7
    %p179 = por %p177, %p178
    %p181 = scmp.ne.s32.totalorder %s166, %s180
    %p182 = scmp.eq.s32.totalorder %s30, 0
    %p183 = por %p181, %p182
    %s185 = sadd.s32 %s184, 1
    %p188 = scmp.eq.s32.totalorder %s24, 7
    %p189 = scmp.ne.s32.totalorder %s184, %s186
    %p190 = scmp.eq.s32.totalorder %s24, 0
    %p191 = por %p189, %p190
    %p192 = scmp.ne.s32.totalorder %s184, %s186
    %p193 = scmp.eq.s32.totalorder %s29, 7
    %p194 = por %p192, %p193
    %p195 = scmp.ne.s32.totalorder %s186, %s187
    %p196 = scmp.eq.s32.totalorder %s29, 0
    %p197 = por %p195, %p196
    %p198 = scmp.ne.s32.totalorder %s186, %s187
    %p199 = scmp.eq.s32.totalorder %s30, 7
    %p200 = por %p198, %p199
    %p202 = scmp.ne.s32.totalorder %s187, %s201
    %p203 = scmp.eq.s32.totalorder %s30, 0
    %p204 = por %p202, %p203
    %s206 = sadd.s32 %s205, 1
    %p209 = scmp.eq.s32.totalorder %s24, 7
    %p210 = scmp.ne.s32.totalorder %s205, %s207
    %p211 = scmp.eq.s32.totalorder %s24, 0
    %p212 = por %p210, %p211
    %p213 = scmp.ne.s32.totalorder %s205, %s207
    %p214 = scmp.eq.s32.totalorder %s29, 7
    %p215 = por %p213, %p214
    %p216 = scmp.ne.s32.totalorder %s207, %s208
    %p217 = scmp.eq.s32.totalorder %s29, 0
    %p218 = por %p216, %p217
    %p219 = scmp.ne.s32.totalorder %s207, %s208
    %p220 = scmp.eq.s32.totalorder %s30, 7
    %p221 = por %p219, %p220
    %p223 = scmp.ne.s32.totalorder %s208, %s222
    %p224 = scmp.eq.s32.totalorder %s30, 0
    %p225 = por %p223, %p224
    %s227 = sadd.s32 %s226, 1
    %p230 = scmp.eq.s32.totalorder %s24, 7
    %p231 = scmp.ne.s32.totalorder %s226, %s228
    %p232 = scmp.eq.s32.totalorder %s24, 0
    %p233 = por %p231, %p232
    %p234 = scmp.ne.s32.totalorder %s226, %s228
    %p235 = scmp.eq.s32.totalorder %s29, 7
    %p236 = por %p234, %p235
    %p237 = scmp.ne.s32.totalorder %s228, %s229
    %p238 = scmp.eq.s32.totalorder %s29, 0
    %p239 = por %p237, %p238
    %p240 = scmp.ne.s32.totalorder %s228, %s229
    %p241 = scmp.eq.s32.totalorder %s30, 7
    %p242 = por %p240, %p241
    %p244 = scmp.ne.s32.totalorder %s229, %s243
    %p245 = scmp.eq.s32.totalorder %s30, 0
    %p246 = por %p244, %p245
    %s248 = sadd.s32 %s247, 1
    %p251 = scmp.eq.s32.totalorder %s24, 7
    %p252 = scmp.ne.s32.totalorder %s247, %s249
    %p253 = scmp.eq.s32.totalorder %s24, 0
    %p254 = por %p252, %p253
    %p255 = scmp.ne.s32.totalorder %s247, %s249
    %p256 = scmp.eq.s32.totalorder %s29, 7
    %p257 = por %p255, %p256
    %p258 = scmp.ne.s32.totalorder %s249, %s250
    %p259 = scmp.eq.s32.totalorder %s29, 0
    %p260 = por %p258, %p259
    %p261 = scmp.ne.s32.totalorder %s249, %s250
    %p262 = scmp.eq.s32.totalorder %s30, 7
    %p263 = por %p261, %p262
    %p265 = scmp.ne.s32.totalorder %s250, %s264
    %p266 = scmp.eq.s32.totalorder %s30, 0
    %p267 = por %p265, %p266
    %s269 = sadd.s32 %s268, 1
    %p272 = scmp.eq.s32.totalorder %s24, 7
    %p273 = scmp.ne.s32.totalorder %s268, %s270
    %p274 = scmp.eq.s32.totalorder %s24, 0
    %p275 = por %p273, %p274
    %p276 = scmp.ne.s32.totalorder %s268, %s270
    %p277 = scmp.eq.s32.totalorder %s29, 7
    %p278 = por %p276, %p277
    %p279 = scmp.ne.s32.totalorder %s270, %s271
    %p280 = scmp.eq.s32.totalorder %s29, 0
    %p281 = por %p279, %p280
    %p282 = scmp.ne.s32.totalorder %s270, %s271
    %p283 = scmp.eq.s32.totalorder %s30, 7
    %p284 = por %p282, %p283
    %p286 = scmp.ne.s32.totalorder %s271, %s285
    %p287 = scmp.eq.s32.totalorder %s30, 0
    %p288 = por %p286, %p287
    %s290 = sadd.s32 %s289, 1
    %p293 = scmp.eq.s32.totalorder %s24, 7
    %p294 = scmp.ne.s32.totalorder %s289, %s291
    %p295 = scmp.eq.s32.totalorder %s24, 0
    %p296 = por %p294, %p295
    %p297 = scmp.ne.s32.totalorder %s289, %s291
    %p298 = scmp.eq.s32.totalorder %s29, 7
    %p299 = por %p297, %p298
    %p300 = scmp.ne.s32.totalorder %s291, %s292
    %p301 = scmp.eq.s32.totalorder %s29, 0
    %p302 = por %p300, %p301
    %p303 = scmp.ne.s32.totalorder %s291, %s292
    %p304 = scmp.eq.s32.totalorder %s30, 7
    %p305 = por %p303, %p304
    %p307 = scmp.ne.s32.totalorder %s292, %s306
    %p308 = scmp.eq.s32.totalorder %s30, 0
    %p309 = por %p307, %p308
    %s311 = sadd.s32 %s310, 1
    %p314 = scmp.eq.s32.totalorder %s24, 7
    %p315 = scmp.ne.s32.totalorder %s310, %s312
    %p316 = scmp.eq.s32.totalorder %s24, 0
    %p317 = por %p315, %p316
    %p318 = scmp.ne.s32.totalorder %s310, %s312
    %p319 = scmp.eq.s32.totalorder %s29, 7
    %p320 = por %p318, %p319
    %p321 = scmp.ne.s32.totalorder %s312, %s313
    %p322 = scmp.eq.s32.totalorder %s29, 0
    %p323 = por %p321, %p322
    %p324 = scmp.ne.s32.totalorder %s312, %s313
    %p325 = scmp.eq.s32.totalorder %s30, 7
    %p326 = por %p324, %p325
    %p328 = scmp.ne.s32.totalorder %s313, %s327
    %p329 = scmp.eq.s32.totalorder %s30, 0
    %p330 = por %p328, %p329
    %s332 = sadd.s32 %s331, 1
    %p335 = scmp.eq.s32.totalorder %s24, 7
    %p336 = scmp.ne.s32.totalorder %s331, %s333
    %p337 = scmp.eq.s32.totalorder %s24, 0
    %p338 = por %p336, %p337
    %p339 = scmp.ne.s32.totalorder %s331, %s333
    %p340 = scmp.eq.s32.totalorder %s29, 7
    %p341 = por %p339, %p340
    %p342 = scmp.ne.s32.totalorder %s333, %s334
    %p343 = scmp.eq.s32.totalorder %s29, 0
    %p344 = por %p342, %p343
    %p345 = scmp.ne.s32.totalorder %s333, %s334
    %p346 = scmp.eq.s32.totalorder %s30, 7
    %p347 = por %p345, %p346
    %p349 = scmp.ne.s32.totalorder %s334, %s348
    %p350 = scmp.eq.s32.totalorder %s30, 0
    %p351 = por %p349, %p350
    %s353 = sadd.s32 %s352, 1
    %p356 = scmp.eq.s32.totalorder %s24, 7
    %p357 = scmp.ne.s32.totalorder %s352, %s354
    %p358 = scmp.eq.s32.totalorder %s24, 0
    %p359 = por %p357, %p358
    %p360 = scmp.ne.s32.totalorder %s352, %s354
    %p361 = scmp.eq.s32.totalorder %s29, 7
    %p362 = por %p360, %p361
    %p363 = scmp.ne.s32.totalorder %s354, %s355
    %p364 = scmp.eq.s32.totalorder %s29, 0
    %p365 = por %p363, %p364
    %p366 = scmp.ne.s32.totalorder %s354, %s355
    %p367 = scmp.eq.s32.totalorder %s30, 7
    %p368 = por %p366, %p367
    %p370 = scmp.ne.s32.totalorder %s355, %s369
    %p371 = scmp.eq.s32.totalorder %s30, 0
    %p372 = por %p370, %p371
    %s373 = ssub.s32 %s24, %s31
    %p374 = scmp.eq.s32.totalorder %s373, 0
    %s376 = sadd.s32 %s375, 1
    %s377 = scalar_select %p374, %s375, %s376
    %p380 = pneg %p374
    %p381 = scmp.eq.s32.totalorder %s24, 7
    %p382 = por %p380, %p381
    %p383 = scmp.ne.s32.totalorder %s375, %s378
    %p384 = scmp.eq.s32.totalorder %s24, 0
    %p385 = por %p383, %p384
    %p386 = scmp.ne.s32.totalorder %s375, %s378
    %p387 = scmp.eq.s32.totalorder %s29, 7
    %p388 = por %p386, %p387
    %p389 = scmp.ne.s32.totalorder %s378, %s379
    %p390 = scmp.eq.s32.totalorder %s29, 0
    %p391 = por %p389, %p390
    %p392 = scmp.ne.s32.totalorder %s378, %s379
    %p393 = scmp.eq.s32.totalorder %s30, 7
    %p394 = por %p392, %p393
    %p396 = scmp.ne.s32.totalorder %s379, %s395
    %p397 = scmp.eq.s32.totalorder %s30, 0
    %p398 = por %p396, %p397
    %s399 = ssub.s32 %s24, %s31
    %p400 = scmp.eq.s32.totalorder %s399, 0
    %s402 = sadd.s32 %s401, 1
    %s403 = scalar_select %p400, %s401, %s402
    %p406 = pneg %p400
    %p407 = scmp.eq.s32.totalorder %s24, 7
    %p408 = por %p406, %p407
    %p409 = scmp.ne.s32.totalorder %s401, %s404
    %p410 = scmp.eq.s32.totalorder %s24, 0
    %p411 = por %p409, %p410
    %p412 = scmp.ne.s32.totalorder %s401, %s404
    %p413 = scmp.eq.s32.totalorder %s29, 7
    %p414 = por %p412, %p413
    %p415 = scmp.ne.s32.totalorder %s404, %s405
    %p416 = scmp.eq.s32.totalorder %s29, 0
    %p417 = por %p415, %p416
    %p418 = scmp.ne.s32.totalorder %s404, %s405
    %p419 = scmp.eq.s32.totalorder %s30, 7
    %p420 = por %p418, %p419
    %p422 = scmp.ne.s32.totalorder %s405, %s421
    %p423 = scmp.eq.s32.totalorder %s30, 0
    %p424 = por %p422, %p423
    %p425 = scmp.le.s32.totalorder 1, %s24
    %p426 = scmp.lt.s32.totalorder %s24, 9
    %p427 = pnand %p425, %p426
    %p428 = pneg %p427
    // Predicated region
    $region9: #{transformer_forward.1} parent=5 // pred_check
      _
    $region10: #{transformer_forward.1} parent=5 // pred_check_branch
      %430 = sbr.rel (%p427) target = $region12
    $region11: #{transformer_forward.1} parent=5 // pred_region
      %s431 = ssub.s32 %s24, 1
      // Predicated region
      $region13: #{transformer_forward.1} parent=11 // pred_check
        %p432 = pneg %p71
      $region14: #{transformer_forward.1} parent=11 // pred_check_branch
        %434 = sbr.rel (%p432) target = $region16
      $region15: #{transformer_forward.1} parent=11 // pred_region
        _
      $region16: #{transformer_forward.1} parent=11 // pred_fallthru
        _
      // Predicated region
      $region17: #{transformer_forward.1} parent=11 // pred_check
        %p435 = pneg %p92
      $region18: #{transformer_forward.1} parent=11 // pred_check_branch
        %437 = sbr.rel (%p435) target = $region20
      $region19: #{transformer_forward.1} parent=11 // pred_region
        _
      $region20: #{transformer_forward.1} parent=11 // pred_fallthru
        _
      // Predicated region
      $region21: #{transformer_forward.1} parent=11 // pred_check
        %p438 = pneg %p113
      $region22: #{transformer_forward.1} parent=11 // pred_check_branch
        %440 = sbr.rel (%p438) target = $region24
      $region23: #{transformer_forward.1} parent=11 // pred_region
        _
      $region24: #{transformer_forward.1} parent=11 // pred_fallthru
        _
      // Predicated region
      $region25: #{transformer_forward.1} parent=11 // pred_check
        %p441 = pneg %p134
      $region26: #{transformer_forward.1} parent=11 // pred_check_branch
        %443 = sbr.rel (%p441) target = $region28
      $region27: #{transformer_forward.1} parent=11 // pred_region
        _
      $region28: #{transformer_forward.1} parent=11 // pred_fallthru
        _
      // Predicated region
      $region29: #{transformer_forward.1} parent=11 // pred_check
        %p444 = pneg %p155
      $region30: #{transformer_forward.1} parent=11 // pred_check_branch
        %446 = sbr.rel (%p444) target = $region32
      $region31: #{transformer_forward.1} parent=11 // pred_region
        _
      $region32: #{transformer_forward.1} parent=11 // pred_fallthru
        _
      // Predicated region
      $region33: #{transformer_forward.1} parent=11 // pred_check
        %p447 = pneg %p176
      $region34: #{transformer_forward.1} parent=11 // pred_check_branch
        %449 = sbr.rel (%p447) target = $region36
      $region35: #{transformer_forward.1} parent=11 // pred_region
        _
      $region36: #{transformer_forward.1} parent=11 // pred_fallthru
        _
      // Predicated region
      $region37: #{transformer_forward.1} parent=11 // pred_check
        %p450 = pneg %p197
      $region38: #{transformer_forward.1} parent=11 // pred_check_branch
        %452 = sbr.rel (%p450) target = $region40
      $region39: #{transformer_forward.1} parent=11 // pred_region
        _
      $region40: #{transformer_forward.1} parent=11 // pred_fallthru
        _
      // Predicated region
      $region41: #{transformer_forward.1} parent=11 // pred_check
        %p453 = pneg %p218
      $region42: #{transformer_forward.1} parent=11 // pred_check_branch
        %455 = sbr.rel (%p453) target = $region44
      $region43: #{transformer_forward.1} parent=11 // pred_region
        _
      $region44: #{transformer_forward.1} parent=11 // pred_fallthru
        _
      // Predicated region
      $region45: #{transformer_forward.1} parent=11 // pred_check
        %p456 = pneg %p239
      $region46: #{transformer_forward.1} parent=11 // pred_check_branch
        %458 = sbr.rel (%p456) target = $region48
      $region47: #{transformer_forward.1} parent=11 // pred_region
        _
      $region48: #{transformer_forward.1} parent=11 // pred_fallthru
        _
      // Predicated region
      $region49: #{transformer_forward.1} parent=11 // pred_check
        %p459 = pneg %p260
      $region50: #{transformer_forward.1} parent=11 // pred_check_branch
        %461 = sbr.rel (%p459) target = $region52
      $region51: #{transformer_forward.1} parent=11 // pred_region
        _
      $region52: #{transformer_forward.1} parent=11 // pred_fallthru
        _
      // Predicated region
      $region53: #{transformer_forward.1} parent=11 // pred_check
        %p462 = pneg %p281
      $region54: #{transformer_forward.1} parent=11 // pred_check_branch
        %464 = sbr.rel (%p462) target = $region56
      $region55: #{transformer_forward.1} parent=11 // pred_region
        _
      $region56: #{transformer_forward.1} parent=11 // pred_fallthru
        _
      // Predicated region
      $region57: #{transformer_forward.1} parent=11 // pred_check
        %p465 = pneg %p302
      $region58: #{transformer_forward.1} parent=11 // pred_check_branch
        %467 = sbr.rel (%p465) target = $region60
      $region59: #{transformer_forward.1} parent=11 // pred_region
        _
      $region60: #{transformer_forward.1} parent=11 // pred_fallthru
        _
      // Predicated region
      $region61: #{transformer_forward.1} parent=11 // pred_check
        %p468 = pneg %p323
      $region62: #{transformer_forward.1} parent=11 // pred_check_branch
        %470 = sbr.rel (%p468) target = $region64
      $region63: #{transformer_forward.1} parent=11 // pred_region
        _
      $region64: #{transformer_forward.1} parent=11 // pred_fallthru
        _
      // Predicated region
      $region65: #{transformer_forward.1} parent=11 // pred_check
        %p471 = pneg %p344
      $region66: #{transformer_forward.1} parent=11 // pred_check_branch
        %473 = sbr.rel (%p471) target = $region68
      $region67: #{transformer_forward.1} parent=11 // pred_region
        _
      $region68: #{transformer_forward.1} parent=11 // pred_fallthru
        _
      // Predicated region
      $region69: #{transformer_forward.1} parent=11 // pred_check
        %p474 = pneg %p365
      $region70: #{transformer_forward.1} parent=11 // pred_check_branch
        %476 = sbr.rel (%p474) target = $region72
      $region71: #{transformer_forward.1} parent=11 // pred_region
        _
      $region72: #{transformer_forward.1} parent=11 // pred_fallthru
        _
    $region12: #{transformer_forward.1} parent=5 // pred_fallthru
      _
    %p477 = scmp.lt.s32.totalorder %s24, 8
    // Predicated region
    $region73: #{transformer_forward.1} parent=5 // pred_check
      %p478 = pneg %p477
    $region74: #{transformer_forward.1} parent=5 // pred_check_branch
      %480 = sbr.rel (%p478) target = $region76
    $region75: #{transformer_forward.1} parent=5 // pred_region
      // Predicated region
      $region77: #{transformer_forward.1} parent=75 // pred_check
        %p481 = pneg %p44
      $region78: #{transformer_forward.1} parent=75 // pred_check_branch
        %483 = sbr.rel (%p481) target = $region80
      $region79: #{transformer_forward.1} parent=75 // pred_region
        %p484 = scmp.lt.s32.totalorder %s24, 7
        %s485 = scalar_select %p484, %s24, 7
        %s486 = smul.addr %s485, 2
        %s487 = scalar_lea.vmem %s0, %s486
      $region80: #{transformer_forward.1} parent=75 // pred_fallthru
        _
    $region76: #{transformer_forward.1} parent=5 // pred_fallthru
      _
    %p488 = scmp.le.s32.totalorder 1, %s24
    %p489 = scmp.lt.s32.totalorder %s24, 9
    %p490 = pnand %p488, %p489
    %p491 = pneg %p490
    // Predicated region
    $region81: #{transformer_forward.1} parent=5 // pred_check
      _
    $region82: #{transformer_forward.1} parent=5 // pred_check_branch
      %493 = sbr.rel (%p490) target = $region84
    $region83: #{transformer_forward.1} parent=5 // pred_region
      %s494 = ssub.s32 %s24, 1
      %p495 = scmp.lt.s32.totalorder %s29, 7
      %s496 = scalar_select %p495, %s29, 7
      %s497 = smul.addr %s496, 2
      %s498 = scalar_lea.vmem %s0, %s497
      %p499 = pneg %p50
      %p500 = pneg %p47
      %p501 = pneg %p71
      %p502 = pneg %p68
      %p503 = pneg %p92
      %p504 = pneg %p89
      %p505 = pneg %p113
      %p506 = pneg %p110
      %p507 = pneg %p134
      %p508 = pneg %p131
      %p509 = pneg %p155
      %p510 = pneg %p152
      %p511 = pneg %p176
      %p512 = pneg %p173
      %p513 = pneg %p197
      %p514 = pneg %p194
      %p515 = pneg %p218
      %p516 = pneg %p215
      %p517 = pneg %p239
      %p518 = pneg %p236
      %p519 = pneg %p260
      %p520 = pneg %p257
      %p521 = pneg %p281
      %p522 = pneg %p278
      %p523 = pneg %p302
      %p524 = pneg %p299
      %p525 = pneg %p323
      %p526 = pneg %p320
      %p527 = pneg %p344
      %p528 = pneg %p341
      %p529 = pneg %p365
      %p530 = pneg %p362
      %p531 = pneg %p391
      %p532 = pneg %p388
      %p533 = scmp.lt.s32.totalorder %s29, 7
      %s534 = scalar_select %p533, %s29, 7
      %s535 = smul.addr %s534, 2
      %s536 = scalar_lea.vmem %s16, %s535
      %p537 = pneg %p417
      %p538 = pneg %p414
      %p539 = scmp.lt.s32.totalorder %s29, 7
      %s540 = scalar_select %p539, %s29, 7
      %s541 = smul.addr %s540, 2
      %s542 = scalar_lea.vmem %s17, %s541
      %p543 = scmp.lt.s32.totalorder %s29, 7
      %s544 = scalar_select %p543, %s29, 7
      %s545 = smul.addr %s544, 2
      %s546 = scalar_lea.vmem %s0, %s545
      %p547 = scmp.lt.s32.totalorder %s29, 7
      %s548 = scalar_select %p547, %s29, 7
      %s549 = smul.addr %s548, 2
      %s550 = scalar_lea.vmem %s16, %s549
      %p551 = scmp.lt.s32.totalorder %s29, 7
      %s552 = scalar_select %p551, %s29, 7
      %s553 = smul.addr %s552, 2
      %s554 = scalar_lea.vmem %s17, %s553
      %v556 = vld [vmem:[%s546] sm:$0x3]
      %v557 = vlaneseq
      %v558 = vand.u32 %v557, 127
      %559 = vset.pattern.permute.xlu0 0
      %560 = vperm.xlu0 %559, %v556
      %v561 = vpop.permute.xlu0 %560
      %vm562 = vcmp.eq.s32.totalorder %v558, %v561
      %v563 = vsel %vm562, 1, 0
      %v564 = vcvt.s32.f32 %v563
      %v565 = vpack.c.bf16 %v564, %v564
      %v566 = vld [vmem:[%s1] sm:$0xf]
      %v567 = vld [vmem:[%s1 + $0x4] sm:$0xf]
      %v568 = vld [vmem:[%s1 + $0x8] sm:$0xf]
      %v569 = vld [vmem:[%s1 + $0xc] sm:$0xf]
      %v570 = vld [vmem:[%s1 + $0x10] sm:$0xf]
      %v571 = vld [vmem:[%s1 + $0x14] sm:$0xf]
      %v572 = vld [vmem:[%s1 + $0x18] sm:$0xf]
      %v573 = vld [vmem:[%s1 + $0x1c] sm:$0xf]
      %v574 = vld [vmem:[%s1 + $0x20] sm:$0xf]
      %v575 = vld [vmem:[%s1 + $0x24] sm:$0xf]
      %v576 = vld [vmem:[%s1 + $0x28] sm:$0xf]
      %v577 = vld [vmem:[%s1 + $0x2c] sm:$0xf]
      %v578 = vld [vmem:[%s1 + $0x30] sm:$0xf]
      %v579 = vld [vmem:[%s1 + $0x34] sm:$0xf]
      %v580 = vld [vmem:[%s1 + $0x38] sm:$0xf]
      %v581 = vld [vmem:[%s1 + $0x3c] sm:$0xf]
      %v598 = vunpack.c.l.b16 %v566
      %v599 = vunpack.c.l.b16 %v567
      %v600 = vunpack.c.l.b16 %v568
      %v601 = vunpack.c.l.b16 %v569
      %v602 = vunpack.c.l.b16 %v570
      %v603 = vunpack.c.l.b16 %v571
      %v604 = vunpack.c.l.b16 %v572
      %v605 = vunpack.c.l.b16 %v573
      %v606 = vunpack.c.l.b16 %v574
      %v607 = vunpack.c.l.b16 %v575
      %v608 = vunpack.c.l.b16 %v576
      %v609 = vunpack.c.l.b16 %v577
      %v610 = vunpack.c.l.b16 %v578
      %v611 = vunpack.c.l.b16 %v579
      %v612 = vunpack.c.l.b16 %v580
      %v613 = vunpack.c.l.b16 %v581
      %v614 = vpack.c.b16 %v599, %v598
      %v615 = vpack.c.b16 %v601, %v600
      %v616 = vpack.c.b16 %v603, %v602
      %v617 = vpack.c.b16 %v605, %v604
      %v618 = vpack.c.b16 %v607, %v606
      %v619 = vpack.c.b16 %v609, %v608
      %v620 = vpack.c.b16 %v611, %v610
      %v621 = vpack.c.b16 %v613, %v612
      %630 = vmatprep.subr.bf16.mxu0 0
      %631 = vmatpush1.bf16.msra.mxu0 %v621
      %632 = vmatprep.subr.bf16.mxu0 0
      %633 = vmatpush1.bf16.msra.mxu0 %v620
      %634 = vmatprep.subr.bf16.mxu0 0
      %635 = vmatpush1.bf16.msra.mxu0 %v619
      %636 = vmatprep.subr.bf16.mxu0 0
      %637 = vmatpush1.bf16.msra.mxu0 %v618
      %638 = vmatprep.subr.bf16.mxu0 0
      %639 = vmatpush1.bf16.msra.mxu0 %v617
      %640 = vmatprep.subr.bf16.mxu0 0
      %641 = vmatpush1.bf16.msra.mxu0 %v616
      %642 = vmatprep.subr.bf16.mxu0 0
      %643 = vmatpush1.bf16.msra.mxu0 %v615
      %644 = vmatprep.subr.bf16.mxu0 0
      %645 = vmatpush1.bf16.msra.mxu0 %v614
      %646 = vmatprep.subr.bf16.mxu0 0
      %647 = vmatpush2.bf16.msra.mxu0 0
      %648 = vmatprep.subr.bf16.mxu0 0
      %649 = vmatpush2.bf16.msra.mxu0 0
      %650 = vmatprep.subr.bf16.mxu0 0
      %651 = vmatpush2.bf16.msra.mxu0 0
      %652 = vmatprep.subr.bf16.mxu0 0
      %653 = vmatpush2.bf16.msra.mxu0 0
      %654 = vmatprep.subr.bf16.mxu0 0
      %655 = vmatpush2.bf16.msra.mxu0 0
      %656 = vmatprep.subr.bf16.mxu0 0
      %657 = vmatpush2.bf16.msra.mxu0 0
      %658 = vmatprep.subr.bf16.mxu0 0
      %659 = vmatpush2.bf16.msra.mxu0 0
      %660 = vmatprep.subr.bf16.mxu0 0
      %661 = vmatpush2.bf16.msra.mxu0 0
      %662 = vmatprep.mubr.bf16.mxu0 0
      %663 = vmatmul.mubr.bf16.gmra.mxu0 %v565
      %v664 = vpop.f32.mrf.mxu0
      %v665 = vadd.f32 0.0, %v664
      %v666 = vpop.f32.mrf.mxu0
      %v667 = vpop.f32.mrf.mxu0
      %v668 = vpop.f32.mrf.mxu0
      %669 = vdwg.mxu0
      %v670 = vpack.c.bf16 %v665, %v665
      %v671 = vld [vmem:[%s2] sm:$0xf]
      %v672 = vld [vmem:[%s2 + $0x4] sm:$0xf]
      %v673 = vld [vmem:[%s2 + $0x8] sm:$0xf]
      %v674 = vld [vmem:[%s2 + $0xc] sm:$0xf]
      %v675 = vld [vmem:[%s3] sm:$0x1]
      %v677 = vlaneseq
      %v678 = vshrl.u32 %v677, 7
      %v679 = vsub.s32 0, %v678
      %v680 = vrot.slane %v675, %v679
      %v686 = vunpack.c.l.b16 %v671
      %v687 = vunpack.c.l.b16 %v672
      %v688 = vunpack.c.l.b16 %v673
      %v689 = vunpack.c.l.b16 %v674
      %v690 = vpack.c.b16 %v687, %v686
      %v691 = vpack.c.b16 %v689, %v688
      %vm694 = vcmask 261120
      %v696 = vsel %vm694, %v670, 0
      %698 = vmatprep.subr.bf16.mxu0 0
      %699 = vmatpush1.bf16.msra.mxu0 0
      %700 = vmatprep.subr.bf16.mxu0 0
      %701 = vmatpush1.bf16.msra.mxu0 0
      %702 = vmatprep.subr.bf16.mxu0 0
      %703 = vmatpush1.bf16.msra.mxu0 0
      %704 = vmatprep.subr.bf16.mxu0 0
      %705 = vmatpush1.bf16.msra.mxu0 0
      %706 = vmatprep.subr.bf16.mxu0 0
      %707 = vmatpush1.bf16.msra.mxu0 0
      %708 = vmatprep.subr.bf16.mxu0 0
      %709 = vmatpush1.bf16.msra.mxu0 0
      %710 = vmatprep.subr.bf16.mxu0 0
      %711 = vmatpush1.bf16.msra.mxu0 %v691
      %712 = vmatprep.subr.bf16.mxu0 0
      %713 = vmatpush1.bf16.msra.mxu0 %v690
      %714 = vmatprep.subr.bf16.mxu0 0
      %715 = vmatpush2.bf16.msra.mxu0 0
      %716 = vmatprep.subr.bf16.mxu0 0
      %717 = vmatpush2.bf16.msra.mxu0 0
      %718 = vmatprep.subr.bf16.mxu0 0
      %719 = vmatpush2.bf16.msra.mxu0 0
      %720 = vmatprep.subr.bf16.mxu0 0
      %721 = vmatpush2.bf16.msra.mxu0 0
      %722 = vmatprep.subr.bf16.mxu0 0
      %723 = vmatpush2.bf16.msra.mxu0 0
      %724 = vmatprep.subr.bf16.mxu0 0
      %725 = vmatpush2.bf16.msra.mxu0 0
      %726 = vmatprep.subr.bf16.mxu0 0
      %727 = vmatpush2.bf16.msra.mxu0 0
      %728 = vmatprep.subr.bf16.mxu0 0
      %729 = vmatpush2.bf16.msra.mxu0 0
      %730 = vmatprep.mubr.bf16.mxu0 0
      %731 = vmatmul.mubr.bf16.gmra.mxu0 %v696
      %v732 = vpop.f32.mrf.mxu0
      %v733 = vadd.f32 %v680, %v732
      %v734 = vpop.f32.mrf.mxu0
      %v735 = vpop.f32.mrf.mxu0
      %v736 = vpop.f32.mrf.mxu0
      %737 = vdwg.mxu0
      %v738 = vmul.f32 %v733, 0.35355338
      %v739 = vld [vmem:[%s4] sm:$0xf]
      %v740 = vld [vmem:[%s4 + $0x4] sm:$0xf]
      %v741 = vld [vmem:[%s4 + $0x8] sm:$0xf]
      %v742 = vld [vmem:[%s4 + $0xc] sm:$0xf]
      %v743 = vpack.c.bf16 %v738, %v738
      %v744 = vpack.c.bf16 %v733, %v733
      %746 = vrot.lane.b32.xlu0 %v744, 96
      %v747 = vpop.permute.xlu0 %746
      %vm748 = vcmask 64512
      %v750 = vsel %vm748, %v743, 0
      %v753 = vsel %vm748, %v747, 0
      %755 = vmatprep.subr.bf16.mxu0 0
      %756 = vmatpush1.bf16.xpose.msra.mxu0 0
      %757 = vmatprep.subr.bf16.mxu0 0
      %758 = vmatpush1.bf16.xpose.msra.mxu0 0
      %759 = vmatprep.subr.bf16.mxu0 0
      %760 = vmatpush1.bf16.xpose.msra.mxu0 0
      %761 = vmatprep.subr.bf16.mxu0 0
      %762 = vmatpush1.bf16.xpose.msra.mxu0 0
      %763 = vmatprep.subr.bf16.mxu0 0
      %764 = vmatpush1.bf16.xpose.msra.mxu0 0
      %765 = vmatprep.subr.bf16.mxu0 0
      %766 = vmatpush1.bf16.xpose.msra.mxu0 0
      %767 = vmatprep.subr.bf16.mxu0 0
      %768 = vmatpush1.bf16.xpose.msra.mxu0 0
      %769 = vmatprep.subr.bf16.mxu0 0
      %770 = vmatpush1.bf16.xpose.msra.mxu0 %v753
      %771 = vmatprep.subr.bf16.mxu0 0
      %772 = vmatpush2.bf16.xpose.msra.mxu0 0
      %773 = vmatprep.subr.bf16.mxu0 0
      %774 = vmatpush2.bf16.xpose.msra.mxu0 0
      %775 = vmatprep.subr.bf16.mxu0 0
      %776 = vmatpush2.bf16.xpose.msra.mxu0 0
      %777 = vmatprep.subr.bf16.mxu0 0
      %778 = vmatpush2.bf16.xpose.msra.mxu0 0
      %779 = vmatprep.subr.bf16.mxu0 0
      %780 = vmatpush2.bf16.xpose.msra.mxu0 0
      %781 = vmatprep.subr.bf16.mxu0 0
      %782 = vmatpush2.bf16.xpose.msra.mxu0 0
      %783 = vmatprep.subr.bf16.mxu0 0
      %784 = vmatpush2.bf16.xpose.msra.mxu0 0
      %785 = vmatprep.subr.bf16.mxu0 0
      %786 = vmatpush2.bf16.xpose.msra.mxu0 0
      %787 = vmatprep.mubr.bf16.mxu0 0
      %788 = vmatmul.mubr.bf16.gmra.mxu0 %v750
      %v789 = vpop.f32.mrf.mxu0
      %v790 = vadd.f32 0.0, %v789
      %v791 = vpop.f32.mrf.mxu0
      %v792 = vpop.f32.mrf.mxu0
      %v793 = vpop.f32.mrf.mxu0
      %794 = vdwg.mxu0
      %vm795 = vcmask 9216
      %v796 = vsel %vm795, %v790, -inf
      %797 = vmax.xlane.f32.xlu0 %v796
      %v798 = vpop.xlane.xlu0 %797
      %v799 = vsub.f32 %v790, %v798
      %v800 = vmul.f32 %v799, 1.442695
      %v801 = vpow.pop %v800
      %v802 = vsel %vm795, %v801, 0.0
      %803 = vadd.xlane.f32.xlu0 %v802
      %v804 = vpop.xlane.xlu0 %803
      %v805 = vrcp.pop %v804
      %v806 = vmul.f32 %v801, %v805
      %v807 = vpack.c.bf16 %v806, %v806
      %808 = vrot.lane.b32.xlu0 %v744, 64
      %v809 = vpop.permute.xlu0 %808
      %vm810 = vcmask 15360
      %v812 = vsel %vm810, %v807, 0
      %vm814 = vcmask 1040384
      %v816 = vsel %vm814, %v809, 0
      %818 = vmatprep.subr.bf16.mxu0 0
      %819 = vmatpush1.bf16.msra.mxu0 0
      %820 = vmatprep.subr.bf16.mxu0 0
      %821 = vmatpush1.bf16.msra.mxu0 0
      %822 = vmatprep.subr.bf16.mxu0 0
      %823 = vmatpush1.bf16.msra.mxu0 0
      %824 = vmatprep.subr.bf16.mxu0 0
      %825 = vmatpush1.bf16.msra.mxu0 0
      %826 = vmatprep.subr.bf16.mxu0 0
      %827 = vmatpush1.bf16.msra.mxu0 0
      %828 = vmatprep.subr.bf16.mxu0 0
      %829 = vmatpush1.bf16.msra.mxu0 0
      %830 = vmatprep.subr.bf16.mxu0 0
      %831 = vmatpush1.bf16.msra.mxu0 0
      %832 = vmatprep.subr.bf16.mxu0 0
      %833 = vmatpush1.bf16.msra.mxu0 %v816
      %834 = vmatprep.subr.bf16.mxu0 0
      %835 = vmatpush2.bf16.msra.mxu0 0
      %836 = vmatprep.subr.bf16.mxu0 0
      %837 = vmatpush2.bf16.msra.mxu0 0
      %838 = vmatprep.subr.bf16.mxu0 0
      %839 = vmatpush2.bf16.msra.mxu0 0
      %840 = vmatprep.subr.bf16.mxu0 0
      %841 = vmatpush2.bf16.msra.mxu0 0
      %842 = vmatprep.subr.bf16.mxu0 0
      %843 = vmatpush2.bf16.msra.mxu0 0
      %844 = vmatprep.subr.bf16.mxu0 0
      %845 = vmatpush2.bf16.msra.mxu0 0
      %846 = vmatprep.subr.bf16.mxu0 0
      %847 = vmatpush2.bf16.msra.mxu0 0
      %848 = vmatprep.subr.bf16.mxu0 0
      %849 = vmatpush2.bf16.msra.mxu0 0
      %850 = vmatprep.mubr.bf16.mxu0 0
      %851 = vmatmul.mubr.bf16.gmra.mxu0 %v812
      %v852 = vpop.f32.mrf.mxu0
      %v853 = vadd.f32 0.0, %v852
      %v854 = vpop.f32.mrf.mxu0
      %v855 = vpop.f32.mrf.mxu0
      %v856 = vpop.f32.mrf.mxu0
      %857 = vdwg.mxu0
      %v858 = vpack.c.bf16 %v853, %v853
      %860 = vrot.lane.b32.xlu0 %v743, 120
      %v861 = vpop.permute.xlu0 %860
      %862 = vrot.lane.b32.xlu0 %v744, 88
      %v863 = vpop.permute.xlu0 %862
      %v865 = vsel %vm748, %v861, 0
      %v868 = vsel %vm748, %v863, 0
      %870 = vmatprep.subr.bf16.mxu0 0
      %871 = vmatpush1.bf16.xpose.msra.mxu0 0
      %872 = vmatprep.subr.bf16.mxu0 0
      %873 = vmatpush1.bf16.xpose.msra.mxu0 0
      %874 = vmatprep.subr.bf16.mxu0 0
      %875 = vmatpush1.bf16.xpose.msra.mxu0 0
      %876 = vmatprep.subr.bf16.mxu0 0
      %877 = vmatpush1.bf16.xpose.msra.mxu0 0
      %878 = vmatprep.subr.bf16.mxu0 0
      %879 = vmatpush1.bf16.xpose.msra.mxu0 0
      %880 = vmatprep.subr.bf16.mxu0 0
      %881 = vmatpush1.bf16.xpose.msra.mxu0 0
      %882 = vmatprep.subr.bf16.mxu0 0
      %883 = vmatpush1.bf16.xpose.msra.mxu0 0
      %884 = vmatprep.subr.bf16.mxu0 0
      %885 = vmatpush1.bf16.xpose.msra.mxu0 %v868
      %886 = vmatprep.subr.bf16.mxu0 0
      %887 = vmatpush2.bf16.xpose.msra.mxu0 0
      %888 = vmatprep.subr.bf16.mxu0 0
      %889 = vmatpush2.bf16.xpose.msra.mxu0 0
      %890 = vmatprep.subr.bf16.mxu0 0
      %891 = vmatpush2.bf16.xpose.msra.mxu0 0
      %892 = vmatprep.subr.bf16.mxu0 0
      %893 = vmatpush2.bf16.xpose.msra.mxu0 0
      %894 = vmatprep.subr.bf16.mxu0 0
      %895 = vmatpush2.bf16.xpose.msra.mxu0 0
      %896 = vmatprep.subr.bf16.mxu0 0
      %897 = vmatpush2.bf16.xpose.msra.mxu0 0
      %898 = vmatprep.subr.bf16.mxu0 0
      %899 = vmatpush2.bf16.xpose.msra.mxu0 0
      %900 = vmatprep.subr.bf16.mxu0 0
      %901 = vmatpush2.bf16.xpose.msra.mxu0 0
      %902 = vmatprep.mubr.bf16.mxu0 0
      %903 = vmatmul.mubr.bf16.gmra.mxu0 %v865
      %v904 = vpop.f32.mrf.mxu0
      %v905 = vadd.f32 0.0, %v904
      %v906 = vpop.f32.mrf.mxu0
      %v907 = vpop.f32.mrf.mxu0
      %v908 = vpop.f32.mrf.mxu0
      %909 = vdwg.mxu0
      %v910 = vsel %vm795, %v905, -inf
      %911 = vmax.xlane.f32.xlu0 %v910
      %v912 = vpop.xlane.xlu0 %911
      %v913 = vsub.f32 %v905, %v912
      %v914 = vmul.f32 %v913, 1.442695
      %v915 = vpow.pop %v914
      %v916 = vsel %vm795, %v915, 0.0
      %917 = vadd.xlane.f32.xlu0 %v916
      %v918 = vpop.xlane.xlu0 %917
      %v919 = vrcp.pop %v918
      %v920 = vmul.f32 %v915, %v919
      %v921 = vpack.c.bf16 %v920, %v920
      %922 = vrot.lane.b32.xlu0 %v744, 56
      %v923 = vpop.permute.xlu0 %922
      %v925 = vsel %vm810, %v921, 0
      %v928 = vsel %vm814, %v923, 0
      %930 = vmatprep.subr.bf16.mxu0 0
      %931 = vmatpush1.bf16.msra.mxu0 0
      %932 = vmatprep.subr.bf16.mxu0 0
      %933 = vmatpush1.bf16.msra.mxu0 0
      %934 = vmatprep.subr.bf16.mxu0 0
      %935 = vmatpush1.bf16.msra.mxu0 0
      %936 = vmatprep.subr.bf16.mxu0 0
      %937 = vmatpush1.bf16.msra.mxu0 0
      %938 = vmatprep.subr.bf16.mxu0 0
      %939 = vmatpush1.bf16.msra.mxu0 0
      %940 = vmatprep.subr.bf16.mxu0 0
      %941 = vmatpush1.bf16.msra.mxu0 0
      %942 = vmatprep.subr.bf16.mxu0 0
      %943 = vmatpush1.bf16.msra.mxu0 0
      %944 = vmatprep.subr.bf16.mxu0 0
      %945 = vmatpush1.bf16.msra.mxu0 %v928
      %946 = vmatprep.subr.bf16.mxu0 0
      %947 = vmatpush2.bf16.msra.mxu0 0
      %948 = vmatprep.subr.bf16.mxu0 0
      %949 = vmatpush2.bf16.msra.mxu0 0
      %950 = vmatprep.subr.bf16.mxu0 0
      %951 = vmatpush2.bf16.msra.mxu0 0
      %952 = vmatprep.subr.bf16.mxu0 0
      %953 = vmatpush2.bf16.msra.mxu0 0
      %954 = vmatprep.subr.bf16.mxu0 0
      %955 = vmatpush2.bf16.msra.mxu0 0
      %956 = vmatprep.subr.bf16.mxu0 0
      %957 = vmatpush2.bf16.msra.mxu0 0
      %958 = vmatprep.subr.bf16.mxu0 0
      %959 = vmatpush2.bf16.msra.mxu0 0
      %960 = vmatprep.subr.bf16.mxu0 0
      %961 = vmatpush2.bf16.msra.mxu0 0
      %962 = vmatprep.mubr.bf16.mxu0 0
      %963 = vmatmul.mubr.bf16.gmra.mxu0 %v925
      %v964 = vpop.f32.mrf.mxu0
      %v965 = vadd.f32 0.0, %v964
      %v966 = vpop.f32.mrf.mxu0
      %v967 = vpop.f32.mrf.mxu0
      %v968 = vpop.f32.mrf.mxu0
      %969 = vdwg.mxu0
      %v970 = vpack.c.bf16 %v965, %v965
      %v972 = vsel %vm748, %v970, 0
      %vm974 = vcmask 1043456
      %v976 = vsel %vm974, %v740, 0
      %978 = vmatprep.subr.bf16.mxu0 0
      %979 = vmatpush1.bf16.msra.mxu0 0
      %980 = vmatprep.subr.bf16.mxu0 0
      %981 = vmatpush1.bf16.msra.mxu0 0
      %982 = vmatprep.subr.bf16.mxu0 0
      %983 = vmatpush1.bf16.msra.mxu0 0
      %984 = vmatprep.subr.bf16.mxu0 0
      %985 = vmatpush1.bf16.msra.mxu0 0
      %986 = vmatprep.subr.bf16.mxu0 0
      %987 = vmatpush1.bf16.msra.mxu0 0
      %988 = vmatprep.subr.bf16.mxu0 0
      %989 = vmatpush1.bf16.msra.mxu0 0
      %990 = vmatprep.subr.bf16.mxu0 0
      %991 = vmatpush1.bf16.msra.mxu0 0
      %992 = vmatprep.subr.bf16.mxu0 0
      %993 = vmatpush1.bf16.msra.mxu0 %v976
      %994 = vmatprep.subr.bf16.mxu0 0
      %995 = vmatpush2.bf16.msra.mxu0 0
      %996 = vmatprep.subr.bf16.mxu0 0
      %997 = vmatpush2.bf16.msra.mxu0 0
      %998 = vmatprep.subr.bf16.mxu0 0
      %999 = vmatpush2.bf16.msra.mxu0 0
      %1000 = vmatprep.subr.bf16.mxu0 0
      %1001 = vmatpush2.bf16.msra.mxu0 0
      %1002 = vmatprep.subr.bf16.mxu0 0
      %1003 = vmatpush2.bf16.msra.mxu0 0
      %1004 = vmatprep.subr.bf16.mxu0 0
      %1005 = vmatpush2.bf16.msra.mxu0 0
      %1006 = vmatprep.subr.bf16.mxu0 0
      %1007 = vmatpush2.bf16.msra.mxu0 0
      %1008 = vmatprep.subr.bf16.mxu0 0
      %1009 = vmatpush2.bf16.msra.mxu0 0
      %1010 = vmatprep.mubr.bf16.mxu0 0
      %1011 = vmatmul.mubr.bf16.gmra.mxu0 %v972
      %v1012 = vpop.f32.mrf.mxu0
      %v1013 = vadd.f32 0.0, %v1012
      %v1014 = vpop.f32.mrf.mxu0
      %v1015 = vpop.f32.mrf.mxu0
      %v1016 = vpop.f32.mrf.mxu0
      %1017 = vdwg.mxu0
      %v1019 = vsel %vm748, %v858, 0
      %v1022 = vsel %vm974, %v739, 0
      %1024 = vmatprep.subr.bf16.mxu0 0
      %1025 = vmatpush1.bf16.msra.mxu0 0
      %1026 = vmatprep.subr.bf16.mxu0 0
      %1027 = vmatpush1.bf16.msra.mxu0 0
      %1028 = vmatprep.subr.bf16.mxu0 0
      %1029 = vmatpush1.bf16.msra.mxu0 0
      %1030 = vmatprep.subr.bf16.mxu0 0
      %1031 = vmatpush1.bf16.msra.mxu0 0
      %1032 = vmatprep.subr.bf16.mxu0 0
      %1033 = vmatpush1.bf16.msra.mxu0 0
      %1034 = vmatprep.subr.bf16.mxu0 0
      %1035 = vmatpush1.bf16.msra.mxu0 0
      %1036 = vmatprep.subr.bf16.mxu0 0
      %1037 = vmatpush1.bf16.msra.mxu0 0
      %1038 = vmatprep.subr.bf16.mxu0 0
      %1039 = vmatpush1.bf16.msra.mxu0 %v1022
      %1040 = vmatprep.subr.bf16.mxu0 0
      %1041 = vmatpush2.bf16.msra.mxu0 0
      %1042 = vmatprep.subr.bf16.mxu0 0
      %1043 = vmatpush2.bf16.msra.mxu0 0
      %1044 = vmatprep.subr.bf16.mxu0 0
      %1045 = vmatpush2.bf16.msra.mxu0 0
      %1046 = vmatprep.subr.bf16.mxu0 0
      %1047 = vmatpush2.bf16.msra.mxu0 0
      %1048 = vmatprep.subr.bf16.mxu0 0
      %1049 = vmatpush2.bf16.msra.mxu0 0
      %1050 = vmatprep.subr.bf16.mxu0 0
      %1051 = vmatpush2.bf16.msra.mxu0 0
      %1052 = vmatprep.subr.bf16.mxu0 0
      %1053 = vmatpush2.bf16.msra.mxu0 0
      %1054 = vmatprep.subr.bf16.mxu0 0
      %1055 = vmatpush2.bf16.msra.mxu0 0
      %1056 = vmatprep.mubr.bf16.mxu0 0
      %1057 = vmatmul.mubr.bf16.gmra.mxu0 %v1019
      %v1058 = vpop.f32.mrf.mxu0
      %v1059 = vadd.f32 %v1013, %v1058
      %v1060 = vpop.f32.mrf.mxu0
      %v1061 = vpop.f32.mrf.mxu0
      %v1062 = vpop.f32.mrf.mxu0
      %1063 = vdwg.mxu0
      %1064 = vrot.lane.b32.xlu0 %v743, 112
      %v1065 = vpop.permute.xlu0 %1064
      %1066 = vrot.lane.b32.xlu0 %v744, 80
      %v1067 = vpop.permute.xlu0 %1066
      %v1069 = vsel %vm748, %v1065, 0
      %v1072 = vsel %vm748, %v1067, 0
      %1074 = vmatprep.subr.bf16.mxu0 0
      %1075 = vmatpush1.bf16.xpose.msra.mxu0 0
      %1076 = vmatprep.subr.bf16.mxu0 0
      %1077 = vmatpush1.bf16.xpose.msra.mxu0 0
      %1078 = vmatprep.subr.bf16.mxu0 0
      %1079 = vmatpush1.bf16.xpose.msra.mxu0 0
      %1080 = vmatprep.subr.bf16.mxu0 0
      %1081 = vmatpush1.bf16.xpose.msra.mxu0 0
      %1082 = vmatprep.subr.bf16.mxu0 0
      %1083 = vmatpush1.bf16.xpose.msra.mxu0 0
      %1084 = vmatprep.subr.bf16.mxu0 0
      %1085 = vmatpush1.bf16.xpose.msra.mxu0 0
      %1086 = vmatprep.subr.bf16.mxu0 0
      %1087 = vmatpush1.bf16.xpose.msra.mxu0 0
      %1088 = vmatprep.subr.bf16.mxu0 0
      %1089 = vmatpush1.bf16.xpose.msra.mxu0 %v1072
      %1090 = vmatprep.subr.bf16.mxu0 0
      %1091 = vmatpush2.bf16.xpose.msra.mxu0 0
      %1092 = vmatprep.subr.bf16.mxu0 0
      %1093 = vmatpush2.bf16.xpose.msra.mxu0 0
      %1094 = vmatprep.subr.bf16.mxu0 0
      %1095 = vmatpush2.bf16.xpose.msra.mxu0 0
      %1096 = vmatprep.subr.bf16.mxu0 0
      %1097 = vmatpush2.bf16.xpose.msra.mxu0 0
      %1098 = vmatprep.subr.bf16.mxu0 0
      %1099 = vmatpush2.bf16.xpose.msra.mxu0 0
      %1100 = vmatprep.subr.bf16.mxu0 0
      %1101 = vmatpush2.bf16.xpose.msra.mxu0 0
      %1102 = vmatprep.subr.bf16.mxu0 0
      %1103 = vmatpush2.bf16.xpose.msra.mxu0 0
      %1104 = vmatprep.subr.bf16.mxu0 0
      %1105 = vmatpush2.bf16.xpose.msra.mxu0 0
      %1106 = vmatprep.mubr.bf16.mxu0 0
      %1107 = vmatmul.mubr.bf16.gmra.mxu0 %v1069
      %v1108 = vpop.f32.mrf.mxu0
      %v1109 = vadd.f32 0.0, %v1108
      %v1110 = vpop.f32.mrf.mxu0
      %v1111 = vpop.f32.mrf.mxu0
      %v1112 = vpop.f32.mrf.mxu0
      %1113 = vdwg.mxu0
      %v1114 = vsel %vm795, %v1109, -inf
      %1115 = vmax.xlane.f32.xlu0 %v1114
      %v1116 = vpop.xlane.xlu0 %1115
      %v1117 = vsub.f32 %v1109, %v1116
      %v1118 = vmul.f32 %v1117, 1.442695
      %v1119 = vpow.pop %v1118
      %v1120 = vsel %vm795, %v1119, 0.0
      %1121 = vadd.xlane.f32.xlu0 %v1120
      %v1122 = vpop.xlane.xlu0 %1121
      %v1123 = vrcp.pop %v1122
      %v1124 = vmul.f32 %v1119, %v1123
      %v1125 = vpack.c.bf16 %v1124, %v1124
      %1126 = vrot.lane.b32.xlu0 %v744, 48
      %v1127 = vpop.permute.xlu0 %1126
      %v1129 = vsel %vm810, %v1125, 0
      %v1132 = vsel %vm814, %v1127, 0
      %1134 = vmatprep.subr.bf16.mxu0 0
      %1135 = vmatpush1.bf16.msra.mxu0 0
      %1136 = vmatprep.subr.bf16.mxu0 0
      %1137 = vmatpush1.bf16.msra.mxu0 0
      %1138 = vmatprep.subr.bf16.mxu0 0
      %1139 = vmatpush1.bf16.msra.mxu0 0
      %1140 = vmatprep.subr.bf16.mxu0 0
      %1141 = vmatpush1.bf16.msra.mxu0 0
      %1142 = vmatprep.subr.bf16.mxu0 0
      %1143 = vmatpush1.bf16.msra.mxu0 0
      %1144 = vmatprep.subr.bf16.mxu0 0
      %1145 = vmatpush1.bf16.msra.mxu0 0
      %1146 = vmatprep.subr.bf16.mxu0 0
      %1147 = vmatpush1.bf16.msra.mxu0 0
      %1148 = vmatprep.subr.bf16.mxu0 0
      %1149 = vmatpush1.bf16.msra.mxu0 %v1132
      %1150 = vmatprep.subr.bf16.mxu0 0
      %1151 = vmatpush2.bf16.msra.mxu0 0
      %1152 = vmatprep.subr.bf16.mxu0 0
      %1153 = vmatpush2.bf16.msra.mxu0 0
      %1154 = vmatprep.subr.bf16.mxu0 0
      %1155 = vmatpush2.bf16.msra.mxu0 0
      %1156 = vmatprep.subr.bf16.mxu0 0
      %1157 = vmatpush2.bf16.msra.mxu0 0
      %1158 = vmatprep.subr.bf16.mxu0 0
      %1159 = vmatpush2.bf16.msra.mxu0 0
      %1160 = vmatprep.subr.bf16.mxu0 0
      %1161 = vmatpush2.bf16.msra.mxu0 0
      %1162 = vmatprep.subr.bf16.mxu0 0
      %1163 = vmatpush2.bf16.msra.mxu0 0
      %1164 = vmatprep.subr.bf16.mxu0 0
      %1165 = vmatpush2.bf16.msra.mxu0 0
      %1166 = vmatprep.mubr.bf16.mxu0 0
      %1167 = vmatmul.mubr.bf16.gmra.mxu0 %v1129
      %v1168 = vpop.f32.mrf.mxu0
      %v1169 = vadd.f32 0.0, %v1168
      %v1170 = vpop.f32.mrf.mxu0
      %v1171 = vpop.f32.mrf.mxu0
      %v1172 = vpop.f32.mrf.mxu0
      %1173 = vdwg.mxu0
      %v1174 = vpack.c.bf16 %v1169, %v1169
      %v1176 = vsel %vm748, %v1174, 0
      %v1179 = vsel %vm974, %v741, 0
      %1181 = vmatprep.subr.bf16.mxu0 0
      %1182 = vmatpush1.bf16.msra.mxu0 0
      %1183 = vmatprep.subr.bf16.mxu0 0
      %1184 = vmatpush1.bf16.msra.mxu0 0
      %1185 = vmatprep.subr.bf16.mxu0 0
      %1186 = vmatpush1.bf16.msra.mxu0 0
      %1187 = vmatprep.subr.bf16.mxu0 0
      %1188 = vmatpush1.bf16.msra.mxu0 0
      %1189 = vmatprep.subr.bf16.mxu0 0
      %1190 = vmatpush1.bf16.msra.mxu0 0
      %1191 = vmatprep.subr.bf16.mxu0 0
      %1192 = vmatpush1.bf16.msra.mxu0 0
      %1193 = vmatprep.subr.bf16.mxu0 0
      %1194 = vmatpush1.bf16.msra.mxu0 0
      %1195 = vmatprep.subr.bf16.mxu0 0
      %1196 = vmatpush1.bf16.msra.mxu0 %v1179
      %1197 = vmatprep.subr.bf16.mxu0 0
      %1198 = vmatpush2.bf16.msra.mxu0 0
      %1199 = vmatprep.subr.bf16.mxu0 0
      %1200 = vmatpush2.bf16.msra.mxu0 0
      %1201 = vmatprep.subr.bf16.mxu0 0
      %1202 = vmatpush2.bf16.msra.mxu0 0
      %1203 = vmatprep.subr.bf16.mxu0 0
      %1204 = vmatpush2.bf16.msra.mxu0 0
      %1205 = vmatprep.subr.bf16.mxu0 0
      %1206 = vmatpush2.bf16.msra.mxu0 0
      %1207 = vmatprep.subr.bf16.mxu0 0
      %1208 = vmatpush2.bf16.msra.mxu0 0
      %1209 = vmatprep.subr.bf16.mxu0 0
      %1210 = vmatpush2.bf16.msra.mxu0 0
      %1211 = vmatprep.subr.bf16.mxu0 0
      %1212 = vmatpush2.bf16.msra.mxu0 0
      %1213 = vmatprep.mubr.bf16.mxu0 0
      %1214 = vmatmul.mubr.bf16.gmra.mxu0 %v1176
      %v1215 = vpop.f32.mrf.mxu0
      %v1216 = vadd.f32 0.0, %v1215
      %v1217 = vpop.f32.mrf.mxu0
      %v1218 = vpop.f32.mrf.mxu0
      %v1219 = vpop.f32.mrf.mxu0
      %1220 = vdwg.mxu0
      %v1221 = vadd.f32 %v1059, %v1216
      %1222 = vrot.lane.b32.xlu0 %v743, 104
      %v1223 = vpop.permute.xlu0 %1222
      %1224 = vrot.lane.b32.xlu0 %v744, 72
      %v1225 = vpop.permute.xlu0 %1224
      %v1227 = vsel %vm748, %v1223, 0
      %v1230 = vsel %vm748, %v1225, 0
      %1232 = vmatprep.subr.bf16.mxu0 0
      %1233 = vmatpush1.bf16.xpose.msra.mxu0 0
      %1234 = vmatprep.subr.bf16.mxu0 0
      %1235 = vmatpush1.bf16.xpose.msra.mxu0 0
      %1236 = vmatprep.subr.bf16.mxu0 0
      %1237 = vmatpush1.bf16.xpose.msra.mxu0 0
      %1238 = vmatprep.subr.bf16.mxu0 0
      %1239 = vmatpush1.bf16.xpose.msra.mxu0 0
      %1240 = vmatprep.subr.bf16.mxu0 0
      %1241 = vmatpush1.bf16.xpose.msra.mxu0 0
      %1242 = vmatprep.subr.bf16.mxu0 0
      %1243 = vmatpush1.bf16.xpose.msra.mxu0 0
      %1244 = vmatprep.subr.bf16.mxu0 0
      %1245 = vmatpush1.bf16.xpose.msra.mxu0 0
      %1246 = vmatprep.subr.bf16.mxu0 0
      %1247 = vmatpush1.bf16.xpose.msra.mxu0 %v1230
      %1248 = vmatprep.subr.bf16.mxu0 0
      %1249 = vmatpush2.bf16.xpose.msra.mxu0 0
      %1250 = vmatprep.subr.bf16.mxu0 0
      %1251 = vmatpush2.bf16.xpose.msra.mxu0 0
      %1252 = vmatprep.subr.bf16.mxu0 0
      %1253 = vmatpush2.bf16.xpose.msra.mxu0 0
      %1254 = vmatprep.subr.bf16.mxu0 0
      %1255 = vmatpush2.bf16.xpose.msra.mxu0 0
      %1256 = vmatprep.subr.bf16.mxu0 0
      %1257 = vmatpush2.bf16.xpose.msra.mxu0 0
      %1258 = vmatprep.subr.bf16.mxu0 0
      %1259 = vmatpush2.bf16.xpose.msra.mxu0 0
      %1260 = vmatprep.subr.bf16.mxu0 0
      %1261 = vmatpush2.bf16.xpose.msra.mxu0 0
      %1262 = vmatprep.subr.bf16.mxu0 0
      %1263 = vmatpush2.bf16.xpose.msra.mxu0 0
      %1264 = vmatprep.mubr.bf16.mxu0 0
      %1265 = vmatmul.mubr.bf16.gmra.mxu0 %v1227
      %v1266 = vpop.f32.mrf.mxu0
      %v1267 = vadd.f32 0.0, %v1266
      %v1268 = vpop.f32.mrf.mxu0
      %v1269 = vpop.f32.mrf.mxu0
      %v1270 = vpop.f32.mrf.mxu0
      %1271 = vdwg.mxu0
      %v1272 = vsel %vm795, %v1267, -inf
      %1273 = vmax.xlane.f32.xlu0 %v1272
      %v1274 = vpop.xlane.xlu0 %1273
      %v1275 = vsub.f32 %v1267, %v1274
      %v1276 = vmul.f32 %v1275, 1.442695
      %v1277 = vpow.pop %v1276
      %v1278 = vsel %vm795, %v1277, 0.0
      %1279 = vadd.xlane.f32.xlu0 %v1278
      %v1280 = vpop.xlane.xlu0 %1279
      %v1281 = vrcp.pop %v1280
      %v1282 = vmul.f32 %v1277, %v1281
      %v1283 = vpack.c.bf16 %v1282, %v1282
      %1284 = vrot.lane.b32.xlu0 %v744, 40
      %v1285 = vpop.permute.xlu0 %1284
      %v1287 = vsel %vm810, %v1283, 0
      %v1290 = vsel %vm814, %v1285, 0
      %1292 = vmatprep.subr.bf16.mxu0 0
      %1293 = vmatpush1.bf16.msra.mxu0 0
      %1294 = vmatprep.subr.bf16.mxu0 0
      %1295 = vmatpush1.bf16.msra.mxu0 0
      %1296 = vmatprep.subr.bf16.mxu0 0
      %1297 = vmatpush1.bf16.msra.mxu0 0
      %1298 = vmatprep.subr.bf16.mxu0 0
      %1299 = vmatpush1.bf16.msra.mxu0 0
      %1300 = vmatprep.subr.bf16.mxu0 0
      %1301 = vmatpush1.bf16.msra.mxu0 0
      %1302 = vmatprep.subr.bf16.mxu0 0
      %1303 = vmatpush1.bf16.msra.mxu0 0
      %1304 = vmatprep.subr.bf16.mxu0 0
      %1305 = vmatpush1.bf16.msra.mxu0 0
      %1306 = vmatprep.subr.bf16.mxu0 0
      %1307 = vmatpush1.bf16.msra.mxu0 %v1290
      %1308 = vmatprep.subr.bf16.mxu0 0
      %1309 = vmatpush2.bf16.msra.mxu0 0
      %1310 = vmatprep.subr.bf16.mxu0 0
      %1311 = vmatpush2.bf16.msra.mxu0 0
      %1312 = vmatprep.subr.bf16.mxu0 0
      %1313 = vmatpush2.bf16.msra.mxu0 0
      %1314 = vmatprep.subr.bf16.mxu0 0
      %1315 = vmatpush2.bf16.msra.mxu0 0
      %1316 = vmatprep.subr.bf16.mxu0 0
      %1317 = vmatpush2.bf16.msra.mxu0 0
      %1318 = vmatprep.subr.bf16.mxu0 0
      %1319 = vmatpush2.bf16.msra.mxu0 0
      %1320 = vmatprep.subr.bf16.mxu0 0
      %1321 = vmatpush2.bf16.msra.mxu0 0
      %1322 = vmatprep.subr.bf16.mxu0 0
      %1323 = vmatpush2.bf16.msra.mxu0 0
      %1324 = vmatprep.mubr.bf16.mxu0 0
      %1325 = vmatmul.mubr.bf16.gmra.mxu0 %v1287
      %v1326 = vpop.f32.mrf.mxu0
      %v1327 = vadd.f32 0.0, %v1326
      %v1328 = vpop.f32.mrf.mxu0
      %v1329 = vpop.f32.mrf.mxu0
      %v1330 = vpop.f32.mrf.mxu0
      %1331 = vdwg.mxu0
      %v1332 = vpack.c.bf16 %v1327, %v1327
      %v1334 = vsel %vm748, %v1332, 0
      %v1337 = vsel %vm974, %v742, 0
      %1339 = vmatprep.subr.bf16.mxu0 0
      %1340 = vmatpush1.bf16.msra.mxu0 0
      %1341 = vmatprep.subr.bf16.mxu0 0
      %1342 = vmatpush1.bf16.msra.mxu0 0
      %1343 = vmatprep.subr.bf16.mxu0 0
      %1344 = vmatpush1.bf16.msra.mxu0 0
      %1345 = vmatprep.subr.bf16.mxu0 0
      %1346 = vmatpush1.bf16.msra.mxu0 0
      %1347 = vmatprep.subr.bf16.mxu0 0
      %1348 = vmatpush1.bf16.msra.mxu0 0
      %1349 = vmatprep.subr.bf16.mxu0 0
      %1350 = vmatpush1.bf16.msra.mxu0 0
      %1351 = vmatprep.subr.bf16.mxu0 0
      %1352 = vmatpush1.bf16.msra.mxu0 0
      %1353 = vmatprep.subr.bf16.mxu0 0
      %1354 = vmatpush1.bf16.msra.mxu0 %v1337
      %1355 = vmatprep.subr.bf16.mxu0 0
      %1356 = vmatpush2.bf16.msra.mxu0 0
      %1357 = vmatprep.subr.bf16.mxu0 0
      %1358 = vmatpush2.bf16.msra.mxu0 0
      %1359 = vmatprep.subr.bf16.mxu0 0
      %1360 = vmatpush2.bf16.msra.mxu0 0
      %1361 = vmatprep.subr.bf16.mxu0 0
      %1362 = vmatpush2.bf16.msra.mxu0 0
      %1363 = vmatprep.subr.bf16.mxu0 0
      %1364 = vmatpush2.bf16.msra.mxu0 0
      %1365 = vmatprep.subr.bf16.mxu0 0
      %1366 = vmatpush2.bf16.msra.mxu0 0
      %1367 = vmatprep.subr.bf16.mxu0 0
      %1368 = vmatpush2.bf16.msra.mxu0 0
      %1369 = vmatprep.subr.bf16.mxu0 0
      %1370 = vmatpush2.bf16.msra.mxu0 0
      %1371 = vmatprep.mubr.bf16.mxu0 0
      %1372 = vmatmul.mubr.bf16.gmra.mxu0 %v1334
      %v1373 = vpop.f32.mrf.mxu0
      %v1374 = vadd.f32 0.0, %v1373
      %v1375 = vpop.f32.mrf.mxu0
      %v1376 = vpop.f32.mrf.mxu0
      %v1377 = vpop.f32.mrf.mxu0
      %1378 = vdwg.mxu0
      %v1379 = vadd.f32 %v1221, %v1374
      %v1380 = vld [vmem:[%s5] sm:$0x1]
      %v1382 = vlaneseq
      %v1383 = vshrl.u32 %v1382, 7
      %v1384 = vsub.s32 0, %v1383
      %v1385 = vrot.slane %v1380, %v1384
      %v1387 = vadd.f32 %v1379, %v1385
      %v1388 = vadd.f32 %v665, %v1387
      %v1389 = vld [vmem:[%s6] sm:$0x1]
      %v1390 = vld [vmem:[%s7] sm:$0x1]
      %vm1391 = vcmask 254976
      %v1392 = vsel %vm1391, %v1388, 0.0
      %1393 = vadd.xlane.f32.xlu0 %v1392
      %v1394 = vpop.xlane.xlu0 %1393
      %v1395 = vrcp.pop 32.0
      %v1396 = vmul.f32 %v1394, %v1395
      %v1397 = vsub.f32 %v1388, %v1396
      %v1398 = vmul.f32 %v1397, %v1397
      %v1399 = vsel %vm1391, %v1398, 0.0
      %1400 = vadd.xlane.f32.xlu0 %v1399
      %v1401 = vpop.xlane.xlu0 %1400
      %v1402 = vmul.f32 %v1401, %v1395
      %v1403 = vadd.f32 %v1402, 1e-05
      %v1404 = vrsqrt.pop %v1403
      %v1405 = vmul.f32 %v1397, %v1404
      %v1407 = vlaneseq
      %v1408 = vshrl.u32 %v1407, 7
      %v1409 = vsub.s32 0, %v1408
      %v1410 = vrot.slane %v1389, %v1409
      %v1412 = vmul.f32 %v1405, %v1410
      %v1414 = vlaneseq
      %v1415 = vshrl.u32 %v1414, 7
      %v1416 = vsub.s32 0, %v1415
      %v1417 = vrot.slane %v1390, %v1416
      %v1419 = vadd.f32 %v1412, %v1417
      %v1420 = vpack.c.bf16 %v1419, %v1419
      %v1421 = vld [vmem:[%s8] sm:$0xf]
      %v1422 = vld [vmem:[%s8 + $0x4] sm:$0xf]
      %v1423 = vld [vmem:[%s8 + $0x8] sm:$0xf]
      %v1424 = vld [vmem:[%s8 + $0xc] sm:$0xf]
      %v1425 = vld [vmem:[%s9] sm:$0x1]
      %v1427 = vlaneseq
      %v1428 = vshrl.u32 %v1427, 7
      %v1429 = vsub.s32 0, %v1428
      %v1430 = vrot.slane %v1425, %v1429
      %v1436 = vunpack.c.l.b16 %v1421
      %v1437 = vunpack.c.l.b16 %v1422
      %v1438 = vunpack.c.l.b16 %v1423
      %v1439 = vunpack.c.l.b16 %v1424
      %v1440 = vpack.c.b16 %v1437, %v1436
      %v1441 = vpack.c.b16 %v1439, %v1438
      %v1445 = vsel %vm694, %v1420, 0
      %1447 = vmatprep.subr.bf16.mxu0 0
      %1448 = vmatpush1.bf16.msra.mxu0 0
      %1449 = vmatprep.subr.bf16.mxu0 0
      %1450 = vmatpush1.bf16.msra.mxu0 0
      %1451 = vmatprep.subr.bf16.mxu0 0
      %1452 = vmatpush1.bf16.msra.mxu0 0
      %1453 = vmatprep.subr.bf16.mxu0 0
      %1454 = vmatpush1.bf16.msra.mxu0 0
      %1455 = vmatprep.subr.bf16.mxu0 0
      %1456 = vmatpush1.bf16.msra.mxu0 0
      %1457 = vmatprep.subr.bf16.mxu0 0
      %1458 = vmatpush1.bf16.msra.mxu0 0
      %1459 = vmatprep.subr.bf16.mxu0 0
      %1460 = vmatpush1.bf16.msra.mxu0 %v1441
      %1461 = vmatprep.subr.bf16.mxu0 0
      %1462 = vmatpush1.bf16.msra.mxu0 %v1440
      %1463 = vmatprep.subr.bf16.mxu0 0
      %1464 = vmatpush2.bf16.msra.mxu0 0
      %1465 = vmatprep.subr.bf16.mxu0 0
      %1466 = vmatpush2.bf16.msra.mxu0 0
      %1467 = vmatprep.subr.bf16.mxu0 0
      %1468 = vmatpush2.bf16.msra.mxu0 0
      %1469 = vmatprep.subr.bf16.mxu0 0
      %1470 = vmatpush2.bf16.msra.mxu0 0
      %1471 = vmatprep.subr.bf16.mxu0 0
      %1472 = vmatpush2.bf16.msra.mxu0 0
      %1473 = vmatprep.subr.bf16.mxu0 0
      %1474 = vmatpush2.bf16.msra.mxu0 0
      %1475 = vmatprep.subr.bf16.mxu0 0
      %1476 = vmatpush2.bf16.msra.mxu0 0
      %1477 = vmatprep.subr.bf16.mxu0 0
      %1478 = vmatpush2.bf16.msra.mxu0 0
      %1479 = vmatprep.mubr.bf16.mxu0 0
      %1480 = vmatmul.mubr.bf16.gmra.mxu0 %v1445
      %v1481 = vpop.f32.mrf.mxu0
      %v1482 = vadd.f32 %v1430, %v1481
      %v1483 = vpop.f32.mrf.mxu0
      %v1484 = vpop.f32.mrf.mxu0
      %v1485 = vpop.f32.mrf.mxu0
      %1486 = vdwg.mxu0
      %v1487 = vmax.f32 %v1482, 0.0
      %v1488 = vpack.c.bf16 %v1487, %v1487
      %v1489 = vld [vmem:[%s10] sm:$0xf]
      %v1490 = vld [vmem:[%s10 + $0x4] sm:$0xf]
      %v1491 = vld [vmem:[%s10 + $0x8] sm:$0xf]
      %v1492 = vld [vmem:[%s10 + $0xc] sm:$0xf]
      %v1493 = vld [vmem:[%s10 + $0x10] sm:$0xf]
      %v1494 = vld [vmem:[%s10 + $0x14] sm:$0xf]
      %v1495 = vld [vmem:[%s10 + $0x18] sm:$0xf]
      %v1496 = vld [vmem:[%s10 + $0x1c] sm:$0xf]
      %v1497 = vld [vmem:[%s11] sm:$0x1]
      %v1499 = vlaneseq
      %v1500 = vshrl.u32 %v1499, 7
      %v1501 = vsub.s32 0, %v1500
      %v1502 = vrot.slane %v1497, %v1501
      %v1512 = vunpack.c.l.b16 %v1489
      %v1513 = vunpack.c.l.b16 %v1490
      %v1514 = vunpack.c.l.b16 %v1491
      %v1515 = vunpack.c.l.b16 %v1492
      %v1516 = vunpack.c.l.b16 %v1493
      %v1517 = vunpack.c.l.b16 %v1494
      %v1518 = vunpack.c.l.b16 %v1495
      %v1519 = vunpack.c.l.b16 %v1496
      %v1520 = vpack.c.b16 %v1513, %v1512
      %v1521 = vpack.c.b16 %v1515, %v1514
      %v1522 = vpack.c.b16 %v1517, %v1516
      %v1523 = vpack.c.b16 %v1519, %v1518
      %vm1528 = vcmask 523264
      %v1530 = vsel %vm1528, %v1488, 0
      %1532 = vmatprep.subr.bf16.mxu0 0
      %1533 = vmatpush1.bf16.msra.mxu0 0
      %1534 = vmatprep.subr.bf16.mxu0 0
      %1535 = vmatpush1.bf16.msra.mxu0 0
      %1536 = vmatprep.subr.bf16.mxu0 0
      %1537 = vmatpush1.bf16.msra.mxu0 0
      %1538 = vmatprep.subr.bf16.mxu0 0
      %1539 = vmatpush1.bf16.msra.mxu0 0
      %1540 = vmatprep.subr.bf16.mxu0 0
      %1541 = vmatpush1.bf16.msra.mxu0 %v1523
      %1542 = vmatprep.subr.bf16.mxu0 0
      %1543 = vmatpush1.bf16.msra.mxu0 %v1522
      %1544 = vmatprep.subr.bf16.mxu0 0
      %1545 = vmatpush1.bf16.msra.mxu0 %v1521
      %1546 = vmatprep.subr.bf16.mxu0 0
      %1547 = vmatpush1.bf16.msra.mxu0 %v1520
      %1548 = vmatprep.subr.bf16.mxu0 0
      %1549 = vmatpush2.bf16.msra.mxu0 0
      %1550 = vmatprep.subr.bf16.mxu0 0
      %1551 = vmatpush2.bf16.msra.mxu0 0
      %1552 = vmatprep.subr.bf16.mxu0 0
      %1553 = vmatpush2.bf16.msra.mxu0 0
      %1554 = vmatprep.subr.bf16.mxu0 0
      %1555 = vmatpush2.bf16.msra.mxu0 0
      %1556 = vmatprep.subr.bf16.mxu0 0
      %1557 = vmatpush2.bf16.msra.mxu0 0
      %1558 = vmatprep.subr.bf16.mxu0 0
      %1559 = vmatpush2.bf16.msra.mxu0 0
      %1560 = vmatprep.subr.bf16.mxu0 0
      %1561 = vmatpush2.bf16.msra.mxu0 0
      %1562 = vmatprep.subr.bf16.mxu0 0
      %1563 = vmatpush2.bf16.msra.mxu0 0
      %1564 = vmatprep.mubr.bf16.mxu0 0
      %1565 = vmatmul.mubr.bf16.gmra.mxu0 %v1530
      %v1566 = vpop.f32.mrf.mxu0
      %v1567 = vadd.f32 %v1502, %v1566
      %v1568 = vpop.f32.mrf.mxu0
      %v1569 = vpop.f32.mrf.mxu0
      %v1570 = vpop.f32.mrf.mxu0
      %1571 = vdwg.mxu0
      %v1572 = vadd.f32 %v1419, %v1567
      %v1573 = vld [vmem:[%s12] sm:$0x1]
      %v1574 = vld [vmem:[%s13] sm:$0x1]
      %v1575 = vsel %vm1391, %v1572, 0.0
      %1576 = vadd.xlane.f32.xlu0 %v1575
      %v1577 = vpop.xlane.xlu0 %1576
      %v1578 = vmul.f32 %v1577, %v1395
      %v1579 = vsub.f32 %v1572, %v1578
      %v1580 = vmul.f32 %v1579, %v1579
      %v1581 = vsel %vm1391, %v1580, 0.0
      %1582 = vadd.xlane.f32.xlu0 %v1581
      %v1583 = vpop.xlane.xlu0 %1582
      %v1584 = vmul.f32 %v1583, %v1395
      %v1585 = vadd.f32 %v1584, 1e-05
      %v1586 = vrsqrt.pop %v1585
      %v1587 = vmul.f32 %v1579, %v1586
      %v1589 = vlaneseq
      %v1590 = vshrl.u32 %v1589, 7
      %v1591 = vsub.s32 0, %v1590
      %v1592 = vrot.slane %v1573, %v1591
      %v1594 = vmul.f32 %v1587, %v1592
      %v1596 = vlaneseq
      %v1597 = vshrl.u32 %v1596, 7
      %v1598 = vsub.s32 0, %v1597
      %v1599 = vrot.slane %v1574, %v1598
      %v1601 = vadd.f32 %v1594, %v1599
      %v1602 = vpack.c.bf16 %v1601, %v1601
      %s1603 = scalar_lea.vmem %s2, 16
      %v1604 = vld [vmem:[%s1603] sm:$0xf]
      %v1605 = vld [vmem:[%s1603 + $0x4] sm:$0xf]
      %v1606 = vld [vmem:[%s1603 + $0x8] sm:$0xf]
      %v1607 = vld [vmem:[%s1603 + $0xc] sm:$0xf]
      %s1608 = scalar_lea.vmem %s3, 1
      %v1609 = vld [vmem:[%s1608] sm:$0x1]
      %v1611 = vlaneseq
      %v1612 = vshrl.u32 %v1611, 7
      %v1613 = vsub.s32 0, %v1612
      %v1614 = vrot.slane %v1609, %v1613
      %v1620 = vunpack.c.l.b16 %v1604
      %v1621 = vunpack.c.l.b16 %v1605
      %v1622 = vunpack.c.l.b16 %v1606
      %v1623 = vunpack.c.l.b16 %v1607
      %v1624 = vpack.c.b16 %v1621, %v1620
      %v1625 = vpack.c.b16 %v1623, %v1622
      %v1629 = vsel %vm694, %v1602, 0
      %1631 = vmatprep.subr.bf16.mxu0 0
      %1632 = vmatpush1.bf16.msra.mxu0 0
      %1633 = vmatprep.subr.bf16.mxu0 0
      %1634 = vmatpush1.bf16.msra.mxu0 0
      %1635 = vmatprep.subr.bf16.mxu0 0
      %1636 = vmatpush1.bf16.msra.mxu0 0
      %1637 = vmatprep.subr.bf16.mxu0 0
      %1638 = vmatpush1.bf16.msra.mxu0 0
      %1639 = vmatprep.subr.bf16.mxu0 0
      %1640 = vmatpush1.bf16.msra.mxu0 0
      %1641 = vmatprep.subr.bf16.mxu0 0
      %1642 = vmatpush1.bf16.msra.mxu0 0
      %1643 = vmatprep.subr.bf16.mxu0 0
      %1644 = vmatpush1.bf16.msra.mxu0 %v1625
      %1645 = vmatprep.subr.bf16.mxu0 0
      %1646 = vmatpush1.bf16.msra.mxu0 %v1624
      %1647 = vmatprep.subr.bf16.mxu0 0
      %1648 = vmatpush2.bf16.msra.mxu0 0
      %1649 = vmatprep.subr.bf16.mxu0 0
      %1650 = vmatpush2.bf16.msra.mxu0 0
      %1651 = vmatprep.subr.bf16.mxu0 0
      %1652 = vmatpush2.bf16.msra.mxu0 0
      %1653 = vmatprep.subr.bf16.mxu0 0
      %1654 = vmatpush2.bf16.msra.mxu0 0
      %1655 = vmatprep.subr.bf16.mxu0 0
      %1656 = vmatpush2.bf16.msra.mxu0 0
      %1657 = vmatprep.subr.bf16.mxu0 0
      %1658 = vmatpush2.bf16.msra.mxu0 0
      %1659 = vmatprep.subr.bf16.mxu0 0
      %1660 = vmatpush2.bf16.msra.mxu0 0
      %1661 = vmatprep.subr.bf16.mxu0 0
      %1662 = vmatpush2.bf16.msra.mxu0 0
      %1663 = vmatprep.mubr.bf16.mxu0 0
      %1664 = vmatmul.mubr.bf16.gmra.mxu0 %v1629
      %v1665 = vpop.f32.mrf.mxu0
      %v1666 = vadd.f32 %v1614, %v1665
      %v1667 = vpop.f32.mrf.mxu0
      %v1668 = vpop.f32.mrf.mxu0
      %v1669 = vpop.f32.mrf.mxu0
      %1670 = vdwg.mxu0
      %v1671 = vmul.f32 %v1666, 0.35355338
      %s1672 = scalar_lea.vmem %s4, 16
      %v1673 = vld [vmem:[%s1672] sm:$0xf]
      %v1674 = vld [vmem:[%s1672 + $0x4] sm:$0xf]
      %v1675 = vld [vmem:[%s1672 + $0x8] sm:$0xf]
      %v1676 = vld [vmem:[%s1672 + $0xc] sm:$0xf]
      %v1677 = vpack.c.bf16 %v1671, %v1671
      %v1678 = vpack.c.bf16 %v1666, %v1666
      %1680 = vrot.lane.b32.xlu0 %v1678, 96
      %v1681 = vpop.permute.xlu0 %1680
      %v1683 = vsel %vm748, %v1677, 0
      %v1686 = vsel %vm748, %v1681, 0
      %1688 = vmatprep.subr.bf16.mxu0 0
      %1689 = vmatpush1.bf16.xpose.msra.mxu0 0
      %1690 = vmatprep.subr.bf16.mxu0 0
      %1691 = vmatpush1.bf16.xpose.msra.mxu0 0
      %1692 = vmatprep.subr.bf16.mxu0 0
      %1693 = vmatpush1.bf16.xpose.msra.mxu0 0
      %1694 = vmatprep.subr.bf16.mxu0 0
      %1695 = vmatpush1.bf16.xpose.msra.mxu0 0
      %1696 = vmatprep.subr.bf16.mxu0 0
      %1697 = vmatpush1.bf16.xpose.msra.mxu0 0
      %1698 = vmatprep.subr.bf16.mxu0 0
      %1699 = vmatpush1.bf16.xpose.msra.mxu0 0
      %1700 = vmatprep.subr.bf16.mxu0 0
      %1701 = vmatpush1.bf16.xpose.msra.mxu0 0
      %1702 = vmatprep.subr.bf16.mxu0 0
      %1703 = vmatpush1.bf16.xpose.msra.mxu0 %v1686
      %1704 = vmatprep.subr.bf16.mxu0 0
      %1705 = vmatpush2.bf16.xpose.msra.mxu0 0
      %1706 = vmatprep.subr.bf16.mxu0 0
      %1707 = vmatpush2.bf16.xpose.msra.mxu0 0
      %1708 = vmatprep.subr.bf16.mxu0 0
      %1709 = vmatpush2.bf16.xpose.msra.mxu0 0
      %1710 = vmatprep.subr.bf16.mxu0 0
      %1711 = vmatpush2.bf16.xpose.msra.mxu0 0
      %1712 = vmatprep.subr.bf16.mxu0 0
      %1713 = vmatpush2.bf16.xpose.msra.mxu0 0
      %1714 = vmatprep.subr.bf16.mxu0 0
      %1715 = vmatpush2.bf16.xpose.msra.mxu0 0
      %1716 = vmatprep.subr.bf16.mxu0 0
      %1717 = vmatpush2.bf16.xpose.msra.mxu0 0
      %1718 = vmatprep.subr.bf16.mxu0 0
      %1719 = vmatpush2.bf16.xpose.msra.mxu0 0
      %1720 = vmatprep.mubr.bf16.mxu0 0
      %1721 = vmatmul.mubr.bf16.gmra.mxu0 %v1683
      %v1722 = vpop.f32.mrf.mxu0
      %v1723 = vadd.f32 0.0, %v1722
      %v1724 = vpop.f32.mrf.mxu0
      %v1725 = vpop.f32.mrf.mxu0
      %v1726 = vpop.f32.mrf.mxu0
      %1727 = vdwg.mxu0
      %v1728 = vsel %vm795, %v1723, -inf
      %1729 = vmax.xlane.f32.xlu0 %v1728
      %v1730 = vpop.xlane.xlu0 %1729
      %v1731 = vsub.f32 %v1723, %v1730
      %v1732 = vmul.f32 %v1731, 1.442695
      %v1733 = vpow.pop %v1732
      %v1734 = vsel %vm795, %v1733, 0.0
      %1735 = vadd.xlane.f32.xlu0 %v1734
      %v1736 = vpop.xlane.xlu0 %1735
      %v1737 = vrcp.pop %v1736
      %v1738 = vmul.f32 %v1733, %v1737
      %v1739 = vpack.c.bf16 %v1738, %v1738
      %1740 = vrot.lane.b32.xlu0 %v1678, 64
      %v1741 = vpop.permute.xlu0 %1740
      %v1743 = vsel %vm810, %v1739, 0
      %v1746 = vsel %vm814, %v1741, 0
      %1748 = vmatprep.subr.bf16.mxu0 0
      %1749 = vmatpush1.bf16.msra.mxu0 0
      %1750 = vmatprep.subr.bf16.mxu0 0
      %1751 = vmatpush1.bf16.msra.mxu0 0
      %1752 = vmatprep.subr.bf16.mxu0 0
      %1753 = vmatpush1.bf16.msra.mxu0 0
      %1754 = vmatprep.subr.bf16.mxu0 0
      %1755 = vmatpush1.bf16.msra.mxu0 0
      %1756 = vmatprep.subr.bf16.mxu0 0
      %1757 = vmatpush1.bf16.msra.mxu0 0
      %1758 = vmatprep.subr.bf16.mxu0 0
      %1759 = vmatpush1.bf16.msra.mxu0 0
      %1760 = vmatprep.subr.bf16.mxu0 0
      %1761 = vmatpush1.bf16.msra.mxu0 0
      %1762 = vmatprep.subr.bf16.mxu0 0
      %1763 = vmatpush1.bf16.msra.mxu0 %v1746
      %1764 = vmatprep.subr.bf16.mxu0 0
      %1765 = vmatpush2.bf16.msra.mxu0 0
      %1766 = vmatprep.subr.bf16.mxu0 0
      %1767 = vmatpush2.bf16.msra.mxu0 0
      %1768 = vmatprep.subr.bf16.mxu0 0
      %1769 = vmatpush2.bf16.msra.mxu0 0
      %1770 = vmatprep.subr.bf16.mxu0 0
      %1771 = vmatpush2.bf16.msra.mxu0 0
      %1772 = vmatprep.subr.bf16.mxu0 0
      %1773 = vmatpush2.bf16.msra.mxu0 0
      %1774 = vmatprep.subr.bf16.mxu0 0
      %1775 = vmatpush2.bf16.msra.mxu0 0
      %1776 = vmatprep.subr.bf16.mxu0 0
      %1777 = vmatpush2.bf16.msra.mxu0 0
      %1778 = vmatprep.subr.bf16.mxu0 0
      %1779 = vmatpush2.bf16.msra.mxu0 0
      %1780 = vmatprep.mubr.bf16.mxu0 0
      %1781 = vmatmul.mubr.bf16.gmra.mxu0 %v1743
      %v1782 = vpop.f32.mrf.mxu0
      %v1783 = vadd.f32 0.0, %v1782
      %v1784 = vpop.f32.mrf.mxu0
      %v1785 = vpop.f32.mrf.mxu0
      %v1786 = vpop.f32.mrf.mxu0
      %1787 = vdwg.mxu0
      %v1788 = vpack.c.bf16 %v1783, %v1783
      %1790 = vrot.lane.b32.xlu0 %v1677, 120
      %v1791 = vpop.permute.xlu0 %1790
      %1792 = vrot.lane.b32.xlu0 %v1678, 88
      %v1793 = vpop.permute.xlu0 %1792
      %v1795 = vsel %vm748, %v1791, 0
      %v1798 = vsel %vm748, %v1793, 0
      %1800 = vmatprep.subr.bf16.mxu0 0
      %1801 = vmatpush1.bf16.xpose.msra.mxu0 0
      %1802 = vmatprep.subr.bf16.mxu0 0
      %1803 = vmatpush1.bf16.xpose.msra.mxu0 0
      %1804 = vmatprep.subr.bf16.mxu0 0
      %1805 = vmatpush1.bf16.xpose.msra.mxu0 0
      %1806 = vmatprep.subr.bf16.mxu0 0
      %1807 = vmatpush1.bf16.xpose.msra.mxu0 0
      %1808 = vmatprep.subr.bf16.mxu0 0
      %1809 = vmatpush1.bf16.xpose.msra.mxu0 0
      %1810 = vmatprep.subr.bf16.mxu0 0
      %1811 = vmatpush1.bf16.xpose.msra.mxu0 0
      %1812 = vmatprep.subr.bf16.mxu0 0
      %1813 = vmatpush1.bf16.xpose.msra.mxu0 0
      %1814 = vmatprep.subr.bf16.mxu0 0
      %1815 = vmatpush1.bf16.xpose.msra.mxu0 %v1798
      %1816 = vmatprep.subr.bf16.mxu0 0
      %1817 = vmatpush2.bf16.xpose.msra.mxu0 0
      %1818 = vmatprep.subr.bf16.mxu0 0
      %1819 = vmatpush2.bf16.xpose.msra.mxu0 0
      %1820 = vmatprep.subr.bf16.mxu0 0
      %1821 = vmatpush2.bf16.xpose.msra.mxu0 0
      %1822 = vmatprep.subr.bf16.mxu0 0
      %1823 = vmatpush2.bf16.xpose.msra.mxu0 0
      %1824 = vmatprep.subr.bf16.mxu0 0
      %1825 = vmatpush2.bf16.xpose.msra.mxu0 0
      %1826 = vmatprep.subr.bf16.mxu0 0
      %1827 = vmatpush2.bf16.xpose.msra.mxu0 0
      %1828 = vmatprep.subr.bf16.mxu0 0
      %1829 = vmatpush2.bf16.xpose.msra.mxu0 0
      %1830 = vmatprep.subr.bf16.mxu0 0
      %1831 = vmatpush2.bf16.xpose.msra.mxu0 0
      %1832 = vmatprep.mubr.bf16.mxu0 0
      %1833 = vmatmul.mubr.bf16.gmra.mxu0 %v1795
      %v1834 = vpop.f32.mrf.mxu0
      %v1835 = vadd.f32 0.0, %v1834
      %v1836 = vpop.f32.mrf.mxu0
      %v1837 = vpop.f32.mrf.mxu0
      %v1838 = vpop.f32.mrf.mxu0
      %1839 = vdwg.mxu0
      %v1840 = vsel %vm795, %v1835, -inf
      %1841 = vmax.xlane.f32.xlu0 %v1840
      %v1842 = vpop.xlane.xlu0 %1841
      %v1843 = vsub.f32 %v1835, %v1842
      %v1844 = vmul.f32 %v1843, 1.442695
      %v1845 = vpow.pop %v1844
      %v1846 = vsel %vm795, %v1845, 0.0
      %1847 = vadd.xlane.f32.xlu0 %v1846
      %v1848 = vpop.xlane.xlu0 %1847
      %v1849 = vrcp.pop %v1848
      %v1850 = vmul.f32 %v1845, %v1849
      %v1851 = vpack.c.bf16 %v1850, %v1850
      %1852 = vrot.lane.b32.xlu0 %v1678, 56
      %v1853 = vpop.permute.xlu0 %1852
      %v1855 = vsel %vm810, %v1851, 0
      %v1858 = vsel %vm814, %v1853, 0
      %1860 = vmatprep.subr.bf16.mxu0 0
      %1861 = vmatpush1.bf16.msra.mxu0 0
      %1862 = vmatprep.subr.bf16.mxu0 0
      %1863 = vmatpush1.bf16.msra.mxu0 0
      %1864 = vmatprep.subr.bf16.mxu0 0
      %1865 = vmatpush1.bf16.msra.mxu0 0
      %1866 = vmatprep.subr.bf16.mxu0 0
      %1867 = vmatpush1.bf16.msra.mxu0 0
      %1868 = vmatprep.subr.bf16.mxu0 0
      %1869 = vmatpush1.bf16.msra.mxu0 0
      %1870 = vmatprep.subr.bf16.mxu0 0
      %1871 = vmatpush1.bf16.msra.mxu0 0
      %1872 = vmatprep.subr.bf16.mxu0 0
      %1873 = vmatpush1.bf16.msra.mxu0 0
      %1874 = vmatprep.subr.bf16.mxu0 0
      %1875 = vmatpush1.bf16.msra.mxu0 %v1858
      %1876 = vmatprep.subr.bf16.mxu0 0
      %1877 = vmatpush2.bf16.msra.mxu0 0
      %1878 = vmatprep.subr.bf16.mxu0 0
      %1879 = vmatpush2.bf16.msra.mxu0 0
      %1880 = vmatprep.subr.bf16.mxu0 0
      %1881 = vmatpush2.bf16.msra.mxu0 0
      %1882 = vmatprep.subr.bf16.mxu0 0
      %1883 = vmatpush2.bf16.msra.mxu0 0
      %1884 = vmatprep.subr.bf16.mxu0 0
      %1885 = vmatpush2.bf16.msra.mxu0 0
      %1886 = vmatprep.subr.bf16.mxu0 0
      %1887 = vmatpush2.bf16.msra.mxu0 0
      %1888 = vmatprep.subr.bf16.mxu0 0
      %1889 = vmatpush2.bf16.msra.mxu0 0
      %1890 = vmatprep.subr.bf16.mxu0 0
      %1891 = vmatpush2.bf16.msra.mxu0 0
      %1892 = vmatprep.mubr.bf16.mxu0 0
      %1893 = vmatmul.mubr.bf16.gmra.mxu0 %v1855
      %v1894 = vpop.f32.mrf.mxu0
      %v1895 = vadd.f32 0.0, %v1894
      %v1896 = vpop.f32.mrf.mxu0
      %v1897 = vpop.f32.mrf.mxu0
      %v1898 = vpop.f32.mrf.mxu0
      %1899 = vdwg.mxu0
      %v1900 = vpack.c.bf16 %v1895, %v1895
      %v1902 = vsel %vm748, %v1900, 0
      %v1905 = vsel %vm974, %v1674, 0
      %1907 = vmatprep.subr.bf16.mxu0 0
      %1908 = vmatpush1.bf16.msra.mxu0 0
      %1909 = vmatprep.subr.bf16.mxu0 0
      %1910 = vmatpush1.bf16.msra.mxu0 0
      %1911 = vmatprep.subr.bf16.mxu0 0
      %1912 = vmatpush1.bf16.msra.mxu0 0
      %1913 = vmatprep.subr.bf16.mxu0 0
      %1914 = vmatpush1.bf16.msra.mxu0 0
      %1915 = vmatprep.subr.bf16.mxu0 0
      %1916 = vmatpush1.bf16.msra.mxu0 0
      %1917 = vmatprep.subr.bf16.mxu0 0
      %1918 = vmatpush1.bf16.msra.mxu0 0
      %1919 = vmatprep.subr.bf16.mxu0 0
      %1920 = vmatpush1.bf16.msra.mxu0 0
      %1921 = vmatprep.subr.bf16.mxu0 0
      %1922 = vmatpush1.bf16.msra.mxu0 %v1905
      %1923 = vmatprep.subr.bf16.mxu0 0
      %1924 = vmatpush2.bf16.msra.mxu0 0
      %1925 = vmatprep.subr.bf16.mxu0 0
      %1926 = vmatpush2.bf16.msra.mxu0 0
      %1927 = vmatprep.subr.bf16.mxu0 0
      %1928 = vmatpush2.bf16.msra.mxu0 0
      %1929 = vmatprep.subr.bf16.mxu0 0
      %1930 = vmatpush2.bf16.msra.mxu0 0
      %1931 = vmatprep.subr.bf16.mxu0 0
      %1932 = vmatpush2.bf16.msra.mxu0 0
      %1933 = vmatprep.subr.bf16.mxu0 0
      %1934 = vmatpush2.bf16.msra.mxu0 0
      %1935 = vmatprep.subr.bf16.mxu0 0
      %1936 = vmatpush2.bf16.msra.mxu0 0
      %1937 = vmatprep.subr.bf16.mxu0 0
      %1938 = vmatpush2.bf16.msra.mxu0 0
      %1939 = vmatprep.mubr.bf16.mxu0 0
      %1940 = vmatmul.mubr.bf16.gmra.mxu0 %v1902
      %v1941 = vpop.f32.mrf.mxu0
      %v1942 = vadd.f32 0.0, %v1941
      %v1943 = vpop.f32.mrf.mxu0
      %v1944 = vpop.f32.mrf.mxu0
      %v1945 = vpop.f32.mrf.mxu0
      %1946 = vdwg.mxu0
      %v1948 = vsel %vm748, %v1788, 0
      %v1951 = vsel %vm974, %v1673, 0
      %1953 = vmatprep.subr.bf16.mxu0 0
      %1954 = vmatpush1.bf16.msra.mxu0 0
      %1955 = vmatprep.subr.bf16.mxu0 0
      %1956 = vmatpush1.bf16.msra.mxu0 0
      %1957 = vmatprep.subr.bf16.mxu0 0
      %1958 = vmatpush1.bf16.msra.mxu0 0
      %1959 = vmatprep.subr.bf16.mxu0 0
      %1960 = vmatpush1.bf16.msra.mxu0 0
      %1961 = vmatprep.subr.bf16.mxu0 0
      %1962 = vmatpush1.bf16.msra.mxu0 0
      %1963 = vmatprep.subr.bf16.mxu0 0
      %1964 = vmatpush1.bf16.msra.mxu0 0
      %1965 = vmatprep.subr.bf16.mxu0 0
      %1966 = vmatpush1.bf16.msra.mxu0 0
      %1967 = vmatprep.subr.bf16.mxu0 0
      %1968 = vmatpush1.bf16.msra.mxu0 %v1951
      %1969 = vmatprep.subr.bf16.mxu0 0
      %1970 = vmatpush2.bf16.msra.mxu0 0
      %1971 = vmatprep.subr.bf16.mxu0 0
      %1972 = vmatpush2.bf16.msra.mxu0 0
      %1973 = vmatprep.subr.bf16.mxu0 0
      %1974 = vmatpush2.bf16.msra.mxu0 0
      %1975 = vmatprep.subr.bf16.mxu0 0
      %1976 = vmatpush2.bf16.msra.mxu0 0
      %1977 = vmatprep.subr.bf16.mxu0 0
      %1978 = vmatpush2.bf16.msra.mxu0 0
      %1979 = vmatprep.subr.bf16.mxu0 0
      %1980 = vmatpush2.bf16.msra.mxu0 0
      %1981 = vmatprep.subr.bf16.mxu0 0
      %1982 = vmatpush2.bf16.msra.mxu0 0
      %1983 = vmatprep.subr.bf16.mxu0 0
      %1984 = vmatpush2.bf16.msra.mxu0 0
      %1985 = vmatprep.mubr.bf16.mxu0 0
      %1986 = vmatmul.mubr.bf16.gmra.mxu0 %v1948
      %v1987 = vpop.f32.mrf.mxu0
      %v1988 = vadd.f32 %v1942, %v1987
      %v1989 = vpop.f32.mrf.mxu0
      %v1990 = vpop.f32.mrf.mxu0
      %v1991 = vpop.f32.mrf.mxu0
      %1992 = vdwg.mxu0
      %1993 = vrot.lane.b32.xlu0 %v1677, 112
      %v1994 = vpop.permute.xlu0 %1993
      %1995 = vrot.lane.b32.xlu0 %v1678, 80
      %v1996 = vpop.permute.xlu0 %1995
      %v1998 = vsel %vm748, %v1994, 0
      %v2001 = vsel %vm748, %v1996, 0
      %2003 = vmatprep.subr.bf16.mxu0 0
      %2004 = vmatpush1.bf16.xpose.msra.mxu0 0
      %2005 = vmatprep.subr.bf16.mxu0 0
      %2006 = vmatpush1.bf16.xpose.msra.mxu0 0
      %2007 = vmatprep.subr.bf16.mxu0 0
      %2008 = vmatpush1.bf16.xpose.msra.mxu0 0
      %2009 = vmatprep.subr.bf16.mxu0 0
      %2010 = vmatpush1.bf16.xpose.msra.mxu0 0
      %2011 = vmatprep.subr.bf16.mxu0 0
      %2012 = vmatpush1.bf16.xpose.msra.mxu0 0
      %2013 = vmatprep.subr.bf16.mxu0 0
      %2014 = vmatpush1.bf16.xpose.msra.mxu0 0
      %2015 = vmatprep.subr.bf16.mxu0 0
      %2016 = vmatpush1.bf16.xpose.msra.mxu0 0
      %2017 = vmatprep.subr.bf16.mxu0 0
      %2018 = vmatpush1.bf16.xpose.msra.mxu0 %v2001
      %2019 = vmatprep.subr.bf16.mxu0 0
      %2020 = vmatpush2.bf16.xpose.msra.mxu0 0
      %2021 = vmatprep.subr.bf16.mxu0 0
      %2022 = vmatpush2.bf16.xpose.msra.mxu0 0
      %2023 = vmatprep.subr.bf16.mxu0 0
      %2024 = vmatpush2.bf16.xpose.msra.mxu0 0
      %2025 = vmatprep.subr.bf16.mxu0 0
      %2026 = vmatpush2.bf16.xpose.msra.mxu0 0
      %2027 = vmatprep.subr.bf16.mxu0 0
      %2028 = vmatpush2.bf16.xpose.msra.mxu0 0
      %2029 = vmatprep.subr.bf16.mxu0 0
      %2030 = vmatpush2.bf16.xpose.msra.mxu0 0
      %2031 = vmatprep.subr.bf16.mxu0 0
      %2032 = vmatpush2.bf16.xpose.msra.mxu0 0
      %2033 = vmatprep.subr.bf16.mxu0 0
      %2034 = vmatpush2.bf16.xpose.msra.mxu0 0
      %2035 = vmatprep.mubr.bf16.mxu0 0
      %2036 = vmatmul.mubr.bf16.gmra.mxu0 %v1998
      %v2037 = vpop.f32.mrf.mxu0
      %v2038 = vadd.f32 0.0, %v2037
      %v2039 = vpop.f32.mrf.mxu0
      %v2040 = vpop.f32.mrf.mxu0
      %v2041 = vpop.f32.mrf.mxu0
      %2042 = vdwg.mxu0
      %v2043 = vsel %vm795, %v2038, -inf
      %2044 = vmax.xlane.f32.xlu0 %v2043
      %v2045 = vpop.xlane.xlu0 %2044
      %v2046 = vsub.f32 %v2038, %v2045
      %v2047 = vmul.f32 %v2046, 1.442695
      %v2048 = vpow.pop %v2047
      %v2049 = vsel %vm795, %v2048, 0.0
      %2050 = vadd.xlane.f32.xlu0 %v2049
      %v2051 = vpop.xlane.xlu0 %2050
      %v2052 = vrcp.pop %v2051
      %v2053 = vmul.f32 %v2048, %v2052
      %v2054 = vpack.c.bf16 %v2053, %v2053
      %2055 = vrot.lane.b32.xlu0 %v1678, 48
      %v2056 = vpop.permute.xlu0 %2055
      %v2058 = vsel %vm810, %v2054, 0
      %v2061 = vsel %vm814, %v2056, 0
      %2063 = vmatprep.subr.bf16.mxu0 0
      %2064 = vmatpush1.bf16.msra.mxu0 0
      %2065 = vmatprep.subr.bf16.mxu0 0
      %2066 = vmatpush1.bf16.msra.mxu0 0
      %2067 = vmatprep.subr.bf16.mxu0 0
      %2068 = vmatpush1.bf16.msra.mxu0 0
      %2069 = vmatprep.subr.bf16.mxu0 0
      %2070 = vmatpush1.bf16.msra.mxu0 0
      %2071 = vmatprep.subr.bf16.mxu0 0
      %2072 = vmatpush1.bf16.msra.mxu0 0
      %2073 = vmatprep.subr.bf16.mxu0 0
      %2074 = vmatpush1.bf16.msra.mxu0 0
      %2075 = vmatprep.subr.bf16.mxu0 0
      %2076 = vmatpush1.bf16.msra.mxu0 0
      %2077 = vmatprep.subr.bf16.mxu0 0
      %2078 = vmatpush1.bf16.msra.mxu0 %v2061
      %2079 = vmatprep.subr.bf16.mxu0 0
      %2080 = vmatpush2.bf16.msra.mxu0 0
      %2081 = vmatprep.subr.bf16.mxu0 0
      %2082 = vmatpush2.bf16.msra.mxu0 0
      %2083 = vmatprep.subr.bf16.mxu0 0
      %2084 = vmatpush2.bf16.msra.mxu0 0
      %2085 = vmatprep.subr.bf16.mxu0 0
      %2086 = vmatpush2.bf16.msra.mxu0 0
      %2087 = vmatprep.subr.bf16.mxu0 0
      %2088 = vmatpush2.bf16.msra.mxu0 0
      %2089 = vmatprep.subr.bf16.mxu0 0
      %2090 = vmatpush2.bf16.msra.mxu0 0
      %2091 = vmatprep.subr.bf16.mxu0 0
      %2092 = vmatpush2.bf16.msra.mxu0 0
      %2093 = vmatprep.subr.bf16.mxu0 0
      %2094 = vmatpush2.bf16.msra.mxu0 0
      %2095 = vmatprep.mubr.bf16.mxu0 0
      %2096 = vmatmul.mubr.bf16.gmra.mxu0 %v2058
      %v2097 = vpop.f32.mrf.mxu0
      %v2098 = vadd.f32 0.0, %v2097
      %v2099 = vpop.f32.mrf.mxu0
      %v2100 = vpop.f32.mrf.mxu0
      %v2101 = vpop.f32.mrf.mxu0
      %2102 = vdwg.mxu0
      %v2103 = vpack.c.bf16 %v2098, %v2098
      %v2105 = vsel %vm748, %v2103, 0
      %v2108 = vsel %vm974, %v1675, 0
      %2110 = vmatprep.subr.bf16.mxu0 0
      %2111 = vmatpush1.bf16.msra.mxu0 0
      %2112 = vmatprep.subr.bf16.mxu0 0
      %2113 = vmatpush1.bf16.msra.mxu0 0
      %2114 = vmatprep.subr.bf16.mxu0 0
      %2115 = vmatpush1.bf16.msra.mxu0 0
      %2116 = vmatprep.subr.bf16.mxu0 0
      %2117 = vmatpush1.bf16.msra.mxu0 0
      %2118 = vmatprep.subr.bf16.mxu0 0
      %2119 = vmatpush1.bf16.msra.mxu0 0
      %2120 = vmatprep.subr.bf16.mxu0 0
      %2121 = vmatpush1.bf16.msra.mxu0 0
      %2122 = vmatprep.subr.bf16.mxu0 0
      %2123 = vmatpush1.bf16.msra.mxu0 0
      %2124 = vmatprep.subr.bf16.mxu0 0
      %2125 = vmatpush1.bf16.msra.mxu0 %v2108
      %2126 = vmatprep.subr.bf16.mxu0 0
      %2127 = vmatpush2.bf16.msra.mxu0 0
      %2128 = vmatprep.subr.bf16.mxu0 0
      %2129 = vmatpush2.bf16.msra.mxu0 0
      %2130 = vmatprep.subr.bf16.mxu0 0
      %2131 = vmatpush2.bf16.msra.mxu0 0
      %2132 = vmatprep.subr.bf16.mxu0 0
      %2133 = vmatpush2.bf16.msra.mxu0 0
      %2134 = vmatprep.subr.bf16.mxu0 0
      %2135 = vmatpush2.bf16.msra.mxu0 0
      %2136 = vmatprep.subr.bf16.mxu0 0
      %2137 = vmatpush2.bf16.msra.mxu0 0
      %2138 = vmatprep.subr.bf16.mxu0 0
      %2139 = vmatpush2.bf16.msra.mxu0 0
      %2140 = vmatprep.subr.bf16.mxu0 0
      %2141 = vmatpush2.bf16.msra.mxu0 0
      %2142 = vmatprep.mubr.bf16.mxu0 0
      %2143 = vmatmul.mubr.bf16.gmra.mxu0 %v2105
      %v2144 = vpop.f32.mrf.mxu0
      %v2145 = vadd.f32 0.0, %v2144
      %v2146 = vpop.f32.mrf.mxu0
      %v2147 = vpop.f32.mrf.mxu0
      %v2148 = vpop.f32.mrf.mxu0
      %2149 = vdwg.mxu0
      %v2150 = vadd.f32 %v1988, %v2145
      %2151 = vrot.lane.b32.xlu0 %v1677, 104
      %v2152 = vpop.permute.xlu0 %2151
      %2153 = vrot.lane.b32.xlu0 %v1678, 72
      %v2154 = vpop.permute.xlu0 %2153
      %v2156 = vsel %vm748, %v2152, 0
      %v2159 = vsel %vm748, %v2154, 0
      %2161 = vmatprep.subr.bf16.mxu0 0
      %2162 = vmatpush1.bf16.xpose.msra.mxu0 0
      %2163 = vmatprep.subr.bf16.mxu0 0
      %2164 = vmatpush1.bf16.xpose.msra.mxu0 0
      %2165 = vmatprep.subr.bf16.mxu0 0
      %2166 = vmatpush1.bf16.xpose.msra.mxu0 0
      %2167 = vmatprep.subr.bf16.mxu0 0
      %2168 = vmatpush1.bf16.xpose.msra.mxu0 0
      %2169 = vmatprep.subr.bf16.mxu0 0
      %2170 = vmatpush1.bf16.xpose.msra.mxu0 0
      %2171 = vmatprep.subr.bf16.mxu0 0
      %2172 = vmatpush1.bf16.xpose.msra.mxu0 0
      %2173 = vmatprep.subr.bf16.mxu0 0
      %2174 = vmatpush1.bf16.xpose.msra.mxu0 0
      %2175 = vmatprep.subr.bf16.mxu0 0
      %2176 = vmatpush1.bf16.xpose.msra.mxu0 %v2159
      %2177 = vmatprep.subr.bf16.mxu0 0
      %2178 = vmatpush2.bf16.xpose.msra.mxu0 0
      %2179 = vmatprep.subr.bf16.mxu0 0
      %2180 = vmatpush2.bf16.xpose.msra.mxu0 0
      %2181 = vmatprep.subr.bf16.mxu0 0
      %2182 = vmatpush2.bf16.xpose.msra.mxu0 0
      %2183 = vmatprep.subr.bf16.mxu0 0
      %2184 = vmatpush2.bf16.xpose.msra.mxu0 0
      %2185 = vmatprep.subr.bf16.mxu0 0
      %2186 = vmatpush2.bf16.xpose.msra.mxu0 0
      %2187 = vmatprep.subr.bf16.mxu0 0
      %2188 = vmatpush2.bf16.xpose.msra.mxu0 0
      %2189 = vmatprep.subr.bf16.mxu0 0
      %2190 = vmatpush2.bf16.xpose.msra.mxu0 0
      %2191 = vmatprep.subr.bf16.mxu0 0
      %2192 = vmatpush2.bf16.xpose.msra.mxu0 0
      %2193 = vmatprep.mubr.bf16.mxu0 0
      %2194 = vmatmul.mubr.bf16.gmra.mxu0 %v2156
      %v2195 = vpop.f32.mrf.mxu0
      %v2196 = vadd.f32 0.0, %v2195
      %v2197 = vpop.f32.mrf.mxu0
      %v2198 = vpop.f32.mrf.mxu0
      %v2199 = vpop.f32.mrf.mxu0
      %2200 = vdwg.mxu0
      %v2201 = vsel %vm795, %v2196, -inf
      %2202 = vmax.xlane.f32.xlu0 %v2201
      %v2203 = vpop.xlane.xlu0 %2202
      %v2204 = vsub.f32 %v2196, %v2203
      %v2205 = vmul.f32 %v2204, 1.442695
      %v2206 = vpow.pop %v2205
      %v2207 = vsel %vm795, %v2206, 0.0
      %2208 = vadd.xlane.f32.xlu0 %v2207
      %v2209 = vpop.xlane.xlu0 %2208
      %v2210 = vrcp.pop %v2209
      %v2211 = vmul.f32 %v2206, %v2210
      %v2212 = vpack.c.bf16 %v2211, %v2211
      %2213 = vrot.lane.b32.xlu0 %v1678, 40
      %v2214 = vpop.permute.xlu0 %2213
      %v2216 = vsel %vm810, %v2212, 0
      %v2219 = vsel %vm814, %v2214, 0
      %2221 = vmatprep.subr.bf16.mxu0 0
      %2222 = vmatpush1.bf16.msra.mxu0 0
      %2223 = vmatprep.subr.bf16.mxu0 0
      %2224 = vmatpush1.bf16.msra.mxu0 0
      %2225 = vmatprep.subr.bf16.mxu0 0
      %2226 = vmatpush1.bf16.msra.mxu0 0
      %2227 = vmatprep.subr.bf16.mxu0 0
      %2228 = vmatpush1.bf16.msra.mxu0 0
      %2229 = vmatprep.subr.bf16.mxu0 0
      %2230 = vmatpush1.bf16.msra.mxu0 0
      %2231 = vmatprep.subr.bf16.mxu0 0
      %2232 = vmatpush1.bf16.msra.mxu0 0
      %2233 = vmatprep.subr.bf16.mxu0 0
      %2234 = vmatpush1.bf16.msra.mxu0 0
      %2235 = vmatprep.subr.bf16.mxu0 0
      %2236 = vmatpush1.bf16.msra.mxu0 %v2219
      %2237 = vmatprep.subr.bf16.mxu0 0
      %2238 = vmatpush2.bf16.msra.mxu0 0
      %2239 = vmatprep.subr.bf16.mxu0 0
      %2240 = vmatpush2.bf16.msra.mxu0 0
      %2241 = vmatprep.subr.bf16.mxu0 0
      %2242 = vmatpush2.bf16.msra.mxu0 0
      %2243 = vmatprep.subr.bf16.mxu0 0
      %2244 = vmatpush2.bf16.msra.mxu0 0
      %2245 = vmatprep.subr.bf16.mxu0 0
      %2246 = vmatpush2.bf16.msra.mxu0 0
      %2247 = vmatprep.subr.bf16.mxu0 0
      %2248 = vmatpush2.bf16.msra.mxu0 0
      %2249 = vmatprep.subr.bf16.mxu0 0
      %2250 = vmatpush2.bf16.msra.mxu0 0
      %2251 = vmatprep.subr.bf16.mxu0 0
      %2252 = vmatpush2.bf16.msra.mxu0 0
      %2253 = vmatprep.mubr.bf16.mxu0 0
      %2254 = vmatmul.mubr.bf16.gmra.mxu0 %v2216
      %v2255 = vpop.f32.mrf.mxu0
      %v2256 = vadd.f32 0.0, %v2255
      %v2257 = vpop.f32.mrf.mxu0
      %v2258 = vpop.f32.mrf.mxu0
      %v2259 = vpop.f32.mrf.mxu0
      %2260 = vdwg.mxu0
      %v2261 = vpack.c.bf16 %v2256, %v2256
      %v2263 = vsel %vm748, %v2261, 0
      %v2266 = vsel %vm974, %v1676, 0
      %2268 = vmatprep.subr.bf16.mxu0 0
      %2269 = vmatpush1.bf16.msra.mxu0 0
      %2270 = vmatprep.subr.bf16.mxu0 0
      %2271 = vmatpush1.bf16.msra.mxu0 0
      %2272 = vmatprep.subr.bf16.mxu0 0
      %2273 = vmatpush1.bf16.msra.mxu0 0
      %2274 = vmatprep.subr.bf16.mxu0 0
      %2275 = vmatpush1.bf16.msra.mxu0 0
      %2276 = vmatprep.subr.bf16.mxu0 0
      %2277 = vmatpush1.bf16.msra.mxu0 0
      %2278 = vmatprep.subr.bf16.mxu0 0
      %2279 = vmatpush1.bf16.msra.mxu0 0
      %2280 = vmatprep.subr.bf16.mxu0 0
      %2281 = vmatpush1.bf16.msra.mxu0 0
      %2282 = vmatprep.subr.bf16.mxu0 0
      %2283 = vmatpush1.bf16.msra.mxu0 %v2266
      %2284 = vmatprep.subr.bf16.mxu0 0
      %2285 = vmatpush2.bf16.msra.mxu0 0
      %2286 = vmatprep.subr.bf16.mxu0 0
      %2287 = vmatpush2.bf16.msra.mxu0 0
      %2288 = vmatprep.subr.bf16.mxu0 0
      %2289 = vmatpush2.bf16.msra.mxu0 0
      %2290 = vmatprep.subr.bf16.mxu0 0
      %2291 = vmatpush2.bf16.msra.mxu0 0
      %2292 = vmatprep.subr.bf16.mxu0 0
      %2293 = vmatpush2.bf16.msra.mxu0 0
      %2294 = vmatprep.subr.bf16.mxu0 0
      %2295 = vmatpush2.bf16.msra.mxu0 0
      %2296 = vmatprep.subr.bf16.mxu0 0
      %2297 = vmatpush2.bf16.msra.mxu0 0
      %2298 = vmatprep.subr.bf16.mxu0 0
      %2299 = vmatpush2.bf16.msra.mxu0 0
      %2300 = vmatprep.mubr.bf16.mxu0 0
      %2301 = vmatmul.mubr.bf16.gmra.mxu0 %v2263
      %v2302 = vpop.f32.mrf.mxu0
      %v2303 = vadd.f32 0.0, %v2302
      %v2304 = vpop.f32.mrf.mxu0
      %v2305 = vpop.f32.mrf.mxu0
      %v2306 = vpop.f32.mrf.mxu0
      %2307 = vdwg.mxu0
      %v2308 = vadd.f32 %v2150, %v2303
      %s2309 = scalar_lea.vmem %s5, 1
      %v2310 = vld [vmem:[%s2309] sm:$0x1]
      %v2312 = vlaneseq
      %v2313 = vshrl.u32 %v2312, 7
      %v2314 = vsub.s32 0, %v2313
      %v2315 = vrot.slane %v2310, %v2314
      %v2317 = vadd.f32 %v2308, %v2315
      %v2318 = vadd.f32 %v1601, %v2317
      %s2319 = scalar_lea.vmem %s6, 1
      %v2320 = vld [vmem:[%s2319] sm:$0x1]
      %s2321 = scalar_lea.vmem %s7, 1
      %v2322 = vld [vmem:[%s2321] sm:$0x1]
      %v2323 = vsel %vm1391, %v2318, 0.0
      %2324 = vadd.xlane.f32.xlu0 %v2323
      %v2325 = vpop.xlane.xlu0 %2324
      %v2326 = vmul.f32 %v2325, %v1395
      %v2327 = vsub.f32 %v2318, %v2326
      %v2328 = vmul.f32 %v2327, %v2327
      %v2329 = vsel %vm1391, %v2328, 0.0
      %2330 = vadd.xlane.f32.xlu0 %v2329
      %v2331 = vpop.xlane.xlu0 %2330
      %v2332 = vmul.f32 %v2331, %v1395
      %v2333 = vadd.f32 %v2332, 1e-05
      %v2334 = vrsqrt.pop %v2333
      %v2335 = vmul.f32 %v2327, %v2334
      %v2337 = vlaneseq
      %v2338 = vshrl.u32 %v2337, 7
      %v2339 = vsub.s32 0, %v2338
      %v2340 = vrot.slane %v2320, %v2339
      %v2342 = vmul.f32 %v2335, %v2340
      %v2344 = vlaneseq
      %v2345 = vshrl.u32 %v2344, 7
      %v2346 = vsub.s32 0, %v2345
      %v2347 = vrot.slane %v2322, %v2346
      %v2349 = vadd.f32 %v2342, %v2347
      %v2350 = vpack.c.bf16 %v2349, %v2349
      %s2351 = scalar_lea.vmem %s8, 16
      %v2352 = vld [vmem:[%s2351] sm:$0xf]
      %v2353 = vld [vmem:[%s2351 + $0x4] sm:$0xf]
      %v2354 = vld [vmem:[%s2351 + $0x8] sm:$0xf]
      %v2355 = vld [vmem:[%s2351 + $0xc] sm:$0xf]
      %s2356 = scalar_lea.vmem %s9, 1
      %v2357 = vld [vmem:[%s2356] sm:$0x1]
      %v2359 = vlaneseq
      %v2360 = vshrl.u32 %v2359, 7
      %v2361 = vsub.s32 0, %v2360
      %v2362 = vrot.slane %v2357, %v2361
      %v2368 = vunpack.c.l.b16 %v2352
      %v2369 = vunpack.c.l.b16 %v2353
      %v2370 = vunpack.c.l.b16 %v2354
      %v2371 = vunpack.c.l.b16 %v2355
      %v2372 = vpack.c.b16 %v2369, %v2368
      %v2373 = vpack.c.b16 %v2371, %v2370
      %v2377 = vsel %vm694, %v2350, 0
      %2379 = vmatprep.subr.bf16.mxu0 0
      %2380 = vmatpush1.bf16.msra.mxu0 0
      %2381 = vmatprep.subr.bf16.mxu0 0
      %2382 = vmatpush1.bf16.msra.mxu0 0
      %2383 = vmatprep.subr.bf16.mxu0 0
      %2384 = vmatpush1.bf16.msra.mxu0 0
      %2385 = vmatprep.subr.bf16.mxu0 0
      %2386 = vmatpush1.bf16.msra.mxu0 0
      %2387 = vmatprep.subr.bf16.mxu0 0
      %2388 = vmatpush1.bf16.msra.mxu0 0
      %2389 = vmatprep.subr.bf16.mxu0 0
      %2390 = vmatpush1.bf16.msra.mxu0 0
      %2391 = vmatprep.subr.bf16.mxu0 0
      %2392 = vmatpush1.bf16.msra.mxu0 %v2373
      %2393 = vmatprep.subr.bf16.mxu0 0
      %2394 = vmatpush1.bf16.msra.mxu0 %v2372
      %2395 = vmatprep.subr.bf16.mxu0 0
      %2396 = vmatpush2.bf16.msra.mxu0 0
      %2397 = vmatprep.subr.bf16.mxu0 0
      %2398 = vmatpush2.bf16.msra.mxu0 0
      %2399 = vmatprep.subr.bf16.mxu0 0
      %2400 = vmatpush2.bf16.msra.mxu0 0
      %2401 = vmatprep.subr.bf16.mxu0 0
      %2402 = vmatpush2.bf16.msra.mxu0 0
      %2403 = vmatprep.subr.bf16.mxu0 0
      %2404 = vmatpush2.bf16.msra.mxu0 0
      %2405 = vmatprep.subr.bf16.mxu0 0
      %2406 = vmatpush2.bf16.msra.mxu0 0
      %2407 = vmatprep.subr.bf16.mxu0 0
      %2408 = vmatpush2.bf16.msra.mxu0 0
      %2409 = vmatprep.subr.bf16.mxu0 0
      %2410 = vmatpush2.bf16.msra.mxu0 0
      %2411 = vmatprep.mubr.bf16.mxu0 0
      %2412 = vmatmul.mubr.bf16.gmra.mxu0 %v2377
      %v2413 = vpop.f32.mrf.mxu0
      %v2414 = vadd.f32 %v2362, %v2413
      %v2415 = vpop.f32.mrf.mxu0
      %v2416 = vpop.f32.mrf.mxu0
      %v2417 = vpop.f32.mrf.mxu0
      %2418 = vdwg.mxu0
      %v2419 = vmax.f32 %v2414, 0.0
      %v2420 = vpack.c.bf16 %v2419, %v2419
      %s2421 = scalar_lea.vmem %s10, 32
      %v2422 = vld [vmem:[%s2421] sm:$0xf]
      %v2423 = vld [vmem:[%s2421 + $0x4] sm:$0xf]
      %v2424 = vld [vmem:[%s2421 + $0x8] sm:$0xf]
      %v2425 = vld [vmem:[%s2421 + $0xc] sm:$0xf]
      %v2426 = vld [vmem:[%s2421 + $0x10] sm:$0xf]
      %v2427 = vld [vmem:[%s2421 + $0x14] sm:$0xf]
      %v2428 = vld [vmem:[%s2421 + $0x18] sm:$0xf]
      %v2429 = vld [vmem:[%s2421 + $0x1c] sm:$0xf]
      %s2430 = scalar_lea.vmem %s11, 1
      %v2431 = vld [vmem:[%s2430] sm:$0x1]
      %v2433 = vlaneseq
      %v2434 = vshrl.u32 %v2433, 7
      %v2435 = vsub.s32 0, %v2434
      %v2436 = vrot.slane %v2431, %v2435
      %v2446 = vunpack.c.l.b16 %v2422
      %v2447 = vunpack.c.l.b16 %v2423
      %v2448 = vunpack.c.l.b16 %v2424
      %v2449 = vunpack.c.l.b16 %v2425
      %v2450 = vunpack.c.l.b16 %v2426
      %v2451 = vunpack.c.l.b16 %v2427
      %v2452 = vunpack.c.l.b16 %v2428
      %v2453 = vunpack.c.l.b16 %v2429
      %v2454 = vpack.c.b16 %v2447, %v2446
      %v2455 = vpack.c.b16 %v2449, %v2448
      %v2456 = vpack.c.b16 %v2451, %v2450
      %v2457 = vpack.c.b16 %v2453, %v2452
      %v2463 = vsel %vm1528, %v2420, 0
      %2465 = vmatprep.subr.bf16.mxu0 0
      %2466 = vmatpush1.bf16.msra.mxu0 0
      %2467 = vmatprep.subr.bf16.mxu0 0
      %2468 = vmatpush1.bf16.msra.mxu0 0
      %2469 = vmatprep.subr.bf16.mxu0 0
      %2470 = vmatpush1.bf16.msra.mxu0 0
      %2471 = vmatprep.subr.bf16.mxu0 0
      %2472 = vmatpush1.bf16.msra.mxu0 0
      %2473 = vmatprep.subr.bf16.mxu0 0
      %2474 = vmatpush1.bf16.msra.mxu0 %v2457
      %2475 = vmatprep.subr.bf16.mxu0 0
      %2476 = vmatpush1.bf16.msra.mxu0 %v2456
      %2477 = vmatprep.subr.bf16.mxu0 0
      %2478 = vmatpush1.bf16.msra.mxu0 %v2455
      %2479 = vmatprep.subr.bf16.mxu0 0
      %2480 = vmatpush1.bf16.msra.mxu0 %v2454
      %2481 = vmatprep.subr.bf16.mxu0 0
      %2482 = vmatpush2.bf16.msra.mxu0 0
      %2483 = vmatprep.subr.bf16.mxu0 0
      %2484 = vmatpush2.bf16.msra.mxu0 0
      %2485 = vmatprep.subr.bf16.mxu0 0
      %2486 = vmatpush2.bf16.msra.mxu0 0
      %2487 = vmatprep.subr.bf16.mxu0 0
      %2488 = vmatpush2.bf16.msra.mxu0 0
      %2489 = vmatprep.subr.bf16.mxu0 0
      %2490 = vmatpush2.bf16.msra.mxu0 0
      %2491 = vmatprep.subr.bf16.mxu0 0
      %2492 = vmatpush2.bf16.msra.mxu0 0
      %2493 = vmatprep.subr.bf16.mxu0 0
      %2494 = vmatpush2.bf16.msra.mxu0 0
      %2495 = vmatprep.subr.bf16.mxu0 0
      %2496 = vmatpush2.bf16.msra.mxu0 0
      %2497 = vmatprep.mubr.bf16.mxu0 0
      %2498 = vmatmul.mubr.bf16.gmra.mxu0 %v2463
      %v2499 = vpop.f32.mrf.mxu0
      %v2500 = vadd.f32 %v2436, %v2499
      %v2501 = vpop.f32.mrf.mxu0
      %v2502 = vpop.f32.mrf.mxu0
      %v2503 = vpop.f32.mrf.mxu0
      %2504 = vdwg.mxu0
      %v2505 = vadd.f32 %v2349, %v2500
      %s2506 = scalar_lea.vmem %s12, 1
      %v2507 = vld [vmem:[%s2506] sm:$0x1]
      %s2508 = scalar_lea.vmem %s13, 1
      %v2509 = vld [vmem:[%s2508] sm:$0x1]
      %v2510 = vsel %vm1391, %v2505, 0.0
      %2511 = vadd.xlane.f32.xlu0 %v2510
      %v2512 = vpop.xlane.xlu0 %2511
      %v2513 = vmul.f32 %v2512, %v1395
      %v2514 = vsub.f32 %v2505, %v2513
      %v2515 = vmul.f32 %v2514, %v2514
      %v2516 = vsel %vm1391, %v2515, 0.0
      %2517 = vadd.xlane.f32.xlu0 %v2516
      %v2518 = vpop.xlane.xlu0 %2517
      %v2519 = vmul.f32 %v2518, %v1395
      %v2520 = vadd.f32 %v2519, 1e-05
      %v2521 = vrsqrt.pop %v2520
      %v2522 = vmul.f32 %v2514, %v2521
      %v2524 = vlaneseq
      %v2525 = vshrl.u32 %v2524, 7
      %v2526 = vsub.s32 0, %v2525
      %v2527 = vrot.slane %v2507, %v2526
      %v2529 = vmul.f32 %v2522, %v2527
      %v2531 = vlaneseq
      %v2532 = vshrl.u32 %v2531, 7
      %v2533 = vsub.s32 0, %v2532
      %v2534 = vrot.slane %v2509, %v2533
      %v2536 = vadd.f32 %v2529, %v2534
      %2537 = vst.msk [vmem:[%s554] sm:$0x3] %vm1391, %v2536
      %v2538 = vpack.c.bf16 %v2536, %v2536
      %v2539 = vld [vmem:[%s14] sm:$0xf]
      %v2540 = vld [vmem:[%s14 + $0x4] sm:$0xf]
      %v2541 = vld [vmem:[%s14 + $0x8] sm:$0xf]
      %v2542 = vld [vmem:[%s14 + $0xc] sm:$0xf]
      %v2543 = vld [vmem:[%s15] sm:$0x1]
      %v2545 = vlaneseq
      %v2546 = vshrl.u32 %v2545, 7
      %v2547 = vsub.s32 0, %v2546
      %v2548 = vrot.slane %v2543, %v2547
      %v2554 = vunpack.c.l.b16 %v2539
      %v2555 = vunpack.c.l.b16 %v2540
      %v2556 = vunpack.c.l.b16 %v2541
      %v2557 = vunpack.c.l.b16 %v2542
      %v2558 = vpack.c.b16 %v2555, %v2554
      %v2559 = vpack.c.b16 %v2557, %v2556
      %v2563 = vsel %vm694, %v2538, 0
      %2565 = vmatprep.subr.bf16.mxu0 0
      %2566 = vmatpush1.bf16.msra.mxu0 0
      %2567 = vmatprep.subr.bf16.mxu0 0
      %2568 = vmatpush1.bf16.msra.mxu0 0
      %2569 = vmatprep.subr.bf16.mxu0 0
      %2570 = vmatpush1.bf16.msra.mxu0 0
      %2571 = vmatprep.subr.bf16.mxu0 0
      %2572 = vmatpush1.bf16.msra.mxu0 0
      %2573 = vmatprep.subr.bf16.mxu0 0
      %2574 = vmatpush1.bf16.msra.mxu0 0
      %2575 = vmatprep.subr.bf16.mxu0 0
      %2576 = vmatpush1.bf16.msra.mxu0 0
      %2577 = vmatprep.subr.bf16.mxu0 0
      %2578 = vmatpush1.bf16.msra.mxu0 %v2559
      %2579 = vmatprep.subr.bf16.mxu0 0
      %2580 = vmatpush1.bf16.msra.mxu0 %v2558
      %2581 = vmatprep.subr.bf16.mxu0 0
      %2582 = vmatpush2.bf16.msra.mxu0 0
      %2583 = vmatprep.subr.bf16.mxu0 0
      %2584 = vmatpush2.bf16.msra.mxu0 0
      %2585 = vmatprep.subr.bf16.mxu0 0
      %2586 = vmatpush2.bf16.msra.mxu0 0
      %2587 = vmatprep.subr.bf16.mxu0 0
      %2588 = vmatpush2.bf16.msra.mxu0 0
      %2589 = vmatprep.subr.bf16.mxu0 0
      %2590 = vmatpush2.bf16.msra.mxu0 0
      %2591 = vmatprep.subr.bf16.mxu0 0
      %2592 = vmatpush2.bf16.msra.mxu0 0
      %2593 = vmatprep.subr.bf16.mxu0 0
      %2594 = vmatpush2.bf16.msra.mxu0 0
      %2595 = vmatprep.subr.bf16.mxu0 0
      %2596 = vmatpush2.bf16.msra.mxu0 0
      %2597 = vmatprep.mubr.bf16.mxu0 0
      %2598 = vmatmul.mubr.bf16.gmra.mxu0 %v2563
      %v2599 = vpop.f32.mrf.mxu0
      %v2600 = vadd.f32 %v2548, %v2599
      %v2601 = vpop.f32.mrf.mxu0
      %v2602 = vpop.f32.mrf.mxu0
      %v2603 = vpop.f32.mrf.mxu0
      %2604 = vdwg.mxu0
      %2605 = vst [vmem:[%s550] sm:$0x3] %v2600
      %p2606 = scmp.lt.s32.totalorder %s29, 7
      %s2607 = scalar_select %p2606, %s29, 7
      %s2608 = smul.addr %s2607, 2
      %s2609 = scalar_lea.vmem %s16, %s2608
      %p2610 = scmp.lt.s32.totalorder %s29, 7
      %s2611 = scalar_select %p2610, %s29, 7
      %s2612 = smul.addr %s2611, 2
      %s2613 = scalar_lea.vmem %s17, %s2612
      // Predicated region
      $region85: #{transformer_forward.1} parent=83 // pred_check
        %p2614 = pneg %p388
      $region86: #{transformer_forward.1} parent=83 // pred_check_branch
        %2616 = sbr.rel (%p2614) target = $region88
      $region87: #{transformer_forward.1} parent=83 // pred_region
        _
      $region88: #{transformer_forward.1} parent=83 // pred_fallthru
        _
      // Predicated region
      $region89: #{transformer_forward.1} parent=83 // pred_check
        %p2617 = pneg %p414
      $region90: #{transformer_forward.1} parent=83 // pred_check_branch
        %2619 = sbr.rel (%p2617) target = $region92
      $region91: #{transformer_forward.1} parent=83 // pred_region
        _
      $region92: #{transformer_forward.1} parent=83 // pred_fallthru
        _
    $region84: #{transformer_forward.1} parent=5 // pred_fallthru
      _
    %p2620 = scmp.le.s32.totalorder 2, %s24
    // Predicated region
    $region93: #{transformer_forward.1} parent=5 // pred_check
      %p2621 = pneg %p2620
    $region94: #{transformer_forward.1} parent=5 // pred_check_branch
      %2623 = sbr.rel (%p2621) target = $region96
    $region95: #{transformer_forward.1} parent=5 // pred_region
      %s2624 = ssub.s32 %s24, 2
      // Predicated region
      $region97: #{transformer_forward.1} parent=95 // pred_check
        %p2625 = pneg %p394
      $region98: #{transformer_forward.1} parent=95 // pred_check_branch
        %2627 = sbr.rel (%p2625) target = $region100
      $region99: #{transformer_forward.1} parent=95 // pred_region
        %p2628 = scmp.lt.s32.totalorder %s30, 7
        %s2629 = scalar_select %p2628, %s30, 7
        %s2630 = smul.addr %s2629, 2
        %s2631 = scalar_lea.vmem %s16, %s2630
      $region100: #{transformer_forward.1} parent=95 // pred_fallthru
        _
      // Predicated region
      $region101: #{transformer_forward.1} parent=95 // pred_check
        %p2632 = pneg %p420
      $region102: #{transformer_forward.1} parent=95 // pred_check_branch
        %2634 = sbr.rel (%p2632) target = $region104
      $region103: #{transformer_forward.1} parent=95 // pred_region
        %p2635 = scmp.lt.s32.totalorder %s30, 7
        %s2636 = scalar_select %p2635, %s30, 7
        %s2637 = smul.addr %s2636, 2
        %s2638 = scalar_lea.vmem %s17, %s2637
      $region104: #{transformer_forward.1} parent=95 // pred_fallthru
        _
    $region96: #{transformer_forward.1} parent=5 // pred_fallthru
      _
  $region6: #{transformer_forward.1} parent=0 // loop_footer
    %s28 = sadd.s32 1, %s24
  $region7: #{transformer_forward.1} parent=0 // loop_footer_branch
    %23 = sbr.rel target = $region3
  $region8: #{transformer_forward.1} parent=0 // loop_exit
    _

</llo_original>
